<compile_context>
chip_gen: v7x
topology: tpu7x:2x2x1
jax: 0.10.0
libtpu: 0.0.40
codegen_flags: <defaults>
</compile_context>

<pallas_src>
import math

import numpy as np
import jax
import jax.numpy as jnp
from jax.experimental import pallas as pl
from jax.experimental.pallas import tpu as pltpu

MUL = 8                        # multiplicity of every irrep block
N_SPECIES = 4
EMB_DIM = 8
SH_DIM = 4
FEAT_DIM = 4 * MUL             # 32 = 8x0e + 8x1o (u-major e3nn layout)
CONV_DIM = 2 * MUL + 3 * MUL   # 40 = 16x0e + 8x1o (Gate input)
MID_DIM = 2 * MUL + 6 * MUL    # 64 = tp mid irreps (16x0e + 16x1o), m-major
XL1_DIM = 6 * MUL              # 48 = [lin1-0e replicated x3 | lin1-1o m-major]
EATTR_DIM = SH_DIM + EMB_DIM   # 12 = packed [sh | radial-basis] per edge
WS_DIM = MID_DIM + XL1_DIM     # 112 = fused [tp weights | sh pattern]

NODES_PER_GRAPH = 16
EDGES_PER_GRAPH = 64
N_GRAPHS = 16
GRAPHS_PER_TILE = 4                            # grid=(4,): 2 steps/TC on v7x
N_TILE = GRAPHS_PER_TILE * NODES_PER_GRAPH     # 64 nodes per grid step
E_TILE = GRAPHS_PER_TILE * EDGES_PER_GRAPH     # 256 edges per grid step
AVG_NUM_NEIGHBORS = EDGES_PER_GRAPH / NODES_PER_GRAPH

_LOG2 = math.log(2.0)
_INV_SQRT3 = 1.0 / math.sqrt(3.0)


def _ssp(v):
    # ShiftedSoftPlus: softplus(x) - log(2), numerically stable form (EUP ops).
    return jnp.maximum(v, 0.0) + jnp.log(1.0 + jnp.exp(-jnp.abs(v))) - _LOG2


# -----------------------------------------------------------------------------
# Pallas kernel: whole ConvNetLayer forward for one tile of GRAPHS_PER_TILE
# graphs (N_TILE nodes / E_TILE edges).
# -----------------------------------------------------------------------------
def _convnet_kernel(x_ref, z_ref, src_ref, dst_ref, eattr_ref,
                    wlin1_ref, wsc_ref, wf1_ref, wfused_ref, wlin2_ref,
                    rgate_ref, out_ref):
    f32 = jnp.float32
    bf16 = jnp.bfloat16
    n = x_ref.shape[0]
    e = eattr_ref.shape[0]

    x = x_ref[...]                                   # [N, 32] f32, u-major
    x_bf = x.astype(bf16)
    z_bf = z_ref[...].astype(bf16)                   # one-hot -> exact in bf16
    eattr = eattr_ref[...]                           # [E, 12] = [sh(4) | emb(8)]
    sh = eattr[:, 0:SH_DIM]
    emb = eattr[:, SH_DIM:EATTR_DIM]

    # ---- linear_1 directly on x (species independent, K=32) -----------------
    # Feeds the dominant gather matmul immediately (no kron concat in the way).
    x_l1 = jnp.dot(x_bf, wlin1_ref[...],
                   preferred_element_type=f32).astype(bf16)            # [N, 48]

    # ---- gather x_l1[edge_src] via one-hot matmul (MXU-friendly gather) -----
    src = src_ref[...]                                                 # [E, 1] i32
    col = jax.lax.broadcasted_iota(jnp.int32, (e, n), 1)
    sel = (col == src).astype(bf16)                                    # [E, N] exact
    xs = jnp.dot(sel, x_l1, preferred_element_type=f32)                # [E, 48]

    # ---- radial MLP layer 1, then fused [TP weights | sh pattern] matmul ----
    h = _ssp(jnp.dot(emb, wf1_ref[...], preferred_element_type=f32))   # [E, 8]
    hsh = jnp.concatenate([h, sh], axis=1).astype(bf16)                # [E, 12]
    ws = jnp.dot(hsh, wfused_ref[...], preferred_element_type=f32)     # [E, 112]
    wts = ws[:, 0:MID_DIM]      # [wA | wD/sqrt3 | wB x3 | wC x3]
    s48 = ws[:, MID_DIM:]       # [sh1m per-m blocks (24) | sh0 replicated (24)]

    # ---- 'uvu' tensor product (m-major vectors, wide elementwise pieces) ----
    xs0 = xs[:, 0:MUL]                      # gathered 0e (first replica)
    xs1 = xs[:, 3 * MUL:6 * MUL]            # gathered 1o, m-major
    sh0 = sh[:, 0:1]
    mA = wts[:, 0:MUL] * xs0 * sh0                                     # 0e x 0e -> 0e
    q = xs1 * s48[:, 0:3 * MUL]
    mD = wts[:, MUL:2 * MUL] * (q[:, 0:MUL] + q[:, MUL:2 * MUL]
                                + q[:, 2 * MUL:3 * MUL])               # 1o x 1o -> 0e
    mBC = wts[:, 2 * MUL:] * xs * s48                                  # 0e x 1o | 1o x 0e
    msg = jnp.concatenate([mA, mD, mBC], axis=1).astype(bf16)          # [E, 64]

    # ---- scatter-sum onto destination nodes via one-hot matmul --------------
    dst = dst_ref[...]                                                 # [1, E] i32
    row = jax.lax.broadcasted_iota(jnp.int32, (n, e), 0)
    scat = (row == dst).astype(bf16)                                   # [N, E] exact
    agg = jnp.dot(scat, msg, preferred_element_type=f32).astype(bf16)  # [N, 64]

    # ---- self-connection via kron(z, x): off the critical path --------------
    xz = jnp.concatenate(
        [x_bf * z_bf[:, v:v + 1] for v in range(N_SPECIES)], axis=1)   # [N, 128]
    sc = jnp.dot(xz, wsc_ref[...], preferred_element_type=f32)         # [N, 40]

    # ---- linear_2 (1/sqrt(avg_num_neighbors) folded in) + self connection ---
    conv = jnp.dot(agg, wlin2_ref[...], preferred_element_type=f32) + sc  # [N, 40]

    # ---- Gate (ssp scalars, ssp gates) + resnet skip -------------------------
    sg = _ssp(conv[:, 0:2 * MUL])                       # [scalars | gates]
    g24 = jnp.dot(sg[:, MUL:2 * MUL], rgate_ref[...],
                  preferred_element_type=f32)           # gates -> u-major interleave
    # write the two feature groups straight into out_ref (no narrow concat)
    out_ref[:, 0:MUL] = x[:, 0:MUL] + sg[:, 0:MUL]
    out_ref[:, MUL:] = x[:, MUL:] + conv[:, 2 * MUL:] * g24


# -----------------------------------------------------------------------------
# Wrapper
# -----------------------------------------------------------------------------
WEIGHT_KEYS = ("w_lin1", "w_sc", "w_fc1", "w_fused", "w_lin2", "r_gate")


def _cost_estimate(num_tiles, params):
    n, e = N_TILE, E_TILE
    macs = (n * FEAT_DIM * XL1_DIM                  # linear_1
            + n * N_SPECIES * FEAT_DIM * CONV_DIM   # self connection (kron)
            + e * n * XL1_DIM                       # one-hot gather
            + e * EMB_DIM * EMB_DIM                 # radial MLP layer 1
            + e * EATTR_DIM * WS_DIM                # fused [wts | s48]
            + n * e * MID_DIM                       # one-hot scatter
            + n * MID_DIM * CONV_DIM                # linear_2
            + n * MUL * 3 * MUL)                    # gate interleave
    flops = num_tiles * (2 * macs + 6 * e * MID_DIM)          # + TP elementwise
    transcendentals = num_tiles * 2 * (e * EMB_DIM + n * 2 * MUL)  # ssp = exp+log
    w_bytes = sum(int(np.prod(params[k].shape)) * params[k].dtype.itemsize
                  for k in WEIGHT_KEYS)
    data_bytes = num_tiles * 4 * (
        N_TILE * FEAT_DIM + N_TILE * N_SPECIES + E_TILE * EATTR_DIM
        + 2 * E_TILE + N_TILE * FEAT_DIM)
    return pl.CostEstimate(flops=int(flops),
                           transcendentals=int(transcendentals),
                           bytes_accessed=int(data_bytes + num_tiles * w_bytes))


def convnet_layer_forward(x, node_attrs, edge_index, edge_sh, edge_emb, params):
    n = x.shape[0]
    e = edge_sh.shape[0]
    assert n % N_TILE == 0 and e % E_TILE == 0
    num_tiles = n // N_TILE
    assert e // E_TILE == num_tiles

    # Edges are grouped per graph (and graphs per tile); convert global node ids
    # to tile-local ids so each grid step is self-contained.
    tile_base = (jnp.arange(e, dtype=jnp.int32) // E_TILE) * N_TILE
    edge_dst = (edge_index[0].astype(jnp.int32) - tile_base).reshape(1, e)  # receiver
    edge_src = (edge_index[1].astype(jnp.int32) - tile_base).reshape(e, 1)  # sender
    # Pack the two narrow per-edge inputs into one lane-contiguous block.
    edge_attr = jnp.concatenate([edge_sh, edge_emb], axis=1)                # [E, 12]

    w_specs = [pl.BlockSpec(params[k].shape, lambda t: (0, 0)) for k in WEIGHT_KEYS]

    out = pl.pallas_call(
        _convnet_kernel,
        out_shape=jax.ShapeDtypeStruct((n, FEAT_DIM), jnp.float32),
        grid=(num_tiles,),
        in_specs=[
            pl.BlockSpec((N_TILE, FEAT_DIM), lambda t: (t, 0)),      # x
            pl.BlockSpec((N_TILE, N_SPECIES), lambda t: (t, 0)),     # node_attrs
            pl.BlockSpec((E_TILE, 1), lambda t: (t, 0)),             # edge_src
            pl.BlockSpec((1, E_TILE), lambda t: (0, t)),             # edge_dst
            pl.BlockSpec((E_TILE, EATTR_DIM), lambda t: (t, 0)),     # [sh | emb]
        ] + w_specs,
        out_specs=pl.BlockSpec((N_TILE, FEAT_DIM), lambda t: (t, 0)),
        compiler_params=pltpu.CompilerParams(
            dimension_semantics=("parallel",)),   # independent tiles -> 2 TCs on v7x
        cost_estimate=_cost_estimate(num_tiles, params),
    )(x, node_attrs, edge_src, edge_dst, edge_attr,
      *[params[k] for k in WEIGHT_KEYS])
    return out


# -----------------------------------------------------------------------------
# Deterministic synthetic parameters: raw per-block weights (for the reference)
# plus the expanded / layout-folded kernel weights.
# -----------------------------------------------------------------------------
def build_params(key):
    ks = jax.random.split(key, 8)

    def rnd(k, shape):
        return jax.random.normal(k, shape, dtype=jnp.float32)

    raw = dict(
        wl1_0=rnd(ks[0], (MUL, MUL)),                               # linear_1, 0e
        wl1_1=rnd(ks[1], (MUL, MUL)),                               # linear_1, 1o
        wf1=rnd(ks[2], (EMB_DIM, EMB_DIM)) / math.sqrt(EMB_DIM),    # radial MLP
        wf2=rnd(ks[3], (EMB_DIM, 4 * MUL)) / math.sqrt(EMB_DIM),    # -> [A|B|C|D]
        wl2_0=rnd(ks[4], (2 * MUL, 2 * MUL)),                       # linear_2, 0e
        wl2_1=rnd(ks[5], (2 * MUL, MUL)),                           # linear_2, 1o
        wsc0=rnd(ks[6], (MUL, N_SPECIES, 2 * MUL)),                 # sc 0e paths
        wsc1=rnd(ks[7], (MUL, N_SPECIES, MUL)),                     # sc 1o paths
    )
    npr = {k: np.asarray(v) for k, v in raw.items()}

    sc_norm = 1.0 / math.sqrt(MUL * N_SPECIES)
    lin1_s = 1.0 / math.sqrt(MUL)
    lin2_s = 1.0 / (math.sqrt(2 * MUL) * math.sqrt(AVG_NUM_NEIGHBORS))
    u = np.arange(MUL)

    # linear_1 (species independent): x u-major -> [y0 y0 y0 | y1 m-major]
    w_lin1 = np.zeros((FEAT_DIM, XL1_DIM), np.float32)
    for k in range(3):                           # 0e output replicated 3x
        w_lin1[0:MUL, k * MUL:(k + 1) * MUL] = npr["wl1_0"] * lin1_s
    for m in range(3):                           # 1o: u-major in -> m-major out
        rows = MUL + u * 3 + m
        cols = 3 * MUL + m * MUL + u
        w_lin1[rows[:, None], cols[None, :]] = npr["wl1_1"] * lin1_s

    # self-connection (FullyConnectedTensorProduct with one-hot node attrs),
    # acting on kron(z, x_umajor) -> conv layout [16x0e | 8x1o u-major].
    w_sc = np.zeros((N_SPECIES * FEAT_DIM, CONV_DIM), np.float32)
    for v in range(N_SPECIES):
        b = v * FEAT_DIM
        w_sc[b:b + MUL, 0:2 * MUL] = npr["wsc0"][:, v, :] * sc_norm
        for m in range(3):                       # 1o: u-major in -> u-major out
            rows = b + MUL + u * 3 + m
            cols = 2 * MUL + u * 3 + m
            w_sc[rows[:, None], cols[None, :]] = npr["wsc1"][:, v, :] * sc_norm

    # Fused [TP weights | sh pattern] matmul acting on [h (8) | sh (4)]:
    #   wts = [wA | wD/sqrt(3) | wB replicated x3 | wC replicated x3]
    #   s48 = [sh1m repeated per u (24) | sh0 replicated (24)]
    wf2 = npr["wf2"]
    w_fc2e = np.concatenate(
        [wf2[:, 0:MUL],
         wf2[:, 3 * MUL:4 * MUL] * _INV_SQRT3,
         np.tile(wf2[:, MUL:2 * MUL], (1, 3)),
         np.tile(wf2[:, 2 * MUL:3 * MUL], (1, 3))], axis=1)            # [8, 64]
    w_fused = np.zeros((EATTR_DIM, WS_DIM), np.float32)
    w_fused[0:EMB_DIM, 0:MID_DIM] = w_fc2e
    for m in range(3):
        w_fused[EMB_DIM + 1 + m, MID_DIM + m * MUL:MID_DIM + (m + 1) * MUL] = 1.0
    w_fused[EMB_DIM + 0, MID_DIM + 3 * MUL:MID_DIM + 6 * MUL] = 1.0

    # linear_2: msg [mA|mD|mB(mm)|mC(mm)] -> conv [16x0e | 8x1o u-major],
    # with 1/sqrt(avg_num_neighbors) folded in.
    w_lin2 = np.zeros((MID_DIM, CONV_DIM), np.float32)
    w_lin2[:2 * MUL, :2 * MUL] = npr["wl2_0"] * lin2_s
    for m in range(3):
        cols = 2 * MUL + u * 3 + m
        rows_b = 2 * MUL + m * MUL + u
        rows_c = 2 * MUL + 3 * MUL + m * MUL + u
        w_lin2[rows_b[:, None], cols[None, :]] = npr["wl2_1"][:MUL, :] * lin2_s
        w_lin2[rows_c[:, None], cols[None, :]] = npr["wl2_1"][MUL:, :] * lin2_s

    # gate interleave: g [*, 8] -> [*, 24] with g24[:, u*3+m] = g[:, u]
    r_gate = np.zeros((MUL, 3 * MUL), np.float32)
    r_gate[u[:, None], (u * 3)[:, None] + np.arange(3)[None, :]] = 1.0

    params = dict(
        w_lin1=jnp.asarray(w_lin1, jnp.bfloat16),   # MXU operands -> bf16
        w_sc=jnp.asarray(w_sc, jnp.bfloat16),
        w_fc1=raw["wf1"],                           # tiny K=8 matmul stays f32
        w_fused=jnp.asarray(w_fused, jnp.bfloat16),
        w_lin2=jnp.asarray(w_lin2, jnp.bfloat16),
        r_gate=jnp.asarray(r_gate, jnp.float32),    # exact 0/1 interleave
    )
    return raw, params


# -----------------------------------------------------------------------------
# Pure-JAX f32 reference (textbook math, independent of the kernel weight
# expansion) for a correctness check.
# -----------------------------------------------------------------------------
def reference_forward(x, node_attrs, edge_index, edge_sh, edge_emb, raw):
    hp = jax.lax.Precision.HIGHEST
    n = x.shape[0]
    x0 = x[:, :MUL]
    x1 = x[:, MUL:].reshape(n, MUL, 3)            # (node, u, m), u-major
    z = node_attrs
    dst = edge_index[0]
    src = edge_index[1]
    sh0 = edge_sh[:, 0:1]
    sh1 = edge_sh[:, 1:4]

    sc_norm = 1.0 / math.sqrt(MUL * N_SPECIES)
    sc_s = jnp.einsum("nu,nv,uvj->nj", x0, z, raw["wsc0"], precision=hp) * sc_norm
    sc_v = jnp.einsum("num,nv,uvw->nwm", x1, z, raw["wsc1"], precision=hp) * sc_norm

    y0 = jnp.dot(x0, raw["wl1_0"], precision=hp) / math.sqrt(MUL)
    y1 = jnp.einsum("num,uw->nwm", x1, raw["wl1_1"], precision=hp) / math.sqrt(MUL)

    xs0 = y0[src]
    xs1 = y1[src]

    h = _ssp(jnp.dot(edge_emb, raw["wf1"], precision=hp))
    wts = jnp.dot(h, raw["wf2"], precision=hp)    # [E, 32] = [A|B|C|D]
    wA = wts[:, 0:MUL]
    wB = wts[:, MUL:2 * MUL]
    wC = wts[:, 2 * MUL:3 * MUL]
    wD = wts[:, 3 * MUL:4 * MUL]

    mA = wA * xs0 * sh0
    mD = wD * jnp.einsum("eum,em->eu", xs1, sh1, precision=hp) * _INV_SQRT3
    mB = (wB * xs0)[:, :, None] * sh1[:, None, :]       # [E, 8, 3]
    mC = (wC[:, :, None] * xs1) * sh0[:, :, None]       # [E, 8, 3]

    aA = jax.ops.segment_sum(mA, dst, num_segments=n)
    aD = jax.ops.segment_sum(mD, dst, num_segments=n)
    aB = jax.ops.segment_sum(mB, dst, num_segments=n)
    aC = jax.ops.segment_sum(mC, dst, num_segments=n)
    scale = 1.0 / math.sqrt(AVG_NUM_NEIGHBORS)

    a_s = jnp.concatenate([aA, aD], axis=1) * scale                 # [N, 16]
    a_v = jnp.concatenate([aB, aC], axis=1) * scale                 # [N, 16, 3]
    conv_s = jnp.dot(a_s, raw["wl2_0"], precision=hp) / math.sqrt(2 * MUL) + sc_s
    conv_v = jnp.einsum("nkm,kw->nwm", a_v, raw["wl2_1"],
                        precision=hp) / math.sqrt(2 * MUL) + sc_v

    s = _ssp(conv_s[:, :MUL])
    g = _ssp(conv_s[:, MUL:2 * MUL])
    gated = conv_v * g[:, :, None]
    out0 = x0 + s
    out1 = x1 + gated
    return jnp.concatenate([out0, out1.reshape(n, 3 * MUL)], axis=1)


if __name__ == "__main__":
    key = jax.random.PRNGKey(0)
    k_x, k_z, k_src, k_dst, k_vec, k_emb, k_par = jax.random.split(key, 7)

    n_total = N_GRAPHS * NODES_PER_GRAPH        # 256 nodes
    e_total = N_GRAPHS * EDGES_PER_GRAPH        # 1024 edges

    x = jax.random.normal(k_x, (n_total, FEAT_DIM), jnp.float32)        # node features
    species = jax.random.randint(k_z, (n_total,), 0, N_SPECIES)
    node_attrs = jax.nn.one_hot(species, N_SPECIES, dtype=jnp.float32)  # 4x0e

    # Edges grouped per graph; each graph's edges connect only its own nodes.
    graph_of_edge = jnp.repeat(jnp.arange(N_GRAPHS, dtype=jnp.int32), EDGES_PER_GRAPH)
    node_base = graph_of_edge * NODES_PER_GRAPH
    dst_loc = jax.random.randint(k_dst, (e_total,), 0, NODES_PER_GRAPH)
    src_loc = jax.random.randint(k_src, (e_total,), 0, NODES_PER_GRAPH)
    edge_index = jnp.stack([node_base + dst_loc, node_base + src_loc]).astype(jnp.int32)

    # Sanity check: every edge must stay inside its tile; a violating edge would
    # otherwise be silently dropped by the tile-local one-hot selectors.
    tb = (np.arange(e_total) // E_TILE) * N_TILE
    for r in range(2):
        loc = np.asarray(edge_index[r]) - tb
        assert loc.min() >= 0 and loc.max() < N_TILE, "edge crosses tile boundary"

    vec = jax.random.normal(k_vec, (e_total, 3), jnp.float32)
    unit = vec / jnp.linalg.norm(vec, axis=1, keepdims=True)
    edge_sh = jnp.concatenate(
        [jnp.ones((e_total, 1), jnp.float32), math.sqrt(3.0) * unit], axis=1)  # 1x0e+1x1o
    edge_emb = jax.random.normal(k_emb, (e_total, EMB_DIM), jnp.float32)

    raw, params = build_params(k_par)

    out = convnet_layer_forward(x, node_attrs, edge_index, edge_sh, edge_emb, params)
    out = jax.block_until_ready(out)

    ref = reference_forward(x, node_attrs, edge_index, edge_sh, edge_emb, raw)
    out_np = np.asarray(out)
    ref_np = np.asarray(ref)

    assert out.shape == (n_total, FEAT_DIM)
    assert bool(jnp.all(jnp.isfinite(out)))
    # Kernel uses bf16 MXU operands (f32 accumulation) on the dominant matmuls,
    # reference is pure f32 (HIGHEST); any layout / weight-expansion bug would
    # give O(1) errors on many elements, far outside these bounds.
    rel_rms = float(np.linalg.norm(out_np - ref_np) / np.linalg.norm(ref_np))
    assert rel_rms < 2e-2, f"relative RMS error too large: {rel_rms}"
    np.testing.assert_allclose(out_np, ref_np, rtol=5e-2, atol=1e-1)
    print("KERNEL_OK")
</pallas_src>

<mosaic_0001>
module attributes {stable_mosaic.version = 11 : i64} {
  func.func @_convnet_kernel(%arg0: i32, %arg1: memref<64x32xf32, #tpu.memory_space<vmem>>, %arg2: memref<64x4xf32, #tpu.memory_space<vmem>>, %arg3: memref<256x1xi32, #tpu.memory_space<vmem>>, %arg4: memref<1x256xi32, #tpu.memory_space<vmem>>, %arg5: memref<256x12xf32, #tpu.memory_space<vmem>>, %arg6: memref<32x48xbf16, #tpu.memory_space<vmem>>, %arg7: memref<128x40xbf16, #tpu.memory_space<vmem>>, %arg8: memref<8x8xf32, #tpu.memory_space<vmem>>, %arg9: memref<12x112xbf16, #tpu.memory_space<vmem>>, %arg10: memref<64x40xbf16, #tpu.memory_space<vmem>>, %arg11: memref<8x24xf32, #tpu.memory_space<vmem>>, %arg12: memref<64x32xf32, #tpu.memory_space<vmem>>) attributes {dimension_semantics = [#tpu.dimension_semantics<parallel>], iteration_bounds = array<i64: 4>, scalar_prefetch = 0 : i64, scratch_operands = 0 : i64, tpu.core_type = #tpu.core_type<tc>, window_params = [{transform_indices = @transform_0, window_bounds = array<i64: 64, 32>}, {transform_indices = @transform_1, window_bounds = array<i64: 64, 4>}, {transform_indices = @transform_2, window_bounds = array<i64: 256, 1>}, {transform_indices = @transform_3, window_bounds = array<i64: 1, 256>}, {transform_indices = @transform_4, window_bounds = array<i64: 256, 12>}, {pipeline_mode = #tpu.pipeline_mode<synchronous>, transform_indices = @transform_5, window_bounds = array<i64: 32, 48>}, {pipeline_mode = #tpu.pipeline_mode<synchronous>, transform_indices = @transform_6, window_bounds = array<i64: 128, 40>}, {pipeline_mode = #tpu.pipeline_mode<synchronous>, transform_indices = @transform_7, window_bounds = array<i64: 8, 8>}, {pipeline_mode = #tpu.pipeline_mode<synchronous>, transform_indices = @transform_8, window_bounds = array<i64: 12, 112>}, {pipeline_mode = #tpu.pipeline_mode<synchronous>, transform_indices = @transform_9, window_bounds = array<i64: 64, 40>}, {pipeline_mode = #tpu.pipeline_mode<synchronous>, transform_indices = @transform_10, window_bounds = array<i64: 8, 24>}, {transform_indices = @transform_11, window_bounds = array<i64: 64, 32>}]} {
    %c0 = arith.constant 0 : index
    %c0_0 = arith.constant 0 : index
    %0 = vector.load %arg1[%c0, %c0_0] : memref<64x32xf32, #tpu.memory_space<vmem>>, vector<64x32xf32>
    %1 = arith.truncf %0 : vector<64x32xf32> to vector<64x32xbf16>
    %c0_1 = arith.constant 0 : index
    %c0_2 = arith.constant 0 : index
    %2 = vector.load %arg2[%c0_1, %c0_2] : memref<64x4xf32, #tpu.memory_space<vmem>>, vector<64x4xf32>
    %3 = arith.truncf %2 : vector<64x4xf32> to vector<64x4xbf16>
    %c0_3 = arith.constant 0 : index
    %c0_4 = arith.constant 0 : index
    %4 = vector.load %arg5[%c0_3, %c0_4] : memref<256x12xf32, #tpu.memory_space<vmem>>, vector<256x12xf32>
    %5 = vector.extract_strided_slice %4 {offsets = [0, 0], sizes = [256, 4], strides = [1, 1]} : vector<256x12xf32> to vector<256x4xf32>
    %6 = vector.extract_strided_slice %4 {offsets = [0, 4], sizes = [256, 8], strides = [1, 1]} : vector<256x12xf32> to vector<256x8xf32>
    %c0_5 = arith.constant 0 : index
    %c0_6 = arith.constant 0 : index
    %7 = vector.load %arg6[%c0_5, %c0_6] : memref<32x48xbf16, #tpu.memory_space<vmem>>, vector<32x48xbf16>
    %cst = arith.constant dense<0.000000e+00> : vector<64x48xf32>
    %8 = tpu.matmul %1, %7, %cst {dimension_numbers = #tpu.dot_dimension_numbers<[1], [0], [0], [1], [0, 0, 1, 1], [], []>} : vector<64x32xbf16>, vector<32x48xbf16>, vector<64x48xf32> -> vector<64x48xf32>
    %9 = arith.truncf %8 : vector<64x48xf32> to vector<64x48xbf16>
    %c0_7 = arith.constant 0 : index
    %c0_8 = arith.constant 0 : index
    %10 = vector.load %arg3[%c0_7, %c0_8] : memref<256x1xi32, #tpu.memory_space<vmem>>, vector<256x1xi32>
    %11 = tpu.iota {dimensions = array<i32: 1>} : vector<256x64xi32>
    %12 = vector.broadcast %10 : vector<256x1xi32> to vector<256x64xi32>
    %13 = arith.cmpi eq, %11, %12 : vector<256x64xi32>
    %14 = arith.extui %13 : vector<256x64xi1> to vector<256x64xi32>
    %15 = arith.sitofp %14 : vector<256x64xi32> to vector<256x64xf32>
    %16 = arith.truncf %15 : vector<256x64xf32> to vector<256x64xbf16>
    %cst_9 = arith.constant dense<0.000000e+00> : vector<256x48xf32>
    %17 = tpu.matmul %16, %9, %cst_9 {dimension_numbers = #tpu.dot_dimension_numbers<[1], [0], [0], [1], [0, 0, 1, 1], [], []>} : vector<256x64xbf16>, vector<64x48xbf16>, vector<256x48xf32> -> vector<256x48xf32>
    %c0_10 = arith.constant 0 : index
    %c0_11 = arith.constant 0 : index
    %18 = vector.load %arg8[%c0_10, %c0_11] : memref<8x8xf32, #tpu.memory_space<vmem>>, vector<8x8xf32>
    %cst_12 = arith.constant dense<0.000000e+00> : vector<256x8xf32>
    %19 = tpu.matmul %6, %18, %cst_12 {dimension_numbers = #tpu.dot_dimension_numbers<[1], [0], [0], [1], [0, 0, 1, 1], [], []>} : vector<256x8xf32>, vector<8x8xf32>, vector<256x8xf32> -> vector<256x8xf32>
    %cst_13 = arith.constant 0.000000e+00 : f32
    %20 = vector.broadcast %cst_13 : f32 to vector<256x8xf32>
    %21 = arith.maximumf %19, %20 : vector<256x8xf32>
    %22 = math.absf %19 : vector<256x8xf32>
    %cst_14 = arith.constant 0.000000e+00 : f32
    %23 = vector.broadcast %cst_14 : f32 to vector<256x8xf32>
    %24 = arith.subf %23, %22 : vector<256x8xf32>
    %25 = math.exp %24 : vector<256x8xf32>
    %cst_15 = arith.constant 1.000000e+00 : f32
    %26 = vector.broadcast %cst_15 : f32 to vector<256x8xf32>
    %27 = arith.addf %26, %25 : vector<256x8xf32>
    %28 = math.log %27 : vector<256x8xf32>
    %29 = arith.addf %21, %28 : vector<256x8xf32>
    %cst_16 = arith.constant 0.693147182 : f32
    %30 = vector.broadcast %cst_16 : f32 to vector<256x8xf32>
    %31 = arith.subf %29, %30 : vector<256x8xf32>
    %32 = tpu.concatenate %31, %5 in 1 : vector<256x8xf32>, vector<256x4xf32> -> vector<256x12xf32>
    %33 = arith.truncf %32 : vector<256x12xf32> to vector<256x12xbf16>
    %c0_17 = arith.constant 0 : index
    %c0_18 = arith.constant 0 : index
    %34 = vector.load %arg9[%c0_17, %c0_18] : memref<12x112xbf16, #tpu.memory_space<vmem>>, vector<12x112xbf16>
    %cst_19 = arith.constant dense<0.000000e+00> : vector<256x112xf32>
    %35 = tpu.matmul %33, %34, %cst_19 {dimension_numbers = #tpu.dot_dimension_numbers<[1], [0], [0], [1], [0, 0, 1, 1], [], []>} : vector<256x12xbf16>, vector<12x112xbf16>, vector<256x112xf32> -> vector<256x112xf32>
    %36 = vector.extract_strided_slice %35 {offsets = [0, 0], sizes = [256, 64], strides = [1, 1]} : vector<256x112xf32> to vector<256x64xf32>
    %37 = vector.extract_strided_slice %35 {offsets = [0, 64], sizes = [256, 48], strides = [1, 1]} : vector<256x112xf32> to vector<256x48xf32>
    %38 = vector.extract_strided_slice %17 {offsets = [0, 0], sizes = [256, 8], strides = [1, 1]} : vector<256x48xf32> to vector<256x8xf32>
    %39 = vector.extract_strided_slice %17 {offsets = [0, 24], sizes = [256, 24], strides = [1, 1]} : vector<256x48xf32> to vector<256x24xf32>
    %40 = vector.extract_strided_slice %5 {offsets = [0, 0], sizes = [256, 1], strides = [1, 1]} : vector<256x4xf32> to vector<256x1xf32>
    %41 = vector.extract_strided_slice %36 {offsets = [0, 0], sizes = [256, 8], strides = [1, 1]} : vector<256x64xf32> to vector<256x8xf32>
    %42 = arith.mulf %41, %38 : vector<256x8xf32>
    %43 = vector.broadcast %40 : vector<256x1xf32> to vector<256x8xf32>
    %44 = arith.mulf %42, %43 : vector<256x8xf32>
    %45 = vector.extract_strided_slice %37 {offsets = [0, 0], sizes = [256, 24], strides = [1, 1]} : vector<256x48xf32> to vector<256x24xf32>
    %46 = arith.mulf %39, %45 : vector<256x24xf32>
    %47 = vector.extract_strided_slice %36 {offsets = [0, 8], sizes = [256, 8], strides = [1, 1]} : vector<256x64xf32> to vector<256x8xf32>
    %48 = vector.extract_strided_slice %46 {offsets = [0, 0], sizes = [256, 8], strides = [1, 1]} : vector<256x24xf32> to vector<256x8xf32>
    %49 = vector.extract_strided_slice %46 {offsets = [0, 8], sizes = [256, 8], strides = [1, 1]} : vector<256x24xf32> to vector<256x8xf32>
    %50 = arith.addf %48, %49 : vector<256x8xf32>
    %51 = vector.extract_strided_slice %46 {offsets = [0, 16], sizes = [256, 8], strides = [1, 1]} : vector<256x24xf32> to vector<256x8xf32>
    %52 = arith.addf %50, %51 : vector<256x8xf32>
    %53 = arith.mulf %47, %52 : vector<256x8xf32>
    %54 = vector.extract_strided_slice %36 {offsets = [0, 16], sizes = [256, 48], strides = [1, 1]} : vector<256x64xf32> to vector<256x48xf32>
    %55 = arith.mulf %54, %17 : vector<256x48xf32>
    %56 = arith.mulf %55, %37 : vector<256x48xf32>
    %57 = tpu.concatenate %44, %53, %56 in 1 : vector<256x8xf32>, vector<256x8xf32>, vector<256x48xf32> -> vector<256x64xf32>
    %58 = arith.truncf %57 : vector<256x64xf32> to vector<256x64xbf16>
    %c0_20 = arith.constant 0 : index
    %c0_21 = arith.constant 0 : index
    %59 = vector.load %arg4[%c0_20, %c0_21] : memref<1x256xi32, #tpu.memory_space<vmem>>, vector<1x256xi32>
    %60 = tpu.iota {dimensions = array<i32: 0>} : vector<64x256xi32>
    %61 = vector.broadcast %59 : vector<1x256xi32> to vector<64x256xi32>
    %62 = arith.cmpi eq, %60, %61 : vector<64x256xi32>
    %63 = arith.extui %62 : vector<64x256xi1> to vector<64x256xi32>
    %64 = arith.sitofp %63 : vector<64x256xi32> to vector<64x256xf32>
    %65 = arith.truncf %64 : vector<64x256xf32> to vector<64x256xbf16>
    %cst_22 = arith.constant dense<0.000000e+00> : vector<64x64xf32>
    %66 = tpu.matmul %65, %58, %cst_22 {dimension_numbers = #tpu.dot_dimension_numbers<[1], [0], [0], [1], [0, 0, 1, 1], [], []>} : vector<64x256xbf16>, vector<256x64xbf16>, vector<64x64xf32> -> vector<64x64xf32>
    %67 = arith.truncf %66 : vector<64x64xf32> to vector<64x64xbf16>
    %68 = vector.extract_strided_slice %3 {offsets = [0, 0], sizes = [64, 1], strides = [1, 1]} : vector<64x4xbf16> to vector<64x1xbf16>
    %69 = vector.broadcast %68 : vector<64x1xbf16> to vector<64x32xbf16>
    %70 = arith.mulf %1, %69 : vector<64x32xbf16>
    %71 = vector.extract_strided_slice %3 {offsets = [0, 1], sizes = [64, 1], strides = [1, 1]} : vector<64x4xbf16> to vector<64x1xbf16>
    %72 = vector.broadcast %71 : vector<64x1xbf16> to vector<64x32xbf16>
    %73 = arith.mulf %1, %72 : vector<64x32xbf16>
    %74 = vector.extract_strided_slice %3 {offsets = [0, 2], sizes = [64, 1], strides = [1, 1]} : vector<64x4xbf16> to vector<64x1xbf16>
    %75 = vector.broadcast %74 : vector<64x1xbf16> to vector<64x32xbf16>
    %76 = arith.mulf %1, %75 : vector<64x32xbf16>
    %77 = vector.extract_strided_slice %3 {offsets = [0, 3], sizes = [64, 1], strides = [1, 1]} : vector<64x4xbf16> to vector<64x1xbf16>
    %78 = vector.broadcast %77 : vector<64x1xbf16> to vector<64x32xbf16>
    %79 = arith.mulf %1, %78 : vector<64x32xbf16>
    %80 = tpu.concatenate %70, %73, %76, %79 in 1 : vector<64x32xbf16>, vector<64x32xbf16>, vector<64x32xbf16>, vector<64x32xbf16> -> vector<64x128xbf16>
    %c0_23 = arith.constant 0 : index
    %c0_24 = arith.constant 0 : index
    %81 = vector.load %arg7[%c0_23, %c0_24] : memref<128x40xbf16, #tpu.memory_space<vmem>>, vector<128x40xbf16>
    %cst_25 = arith.constant dense<0.000000e+00> : vector<64x40xf32>
    %82 = tpu.matmul %80, %81, %cst_25 {dimension_numbers = #tpu.dot_dimension_numbers<[1], [0], [0], [1], [0, 0, 1, 1], [], []>} : vector<64x128xbf16>, vector<128x40xbf16>, vector<64x40xf32> -> vector<64x40xf32>
    %c0_26 = arith.constant 0 : index
    %c0_27 = arith.constant 0 : index
    %83 = vector.load %arg10[%c0_26, %c0_27] : memref<64x40xbf16, #tpu.memory_space<vmem>>, vector<64x40xbf16>
    %cst_28 = arith.constant dense<0.000000e+00> : vector<64x40xf32>
    %84 = tpu.matmul %67, %83, %cst_28 {dimension_numbers = #tpu.dot_dimension_numbers<[1], [0], [0], [1], [0, 0, 1, 1], [], []>} : vector<64x64xbf16>, vector<64x40xbf16>, vector<64x40xf32> -> vector<64x40xf32>
    %85 = arith.addf %84, %82 : vector<64x40xf32>
    %86 = vector.extract_strided_slice %85 {offsets = [0, 0], sizes = [64, 16], strides = [1, 1]} : vector<64x40xf32> to vector<64x16xf32>
    %cst_29 = arith.constant 0.000000e+00 : f32
    %87 = vector.broadcast %cst_29 : f32 to vector<64x16xf32>
    %88 = arith.maximumf %86, %87 : vector<64x16xf32>
    %89 = math.absf %86 : vector<64x16xf32>
    %cst_30 = arith.constant 0.000000e+00 : f32
    %90 = vector.broadcast %cst_30 : f32 to vector<64x16xf32>
    %91 = arith.subf %90, %89 : vector<64x16xf32>
    %92 = math.exp %91 : vector<64x16xf32>
    %cst_31 = arith.constant 1.000000e+00 : f32
    %93 = vector.broadcast %cst_31 : f32 to vector<64x16xf32>
    %94 = arith.addf %93, %92 : vector<64x16xf32>
    %95 = math.log %94 : vector<64x16xf32>
    %96 = arith.addf %88, %95 : vector<64x16xf32>
    %cst_32 = arith.constant 0.693147182 : f32
    %97 = vector.broadcast %cst_32 : f32 to vector<64x16xf32>
    %98 = arith.subf %96, %97 : vector<64x16xf32>
    %99 = vector.extract_strided_slice %98 {offsets = [0, 8], sizes = [64, 8], strides = [1, 1]} : vector<64x16xf32> to vector<64x8xf32>
    %c0_33 = arith.constant 0 : index
    %c0_34 = arith.constant 0 : index
    %100 = vector.load %arg11[%c0_33, %c0_34] : memref<8x24xf32, #tpu.memory_space<vmem>>, vector<8x24xf32>
    %cst_35 = arith.constant dense<0.000000e+00> : vector<64x24xf32>
    %101 = tpu.matmul %99, %100, %cst_35 {dimension_numbers = #tpu.dot_dimension_numbers<[1], [0], [0], [1], [0, 0, 1, 1], [], []>} : vector<64x8xf32>, vector<8x24xf32>, vector<64x24xf32> -> vector<64x24xf32>
    %102 = vector.extract_strided_slice %0 {offsets = [0, 0], sizes = [64, 8], strides = [1, 1]} : vector<64x32xf32> to vector<64x8xf32>
    %103 = vector.extract_strided_slice %98 {offsets = [0, 0], sizes = [64, 8], strides = [1, 1]} : vector<64x16xf32> to vector<64x8xf32>
    %104 = arith.addf %102, %103 : vector<64x8xf32>
    %c0_36 = arith.constant 0 : index
    %c0_37 = arith.constant 0 : index
    %105 = vector.load %arg12[%c0_36, %c0_37] : memref<64x32xf32, #tpu.memory_space<vmem>>, vector<64x8xf32>
    tpu.vector_store %arg12[%c0_36, %c0_37], %104 {strides = array<i32>} : memref<64x32xf32, #tpu.memory_space<vmem>>, vector<64x8xf32>,
    %106 = vector.extract_strided_slice %0 {offsets = [0, 8], sizes = [64, 24], strides = [1, 1]} : vector<64x32xf32> to vector<64x24xf32>
    %107 = vector.extract_strided_slice %85 {offsets = [0, 16], sizes = [64, 24], strides = [1, 1]} : vector<64x40xf32> to vector<64x24xf32>
    %108 = arith.mulf %107, %101 : vector<64x24xf32>
    %109 = arith.addf %106, %108 : vector<64x24xf32>
    %c0_38 = arith.constant 0 : index
    %c8 = arith.constant 8 : index
    %110 = vector.load %arg12[%c0_38, %c8] : memref<64x32xf32, #tpu.memory_space<vmem>>, vector<64x24xf32>
    tpu.vector_store %arg12[%c0_38, %c8], %109 {strides = array<i32>} : memref<64x32xf32, #tpu.memory_space<vmem>>, vector<64x24xf32>,
    return
  }
  func.func @transform_0(%arg0: i32) -> (i32, i32) {
    %c0_i32 = arith.constant 0 : i32
    %c0_i32_0 = arith.constant 0 : i32
    return %arg0, %c0_i32 : i32, i32
  }
  func.func @transform_1(%arg0: i32) -> (i32, i32) {
    %c0_i32 = arith.constant 0 : i32
    %c0_i32_0 = arith.constant 0 : i32
    return %arg0, %c0_i32 : i32, i32
  }
  func.func @transform_2(%arg0: i32) -> (i32, i32) {
    %c0_i32 = arith.constant 0 : i32
    %c0_i32_0 = arith.constant 0 : i32
    return %arg0, %c0_i32 : i32, i32
  }
  func.func @transform_3(%arg0: i32) -> (i32, i32) {
    %c0_i32 = arith.constant 0 : i32
    %c0_i32_0 = arith.constant 0 : i32
    return %c0_i32, %arg0 : i32, i32
  }
  func.func @transform_4(%arg0: i32) -> (i32, i32) {
    %c0_i32 = arith.constant 0 : i32
    %c0_i32_0 = arith.constant 0 : i32
    return %arg0, %c0_i32 : i32, i32
  }
  func.func @transform_5(%arg0: i32) -> (i32, i32) {
    %c0_i32 = arith.constant 0 : i32
    %c0_i32_0 = arith.constant 0 : i32
    %c0_i32_1 = arith.constant 0 : i32
    return %c0_i32, %c0_i32_0 : i32, i32
  }
  func.func @transform_6(%arg0: i32) -> (i32, i32) {
    %c0_i32 = arith.constant 0 : i32
    %c0_i32_0 = arith.constant 0 : i32
    %c0_i32_1 = arith.constant 0 : i32
    return %c0_i32, %c0_i32_0 : i32, i32
  }
  func.func @transform_7(%arg0: i32) -> (i32, i32) {
    %c0_i32 = arith.constant 0 : i32
    %c0_i32_0 = arith.constant 0 : i32
    %c0_i32_1 = arith.constant 0 : i32
    return %c0_i32, %c0_i32_0 : i32, i32
  }
  func.func @transform_8(%arg0: i32) -> (i32, i32) {
    %c0_i32 = arith.constant 0 : i32
    %c0_i32_0 = arith.constant 0 : i32
    %c0_i32_1 = arith.constant 0 : i32
    return %c0_i32, %c0_i32_0 : i32, i32
  }
  func.func @transform_9(%arg0: i32) -> (i32, i32) {
    %c0_i32 = arith.constant 0 : i32
    %c0_i32_0 = arith.constant 0 : i32
    %c0_i32_1 = arith.constant 0 : i32
    return %c0_i32, %c0_i32_0 : i32, i32
  }
  func.func @transform_10(%arg0: i32) -> (i32, i32) {
    %c0_i32 = arith.constant 0 : i32
    %c0_i32_0 = arith.constant 0 : i32
    %c0_i32_1 = arith.constant 0 : i32
    return %c0_i32, %c0_i32_0 : i32, i32
  }
  func.func @transform_11(%arg0: i32) -> (i32, i32) {
    %c0_i32 = arith.constant 0 : i32
    %c0_i32_0 = arith.constant 0 : i32
    return %arg0, %c0_i32 : i32, i32
  }
}

</mosaic_0001>

<llo_original>
// kernel: tpu_custom_call.1
$region0: #{tpu_custom_call.1}
  #allocation0 [shape = 'u32[]', space=smem, size = 0x4, offset = 0x4, fixed_abs, tag = 'smem constant byte address 0x4 - core index']
  #allocation1 [shape = 'u32[144,128]{1,0:T(1,128)}', space=vmem, size = 0x12000, scoped, tag = 'internal scratch']
  %s0 = inlined_call_operand.vmem [shape: f32[256,32], index: 0, kind: input, shape index: {}]
  %s1 = inlined_call_operand.vmem [shape: f32[256,4], index: 1, kind: input, shape index: {}]
  %s2 = inlined_call_operand.vmem [shape: s32[1024,1], index: 2, kind: input, shape index: {}]
  %s3 = inlined_call_operand.vmem [shape: s32[1,1024], index: 3, kind: input, shape index: {}]
  %s4 = inlined_call_operand.vmem [shape: f32[1024,12], index: 4, kind: input, shape index: {}]
  %s5 = inlined_call_operand.vmem [shape: bf16[32,48], index: 5, kind: input, shape index: {}]
  %s6 = inlined_call_operand.vmem [shape: bf16[128,40], index: 6, kind: input, shape index: {}]
  %s7 = inlined_call_operand.vmem [shape: f32[8,8], index: 7, kind: input, shape index: {}]
  %s8 = inlined_call_operand.vmem [shape: bf16[12,112], index: 8, kind: input, shape index: {}]
  %s9 = inlined_call_operand.vmem [shape: bf16[64,40], index: 9, kind: input, shape index: {}]
  %s10 = inlined_call_operand.vmem [shape: f32[8,24], index: 10, kind: input, shape index: {}]
  %s11 = inlined_call_operand.vmem [shape: f32[256,32], index: 11, kind: output, shape index: {}]
  %s12 = sld [smem:[#allocation0]]
  $region77: #{tpu_custom_call.1} parent=0
    _
  %s14 = ssub.s32 1, %s12
  %s15 = scalar_select 0, %s14, %s12
  loop: start=0, step=1, limit=6
  $region2: #{tpu_custom_call.1} parent=0 // loop_pre_header
    _
  $region3: #{tpu_custom_call.1} parent=0 // loop_header
    %s17 = sphi 0, %s21
    %p18 = scmp.ge.s32.totalorder %s17, 6
    %s27 = sphi 0, %s29
    %s30 = sphi 0, %s27
    %s31 = sphi 0, %s30
    %s47 = sphi 0, %s31
    %s53 = sphi 0, %s55
    %s56 = sphi 0, %s53
    %s57 = sphi 0, %s56
    %s73 = sphi 0, %s57
    %s79 = sphi 0, %s81
    %s82 = sphi 0, %s79
    %s83 = sphi 0, %s82
    %s99 = sphi 0, %s83
    %s105 = sphi 0, %s107
    %s108 = sphi 0, %s105
    %s109 = sphi 0, %s108
    %s125 = sphi 0, %s109
    %s131 = sphi 0, %s133
    %s134 = sphi 0, %s131
    %s135 = sphi 0, %s134
    %s151 = sphi 0, %s135
    %s155 = sphi 0, %s155
    %s157 = sphi 0, %s155
    %s158 = sphi 0, %s157
    %s172 = sphi 0, %s158
    %s176 = sphi 0, %s176
    %s178 = sphi 0, %s176
    %s179 = sphi 0, %s178
    %s193 = sphi 0, %s179
    %s197 = sphi 0, %s197
    %s199 = sphi 0, %s197
    %s200 = sphi 0, %s199
    %s214 = sphi 0, %s200
    %s218 = sphi 0, %s218
    %s220 = sphi 0, %s218
    %s221 = sphi 0, %s220
    %s235 = sphi 0, %s221
    %s239 = sphi 0, %s239
    %s241 = sphi 0, %s239
    %s242 = sphi 0, %s241
    %s256 = sphi 0, %s242
    %s260 = sphi 0, %s260
    %s262 = sphi 0, %s260
    %s263 = sphi 0, %s262
    %s277 = sphi 0, %s263
    %s283 = sphi 0, %s285
    %s286 = sphi 0, %s283
    %s287 = sphi 0, %s286
    %s303 = sphi 0, %s287
  $region4: #{tpu_custom_call.1} parent=0 // loop_header_branch
    %20 = sbr.rel (%p18) target = $region8
  $region5: #{tpu_custom_call.1} parent=0 // loop_body
    %s22 = ssub.s32 %s17, 1
    %s23 = ssub.s32 %s17, 2
    %s24 = sadd.s32 %s17, 1
    %s25 = ssub.s32 %s17, %s24
    %p26 = scmp.eq.s32.totalorder %s25, 0
    %s28 = sadd.s32 %s27, 1
    %s29 = scalar_select %p26, %s27, %s28
    %p32 = pneg %p26
    %p33 = scmp.eq.s32.totalorder %s17, 3
    %p34 = por %p32, %p33
    %p35 = scmp.ne.s32.totalorder %s27, %s30
    %p36 = scmp.eq.s32.totalorder %s17, 0
    %p37 = por %p35, %p36
    %p38 = scmp.ne.s32.totalorder %s27, %s30
    %p39 = scmp.eq.s32.totalorder %s22, 3
    %p40 = por %p38, %p39
    %p41 = scmp.ne.s32.totalorder %s30, %s31
    %p42 = scmp.eq.s32.totalorder %s22, 0
    %p43 = por %p41, %p42
    %p44 = scmp.ne.s32.totalorder %s30, %s31
    %p45 = scmp.eq.s32.totalorder %s23, 3
    %p46 = por %p44, %p45
    %p48 = scmp.ne.s32.totalorder %s31, %s47
    %p49 = scmp.eq.s32.totalorder %s23, 0
    %p50 = por %p48, %p49
    %s51 = ssub.s32 %s17, %s24
    %p52 = scmp.eq.s32.totalorder %s51, 0
    %s54 = sadd.s32 %s53, 1
    %s55 = scalar_select %p52, %s53, %s54
    %p58 = pneg %p52
    %p59 = scmp.eq.s32.totalorder %s17, 3
    %p60 = por %p58, %p59
    %p61 = scmp.ne.s32.totalorder %s53, %s56
    %p62 = scmp.eq.s32.totalorder %s17, 0
    %p63 = por %p61, %p62
    %p64 = scmp.ne.s32.totalorder %s53, %s56
    %p65 = scmp.eq.s32.totalorder %s22, 3
    %p66 = por %p64, %p65
    %p67 = scmp.ne.s32.totalorder %s56, %s57
    %p68 = scmp.eq.s32.totalorder %s22, 0
    %p69 = por %p67, %p68
    %p70 = scmp.ne.s32.totalorder %s56, %s57
    %p71 = scmp.eq.s32.totalorder %s23, 3
    %p72 = por %p70, %p71
    %p74 = scmp.ne.s32.totalorder %s57, %s73
    %p75 = scmp.eq.s32.totalorder %s23, 0
    %p76 = por %p74, %p75
    %s77 = ssub.s32 %s17, %s24
    %p78 = scmp.eq.s32.totalorder %s77, 0
    %s80 = sadd.s32 %s79, 1
    %s81 = scalar_select %p78, %s79, %s80
    %p84 = pneg %p78
    %p85 = scmp.eq.s32.totalorder %s17, 3
    %p86 = por %p84, %p85
    %p87 = scmp.ne.s32.totalorder %s79, %s82
    %p88 = scmp.eq.s32.totalorder %s17, 0
    %p89 = por %p87, %p88
    %p90 = scmp.ne.s32.totalorder %s79, %s82
    %p91 = scmp.eq.s32.totalorder %s22, 3
    %p92 = por %p90, %p91
    %p93 = scmp.ne.s32.totalorder %s82, %s83
    %p94 = scmp.eq.s32.totalorder %s22, 0
    %p95 = por %p93, %p94
    %p96 = scmp.ne.s32.totalorder %s82, %s83
    %p97 = scmp.eq.s32.totalorder %s23, 3
    %p98 = por %p96, %p97
    %p100 = scmp.ne.s32.totalorder %s83, %s99
    %p101 = scmp.eq.s32.totalorder %s23, 0
    %p102 = por %p100, %p101
    %s103 = ssub.s32 %s17, %s24
    %p104 = scmp.eq.s32.totalorder %s103, 0
    %s106 = sadd.s32 %s105, 1
    %s107 = scalar_select %p104, %s105, %s106
    %p110 = pneg %p104
    %p111 = scmp.eq.s32.totalorder %s17, 3
    %p112 = por %p110, %p111
    %p113 = scmp.ne.s32.totalorder %s105, %s108
    %p114 = scmp.eq.s32.totalorder %s17, 0
    %p115 = por %p113, %p114
    %p116 = scmp.ne.s32.totalorder %s105, %s108
    %p117 = scmp.eq.s32.totalorder %s22, 3
    %p118 = por %p116, %p117
    %p119 = scmp.ne.s32.totalorder %s108, %s109
    %p120 = scmp.eq.s32.totalorder %s22, 0
    %p121 = por %p119, %p120
    %p122 = scmp.ne.s32.totalorder %s108, %s109
    %p123 = scmp.eq.s32.totalorder %s23, 3
    %p124 = por %p122, %p123
    %p126 = scmp.ne.s32.totalorder %s109, %s125
    %p127 = scmp.eq.s32.totalorder %s23, 0
    %p128 = por %p126, %p127
    %s129 = ssub.s32 %s17, %s24
    %p130 = scmp.eq.s32.totalorder %s129, 0
    %s132 = sadd.s32 %s131, 1
    %s133 = scalar_select %p130, %s131, %s132
    %p136 = pneg %p130
    %p137 = scmp.eq.s32.totalorder %s17, 3
    %p138 = por %p136, %p137
    %p139 = scmp.ne.s32.totalorder %s131, %s134
    %p140 = scmp.eq.s32.totalorder %s17, 0
    %p141 = por %p139, %p140
    %p142 = scmp.ne.s32.totalorder %s131, %s134
    %p143 = scmp.eq.s32.totalorder %s22, 3
    %p144 = por %p142, %p143
    %p145 = scmp.ne.s32.totalorder %s134, %s135
    %p146 = scmp.eq.s32.totalorder %s22, 0
    %p147 = por %p145, %p146
    %p148 = scmp.ne.s32.totalorder %s134, %s135
    %p149 = scmp.eq.s32.totalorder %s23, 3
    %p150 = por %p148, %p149
    %p152 = scmp.ne.s32.totalorder %s135, %s151
    %p153 = scmp.eq.s32.totalorder %s23, 0
    %p154 = por %p152, %p153
    %s156 = sadd.s32 %s155, 1
    %p159 = scmp.eq.s32.totalorder %s17, 3
    %p160 = scmp.ne.s32.totalorder %s155, %s157
    %p161 = scmp.eq.s32.totalorder %s17, 0
    %p162 = por %p160, %p161
    %p163 = scmp.ne.s32.totalorder %s155, %s157
    %p164 = scmp.eq.s32.totalorder %s22, 3
    %p165 = por %p163, %p164
    %p166 = scmp.ne.s32.totalorder %s157, %s158
    %p167 = scmp.eq.s32.totalorder %s22, 0
    %p168 = por %p166, %p167
    %p169 = scmp.ne.s32.totalorder %s157, %s158
    %p170 = scmp.eq.s32.totalorder %s23, 3
    %p171 = por %p169, %p170
    %p173 = scmp.ne.s32.totalorder %s158, %s172
    %p174 = scmp.eq.s32.totalorder %s23, 0
    %p175 = por %p173, %p174
    %s177 = sadd.s32 %s176, 1
    %p180 = scmp.eq.s32.totalorder %s17, 3
    %p181 = scmp.ne.s32.totalorder %s176, %s178
    %p182 = scmp.eq.s32.totalorder %s17, 0
    %p183 = por %p181, %p182
    %p184 = scmp.ne.s32.totalorder %s176, %s178
    %p185 = scmp.eq.s32.totalorder %s22, 3
    %p186 = por %p184, %p185
    %p187 = scmp.ne.s32.totalorder %s178, %s179
    %p188 = scmp.eq.s32.totalorder %s22, 0
    %p189 = por %p187, %p188
    %p190 = scmp.ne.s32.totalorder %s178, %s179
    %p191 = scmp.eq.s32.totalorder %s23, 3
    %p192 = por %p190, %p191
    %p194 = scmp.ne.s32.totalorder %s179, %s193
    %p195 = scmp.eq.s32.totalorder %s23, 0
    %p196 = por %p194, %p195
    %s198 = sadd.s32 %s197, 1
    %p201 = scmp.eq.s32.totalorder %s17, 3
    %p202 = scmp.ne.s32.totalorder %s197, %s199
    %p203 = scmp.eq.s32.totalorder %s17, 0
    %p204 = por %p202, %p203
    %p205 = scmp.ne.s32.totalorder %s197, %s199
    %p206 = scmp.eq.s32.totalorder %s22, 3
    %p207 = por %p205, %p206
    %p208 = scmp.ne.s32.totalorder %s199, %s200
    %p209 = scmp.eq.s32.totalorder %s22, 0
    %p210 = por %p208, %p209
    %p211 = scmp.ne.s32.totalorder %s199, %s200
    %p212 = scmp.eq.s32.totalorder %s23, 3
    %p213 = por %p211, %p212
    %p215 = scmp.ne.s32.totalorder %s200, %s214
    %p216 = scmp.eq.s32.totalorder %s23, 0
    %p217 = por %p215, %p216
    %s219 = sadd.s32 %s218, 1
    %p222 = scmp.eq.s32.totalorder %s17, 3
    %p223 = scmp.ne.s32.totalorder %s218, %s220
    %p224 = scmp.eq.s32.totalorder %s17, 0
    %p225 = por %p223, %p224
    %p226 = scmp.ne.s32.totalorder %s218, %s220
    %p227 = scmp.eq.s32.totalorder %s22, 3
    %p228 = por %p226, %p227
    %p229 = scmp.ne.s32.totalorder %s220, %s221
    %p230 = scmp.eq.s32.totalorder %s22, 0
    %p231 = por %p229, %p230
    %p232 = scmp.ne.s32.totalorder %s220, %s221
    %p233 = scmp.eq.s32.totalorder %s23, 3
    %p234 = por %p232, %p233
    %p236 = scmp.ne.s32.totalorder %s221, %s235
    %p237 = scmp.eq.s32.totalorder %s23, 0
    %p238 = por %p236, %p237
    %s240 = sadd.s32 %s239, 1
    %p243 = scmp.eq.s32.totalorder %s17, 3
    %p244 = scmp.ne.s32.totalorder %s239, %s241
    %p245 = scmp.eq.s32.totalorder %s17, 0
    %p246 = por %p244, %p245
    %p247 = scmp.ne.s32.totalorder %s239, %s241
    %p248 = scmp.eq.s32.totalorder %s22, 3
    %p249 = por %p247, %p248
    %p250 = scmp.ne.s32.totalorder %s241, %s242
    %p251 = scmp.eq.s32.totalorder %s22, 0
    %p252 = por %p250, %p251
    %p253 = scmp.ne.s32.totalorder %s241, %s242
    %p254 = scmp.eq.s32.totalorder %s23, 3
    %p255 = por %p253, %p254
    %p257 = scmp.ne.s32.totalorder %s242, %s256
    %p258 = scmp.eq.s32.totalorder %s23, 0
    %p259 = por %p257, %p258
    %s261 = sadd.s32 %s260, 1
    %p264 = scmp.eq.s32.totalorder %s17, 3
    %p265 = scmp.ne.s32.totalorder %s260, %s262
    %p266 = scmp.eq.s32.totalorder %s17, 0
    %p267 = por %p265, %p266
    %p268 = scmp.ne.s32.totalorder %s260, %s262
    %p269 = scmp.eq.s32.totalorder %s22, 3
    %p270 = por %p268, %p269
    %p271 = scmp.ne.s32.totalorder %s262, %s263
    %p272 = scmp.eq.s32.totalorder %s22, 0
    %p273 = por %p271, %p272
    %p274 = scmp.ne.s32.totalorder %s262, %s263
    %p275 = scmp.eq.s32.totalorder %s23, 3
    %p276 = por %p274, %p275
    %p278 = scmp.ne.s32.totalorder %s263, %s277
    %p279 = scmp.eq.s32.totalorder %s23, 0
    %p280 = por %p278, %p279
    %s281 = ssub.s32 %s17, %s24
    %p282 = scmp.eq.s32.totalorder %s281, 0
    %s284 = sadd.s32 %s283, 1
    %s285 = scalar_select %p282, %s283, %s284
    %p288 = pneg %p282
    %p289 = scmp.eq.s32.totalorder %s17, 3
    %p290 = por %p288, %p289
    %p291 = scmp.ne.s32.totalorder %s283, %s286
    %p292 = scmp.eq.s32.totalorder %s17, 0
    %p293 = por %p291, %p292
    %p294 = scmp.ne.s32.totalorder %s283, %s286
    %p295 = scmp.eq.s32.totalorder %s22, 3
    %p296 = por %p294, %p295
    %p297 = scmp.ne.s32.totalorder %s286, %s287
    %p298 = scmp.eq.s32.totalorder %s22, 0
    %p299 = por %p297, %p298
    %p300 = scmp.ne.s32.totalorder %s286, %s287
    %p301 = scmp.eq.s32.totalorder %s23, 3
    %p302 = por %p300, %p301
    %p304 = scmp.ne.s32.totalorder %s287, %s303
    %p305 = scmp.eq.s32.totalorder %s23, 0
    %p306 = por %p304, %p305
    %p307 = scmp.le.s32.totalorder 1, %s17
    %p308 = scmp.lt.s32.totalorder %s17, 5
    %p309 = pnand %p307, %p308
    %p310 = pneg %p309
    // Predicated region
    $region9: #{tpu_custom_call.1} parent=5 // pred_check
      _
    $region10: #{tpu_custom_call.1} parent=5 // pred_check_branch
      %312 = sbr.rel (%p309) target = $region12
    $region11: #{tpu_custom_call.1} parent=5 // pred_region
      %s313 = ssub.s32 %s17, 1
      // Predicated region
      $region13: #{tpu_custom_call.1} parent=11 // pred_check
        %p314 = pneg %p168
      $region14: #{tpu_custom_call.1} parent=11 // pred_check_branch
        %316 = sbr.rel (%p314) target = $region16
      $region15: #{tpu_custom_call.1} parent=11 // pred_region
        _
      $region16: #{tpu_custom_call.1} parent=11 // pred_fallthru
        _
      // Predicated region
      $region17: #{tpu_custom_call.1} parent=11 // pred_check
        %p317 = pneg %p189
      $region18: #{tpu_custom_call.1} parent=11 // pred_check_branch
        %319 = sbr.rel (%p317) target = $region20
      $region19: #{tpu_custom_call.1} parent=11 // pred_region
        _
      $region20: #{tpu_custom_call.1} parent=11 // pred_fallthru
        _
      // Predicated region
      $region21: #{tpu_custom_call.1} parent=11 // pred_check
        %p320 = pneg %p210
      $region22: #{tpu_custom_call.1} parent=11 // pred_check_branch
        %322 = sbr.rel (%p320) target = $region24
      $region23: #{tpu_custom_call.1} parent=11 // pred_region
        _
      $region24: #{tpu_custom_call.1} parent=11 // pred_fallthru
        _
      // Predicated region
      $region25: #{tpu_custom_call.1} parent=11 // pred_check
        %p323 = pneg %p231
      $region26: #{tpu_custom_call.1} parent=11 // pred_check_branch
        %325 = sbr.rel (%p323) target = $region28
      $region27: #{tpu_custom_call.1} parent=11 // pred_region
        _
      $region28: #{tpu_custom_call.1} parent=11 // pred_fallthru
        _
      // Predicated region
      $region29: #{tpu_custom_call.1} parent=11 // pred_check
        %p326 = pneg %p252
      $region30: #{tpu_custom_call.1} parent=11 // pred_check_branch
        %328 = sbr.rel (%p326) target = $region32
      $region31: #{tpu_custom_call.1} parent=11 // pred_region
        _
      $region32: #{tpu_custom_call.1} parent=11 // pred_fallthru
        _
      // Predicated region
      $region33: #{tpu_custom_call.1} parent=11 // pred_check
        %p329 = pneg %p273
      $region34: #{tpu_custom_call.1} parent=11 // pred_check_branch
        %331 = sbr.rel (%p329) target = $region36
      $region35: #{tpu_custom_call.1} parent=11 // pred_region
        _
      $region36: #{tpu_custom_call.1} parent=11 // pred_fallthru
        _
    $region12: #{tpu_custom_call.1} parent=5 // pred_fallthru
      _
    %p332 = scmp.lt.s32.totalorder %s17, 4
    // Predicated region
    $region37: #{tpu_custom_call.1} parent=5 // pred_check
      %p333 = pneg %p332
    $region38: #{tpu_custom_call.1} parent=5 // pred_check_branch
      %335 = sbr.rel (%p333) target = $region40
    $region39: #{tpu_custom_call.1} parent=5 // pred_region
      // Predicated region
      $region41: #{tpu_custom_call.1} parent=39 // pred_check
        %p336 = pneg %p37
      $region42: #{tpu_custom_call.1} parent=39 // pred_check_branch
        %338 = sbr.rel (%p336) target = $region44
      $region43: #{tpu_custom_call.1} parent=39 // pred_region
        %s339 = smul.u32 8, %s17
        %p340 = scmp.lt.s32.totalorder %s339, 31
        %s341 = scalar_select %p340, %s339, 31
        %s342 = smul.addr %s341, 8
        %s343 = scalar_lea.vmem %s0, %s342
        %s344 = smul.u32 8, %s17
      $region44: #{tpu_custom_call.1} parent=39 // pred_fallthru
        _
      // Predicated region
      $region45: #{tpu_custom_call.1} parent=39 // pred_check
        %p345 = pneg %p63
      $region46: #{tpu_custom_call.1} parent=39 // pred_check_branch
        %347 = sbr.rel (%p345) target = $region48
      $region47: #{tpu_custom_call.1} parent=39 // pred_region
        %s348 = smul.u32 8, %s17
        %p349 = scmp.lt.s32.totalorder %s348, 31
        %s350 = scalar_select %p349, %s348, 31
        %s351 = smul.addr %s350, 8
        %s352 = scalar_lea.vmem %s1, %s351
        %s353 = smul.u32 8, %s17
      $region48: #{tpu_custom_call.1} parent=39 // pred_fallthru
        _
      // Predicated region
      $region49: #{tpu_custom_call.1} parent=39 // pred_check
        %p354 = pneg %p89
      $region50: #{tpu_custom_call.1} parent=39 // pred_check_branch
        %356 = sbr.rel (%p354) target = $region52
      $region51: #{tpu_custom_call.1} parent=39 // pred_region
        %s357 = smul.u32 32, %s17
        %p358 = scmp.lt.s32.totalorder %s357, 127
        %s359 = scalar_select %p358, %s357, 127
        %s360 = smul.addr %s359, 8
        %s361 = scalar_lea.vmem %s2, %s360
        %s362 = smul.u32 32, %s17
      $region52: #{tpu_custom_call.1} parent=39 // pred_fallthru
        _
      // Predicated region
      $region53: #{tpu_custom_call.1} parent=39 // pred_check
        %p363 = pneg %p115
      $region54: #{tpu_custom_call.1} parent=39 // pred_check_branch
        %365 = sbr.rel (%p363) target = $region56
      $region55: #{tpu_custom_call.1} parent=39 // pred_region
        %s366 = smul.u32 2, %s17
        %p367 = scmp.lt.s32.totalorder %s366, 7
        %s368 = scalar_select %p367, %s366, 7
        %s369 = scalar_lea.vmem %s3, %s368
        %s370 = smul.u32 2, %s17
      $region56: #{tpu_custom_call.1} parent=39 // pred_fallthru
        _
      // Predicated region
      $region57: #{tpu_custom_call.1} parent=39 // pred_check
        %p371 = pneg %p141
      $region58: #{tpu_custom_call.1} parent=39 // pred_check_branch
        %373 = sbr.rel (%p371) target = $region60
      $region59: #{tpu_custom_call.1} parent=39 // pred_region
        %s374 = smul.u32 32, %s17
        %p375 = scmp.lt.s32.totalorder %s374, 127
        %s376 = scalar_select %p375, %s374, 127
        %s377 = smul.addr %s376, 8
        %s378 = scalar_lea.vmem %s4, %s377
        %s379 = smul.u32 32, %s17
      $region60: #{tpu_custom_call.1} parent=39 // pred_fallthru
        _
    $region40: #{tpu_custom_call.1} parent=5 // pred_fallthru
      _
    %p380 = scmp.le.s32.totalorder 1, %s17
    %p381 = scmp.lt.s32.totalorder %s17, 5
    %p382 = pnand %p380, %p381
    %p383 = pneg %p382
    // Predicated region
    $region61: #{tpu_custom_call.1} parent=5 // pred_check
      _
    $region62: #{tpu_custom_call.1} parent=5 // pred_check_branch
      %385 = sbr.rel (%p382) target = $region64
    $region63: #{tpu_custom_call.1} parent=5 // pred_region
      %s386 = ssub.s32 %s17, 1
      %s387 = smul.u32 8, %s22
      %p388 = scmp.lt.s32.totalorder %s387, 31
      %s389 = scalar_select %p388, %s387, 31
      %s390 = smul.addr %s389, 8
      %s391 = scalar_lea.vmem %s0, %s390
      %p392 = pneg %p43
      %p393 = pneg %p40
      %s394 = smul.u32 8, %s22
      %p395 = scmp.lt.s32.totalorder %s394, 31
      %s396 = scalar_select %p395, %s394, 31
      %s397 = smul.addr %s396, 8
      %s398 = scalar_lea.vmem %s1, %s397
      %p399 = pneg %p69
      %p400 = pneg %p66
      %s401 = smul.u32 32, %s22
      %p402 = scmp.lt.s32.totalorder %s401, 127
      %s403 = scalar_select %p402, %s401, 127
      %s404 = smul.addr %s403, 8
      %s405 = scalar_lea.vmem %s2, %s404
      %p406 = pneg %p95
      %p407 = pneg %p92
      %s408 = smul.u32 2, %s22
      %p409 = scmp.lt.s32.totalorder %s408, 7
      %s410 = scalar_select %p409, %s408, 7
      %s411 = scalar_lea.vmem %s3, %s410
      %p412 = pneg %p121
      %p413 = pneg %p118
      %s414 = smul.u32 32, %s22
      %p415 = scmp.lt.s32.totalorder %s414, 127
      %s416 = scalar_select %p415, %s414, 127
      %s417 = smul.addr %s416, 8
      %s418 = scalar_lea.vmem %s4, %s417
      %p419 = pneg %p147
      %p420 = pneg %p144
      %p421 = pneg %p168
      %p422 = pneg %p165
      %p423 = pneg %p189
      %p424 = pneg %p186
      %p425 = pneg %p210
      %p426 = pneg %p207
      %p427 = pneg %p231
      %p428 = pneg %p228
      %p429 = pneg %p252
      %p430 = pneg %p249
      %p431 = pneg %p273
      %p432 = pneg %p270
      %p433 = pneg %p299
      %p434 = pneg %p296
      %s435 = smul.u32 8, %s22
      %p436 = scmp.lt.s32.totalorder %s435, 31
      %s437 = scalar_select %p436, %s435, 31
      %s438 = smul.addr %s437, 8
      %s439 = scalar_lea.vmem %s11, %s438
      %s440 = smul.u32 8, %s22
      %p441 = scmp.lt.s32.totalorder %s440, 31
      %s442 = scalar_select %p441, %s440, 31
      %s443 = smul.addr %s442, 8
      %s444 = scalar_lea.vmem %s0, %s443
      %s445 = smul.u32 8, %s22
      %s446 = smul.u32 8, %s22
      %p447 = scmp.lt.s32.totalorder %s446, 31
      %s448 = scalar_select %p447, %s446, 31
      %s449 = smul.addr %s448, 8
      %s450 = scalar_lea.vmem %s1, %s449
      %s451 = smul.u32 8, %s22
      %s452 = smul.u32 32, %s22
      %p453 = scmp.lt.s32.totalorder %s452, 127
      %s454 = scalar_select %p453, %s452, 127
      %s455 = smul.addr %s454, 8
      %s456 = scalar_lea.vmem %s2, %s455
      %s457 = smul.u32 32, %s22
      %s458 = smul.u32 2, %s22
      %p459 = scmp.lt.s32.totalorder %s458, 7
      %s460 = scalar_select %p459, %s458, 7
      %s461 = scalar_lea.vmem %s3, %s460
      %s462 = smul.u32 2, %s22
      %s463 = smul.u32 32, %s22
      %p464 = scmp.lt.s32.totalorder %s463, 127
      %s465 = scalar_select %p464, %s463, 127
      %s466 = smul.addr %s465, 8
      %s467 = scalar_lea.vmem %s4, %s466
      %s468 = smul.u32 32, %s22
      %s469 = smul.u32 8, %s22
      %p470 = scmp.lt.s32.totalorder %s469, 31
      %s471 = scalar_select %p470, %s469, 31
      %s472 = smul.addr %s471, 8
      %s473 = scalar_lea.vmem %s11, %s472
      %s474 = smul.u32 8, %s22
      %v476 = vld [vmem:[%s444] sm:$0xff]
      %v477 = vld [vmem:[%s444 + $0x8] sm:$0xff]
      %v478 = vld [vmem:[%s444 + $0x10] sm:$0xff]
      %v479 = vld [vmem:[%s444 + $0x18] sm:$0xff]
      %v480 = vld [vmem:[%s444 + $0x20] sm:$0xff]
      %v481 = vld [vmem:[%s444 + $0x28] sm:$0xff]
      %v482 = vld [vmem:[%s444 + $0x30] sm:$0xff]
      %v483 = vld [vmem:[%s444 + $0x38] sm:$0xff]
      %v484 = vpack.c.bf16 %v477, %v476
      %v485 = vpack.c.bf16 %v479, %v478
      %v486 = vpack.c.bf16 %v481, %v480
      %v487 = vpack.c.bf16 %v483, %v482
      %v488 = vld [vmem:[%s450] sm:$0xff]
      %v489 = vld [vmem:[%s450 + $0x8] sm:$0xff]
      %v490 = vld [vmem:[%s450 + $0x10] sm:$0xff]
      %v491 = vld [vmem:[%s450 + $0x18] sm:$0xff]
      %v492 = vld [vmem:[%s450 + $0x20] sm:$0xff]
      %v493 = vld [vmem:[%s450 + $0x28] sm:$0xff]
      %v494 = vld [vmem:[%s450 + $0x30] sm:$0xff]
      %v495 = vld [vmem:[%s450 + $0x38] sm:$0xff]
      %v496 = vpack.c.bf16 %v489, %v488
      %v497 = vpack.c.bf16 %v491, %v490
      %v498 = vpack.c.bf16 %v493, %v492
      %v499 = vpack.c.bf16 %v495, %v494
      %v500 = vld [vmem:[%s467] sm:$0xff]
      %v501 = vld [vmem:[%s467 + $0x8] sm:$0xff]
      %v502 = vld [vmem:[%s467 + $0x10] sm:$0xff]
      %v503 = vld [vmem:[%s467 + $0x18] sm:$0xff]
      %v504 = vld [vmem:[%s467 + $0x20] sm:$0xff]
      %v505 = vld [vmem:[%s467 + $0x28] sm:$0xff]
      %v506 = vld [vmem:[%s467 + $0x30] sm:$0xff]
      %v507 = vld [vmem:[%s467 + $0x38] sm:$0xff]
      %v508 = vld [vmem:[%s467 + $0x40] sm:$0xff]
      %v509 = vld [vmem:[%s467 + $0x48] sm:$0xff]
      %v510 = vld [vmem:[%s467 + $0x50] sm:$0xff]
      %v511 = vld [vmem:[%s467 + $0x58] sm:$0xff]
      %v512 = vld [vmem:[%s467 + $0x60] sm:$0xff]
      %v513 = vld [vmem:[%s467 + $0x68] sm:$0xff]
      %v514 = vld [vmem:[%s467 + $0x70] sm:$0xff]
      %v515 = vld [vmem:[%s467 + $0x78] sm:$0xff]
      %v516 = vld [vmem:[%s467 + $0x80] sm:$0xff]
      %v517 = vld [vmem:[%s467 + $0x88] sm:$0xff]
      %v518 = vld [vmem:[%s467 + $0x90] sm:$0xff]
      %v519 = vld [vmem:[%s467 + $0x98] sm:$0xff]
      %v520 = vld [vmem:[%s467 + $0xa0] sm:$0xff]
      %v521 = vld [vmem:[%s467 + $0xa8] sm:$0xff]
      %v522 = vld [vmem:[%s467 + $0xb0] sm:$0xff]
      %v523 = vld [vmem:[%s467 + $0xb8] sm:$0xff]
      %v524 = vld [vmem:[%s467 + $0xc0] sm:$0xff]
      %v525 = vld [vmem:[%s467 + $0xc8] sm:$0xff]
      %v526 = vld [vmem:[%s467 + $0xd0] sm:$0xff]
      %v527 = vld [vmem:[%s467 + $0xd8] sm:$0xff]
      %v528 = vld [vmem:[%s467 + $0xe0] sm:$0xff]
      %v529 = vld [vmem:[%s467 + $0xe8] sm:$0xff]
      %v530 = vld [vmem:[%s467 + $0xf0] sm:$0xff]
      %v531 = vld [vmem:[%s467 + $0xf8] sm:$0xff]
      %v532 = vld [vmem:[%s5] sm:$0xf]
      %v533 = vld [vmem:[%s5 + $0x4] sm:$0xf]
      %v534 = vld [vmem:[%s5 + $0x8] sm:$0xf]
      %v535 = vld [vmem:[%s5 + $0xc] sm:$0xf]
      %v540 = vunpack.c.l.b16 %v532
      %v541 = vunpack.c.l.b16 %v533
      %v542 = vunpack.c.l.b16 %v534
      %v543 = vunpack.c.l.b16 %v535
      %v544 = vpack.c.b16 %v541, %v540
      %v545 = vpack.c.b16 %v543, %v542
      %vm548 = vcmask 261120
      %v550 = vsel %vm548, %v484, 0
      %v553 = vsel %vm548, %v485, 0
      %v556 = vsel %vm548, %v486, 0
      %v559 = vsel %vm548, %v487, 0
      %561 = vmatprep.subr.bf16.mxu0 0
      %562 = vmatpush1.bf16.msra.mxu0 %v544
      %563 = vmatprep.subr.bf16.mxu0 0
      %564 = vmatpush1.bf16.msra.mxu0 %v545
      %565 = vmatprep.subr.bf16.mxu0 0
      %566 = vmatpush1.bf16.msra.mxu0 0
      %567 = vmatprep.subr.bf16.mxu0 0
      %568 = vmatpush1.bf16.msra.mxu0 0
      %569 = vmatprep.subr.bf16.mxu0 0
      %570 = vmatpush1.bf16.msra.mxu0 0
      %571 = vmatprep.subr.bf16.mxu0 0
      %572 = vmatpush1.bf16.msra.mxu0 0
      %573 = vmatprep.subr.bf16.mxu0 0
      %574 = vmatpush1.bf16.msra.mxu0 0
      %575 = vmatprep.subr.bf16.mxu0 0
      %576 = vmatpush1.bf16.msra.mxu0 0
      %577 = vmatprep.subr.bf16.mxu0 0
      %578 = vmatpush1.bf16.msra.mxu0 0
      %579 = vmatprep.subr.bf16.mxu0 0
      %580 = vmatpush1.bf16.msra.mxu0 0
      %581 = vmatprep.subr.bf16.mxu0 0
      %582 = vmatpush1.bf16.msra.mxu0 0
      %583 = vmatprep.subr.bf16.mxu0 0
      %584 = vmatpush1.bf16.msra.mxu0 0
      %585 = vmatprep.subr.bf16.mxu0 0
      %586 = vmatpush1.bf16.msra.mxu0 0
      %587 = vmatprep.subr.bf16.mxu0 0
      %588 = vmatpush1.bf16.msra.mxu0 0
      %589 = vmatprep.subr.bf16.mxu0 0
      %590 = vmatpush1.bf16.msra.mxu0 0
      %591 = vmatprep.subr.bf16.mxu0 0
      %592 = vmatpush1.bf16.msra.mxu0 0
      %593 = vmatprep.mubr.bf16.mxu0 0
      %594 = vmatmul.mubr.bf16.gmra.mrb[0].mxu0 %v550
      %v595 = vpop.f32.mrb[0].mxu0
      %v596 = vadd.f32 0.0, %v595
      %v597 = vpop.f32.mrb[0].mxu0
      %v598 = vpop.f32.mrb[0].mxu0
      %v599 = vadd.f32 0.0, %v598
      %v600 = vpop.f32.mrb[0].mxu0
      %601 = vmatprep.mubr.bf16.mxu0 0
      %602 = vmatmul.mubr.bf16.gmra.mrb[0].mxu0 %v553
      %v603 = vpop.f32.mrb[0].mxu0
      %v604 = vadd.f32 0.0, %v603
      %v605 = vpop.f32.mrb[0].mxu0
      %v606 = vpop.f32.mrb[0].mxu0
      %v607 = vadd.f32 0.0, %v606
      %v608 = vpop.f32.mrb[0].mxu0
      %609 = vmatprep.mubr.bf16.mxu0 0
      %610 = vmatmul.mubr.bf16.gmra.mrb[0].mxu0 %v556
      %v611 = vpop.f32.mrb[0].mxu0
      %v612 = vadd.f32 0.0, %v611
      %v613 = vpop.f32.mrb[0].mxu0
      %v614 = vpop.f32.mrb[0].mxu0
      %v615 = vadd.f32 0.0, %v614
      %v616 = vpop.f32.mrb[0].mxu0
      %617 = vmatprep.mubr.bf16.mxu0 0
      %618 = vmatmul.mubr.bf16.gmra.mrb[0].mxu0 %v559
      %v619 = vpop.f32.mrb[0].mxu0
      %v620 = vadd.f32 0.0, %v619
      %v621 = vpop.f32.mrb[0].mxu0
      %v622 = vpop.f32.mrb[0].mxu0
      %v623 = vadd.f32 0.0, %v622
      %v624 = vpop.f32.mrb[0].mxu0
      %625 = vdwg.mxu0
      %v626 = vpack.c.bf16 %v599, %v596
      %v627 = vpack.c.bf16 %v607, %v604
      %v628 = vpack.c.bf16 %v615, %v612
      %v629 = vpack.c.bf16 %v623, %v620
      %v630 = vld [vmem:[%s456] sm:$0xff]
      %v631 = vld [vmem:[%s456 + $0x8] sm:$0xff]
      %v632 = vld [vmem:[%s456 + $0x10] sm:$0xff]
      %v633 = vld [vmem:[%s456 + $0x18] sm:$0xff]
      %v634 = vld [vmem:[%s456 + $0x20] sm:$0xff]
      %v635 = vld [vmem:[%s456 + $0x28] sm:$0xff]
      %v636 = vld [vmem:[%s456 + $0x30] sm:$0xff]
      %v637 = vld [vmem:[%s456 + $0x38] sm:$0xff]
      %v638 = vld [vmem:[%s456 + $0x40] sm:$0xff]
      %v639 = vld [vmem:[%s456 + $0x48] sm:$0xff]
      %v640 = vld [vmem:[%s456 + $0x50] sm:$0xff]
      %v641 = vld [vmem:[%s456 + $0x58] sm:$0xff]
      %v642 = vld [vmem:[%s456 + $0x60] sm:$0xff]
      %v643 = vld [vmem:[%s456 + $0x68] sm:$0xff]
      %v644 = vld [vmem:[%s456 + $0x70] sm:$0xff]
      %v645 = vld [vmem:[%s456 + $0x78] sm:$0xff]
      %v646 = vld [vmem:[%s456 + $0x80] sm:$0xff]
      %v647 = vld [vmem:[%s456 + $0x88] sm:$0xff]
      %v648 = vld [vmem:[%s456 + $0x90] sm:$0xff]
      %v649 = vld [vmem:[%s456 + $0x98] sm:$0xff]
      %v650 = vld [vmem:[%s456 + $0xa0] sm:$0xff]
      %v651 = vld [vmem:[%s456 + $0xa8] sm:$0xff]
      %v652 = vld [vmem:[%s456 + $0xb0] sm:$0xff]
      %v653 = vld [vmem:[%s456 + $0xb8] sm:$0xff]
      %v654 = vld [vmem:[%s456 + $0xc0] sm:$0xff]
      %v655 = vld [vmem:[%s456 + $0xc8] sm:$0xff]
      %v656 = vld [vmem:[%s456 + $0xd0] sm:$0xff]
      %v657 = vld [vmem:[%s456 + $0xd8] sm:$0xff]
      %v658 = vld [vmem:[%s456 + $0xe0] sm:$0xff]
      %v659 = vld [vmem:[%s456 + $0xe8] sm:$0xff]
      %v660 = vld [vmem:[%s456 + $0xf0] sm:$0xff]
      %v661 = vld [vmem:[%s456 + $0xf8] sm:$0xff]
      %v662 = vlaneseq
      %v663 = vand.u32 %v662, 127
      %664 = vset.pattern.permute.xlu0 0
      %665 = vperm.xlu0 %664, %v630
      %v666 = vpop.permute.xlu0 %665
      %667 = vset.pattern.permute.xlu0 0
      %668 = vperm.xlu0 %667, %v631
      %v669 = vpop.permute.xlu0 %668
      %670 = vset.pattern.permute.xlu0 0
      %671 = vperm.xlu0 %670, %v632
      %v672 = vpop.permute.xlu0 %671
      %673 = vset.pattern.permute.xlu0 0
      %674 = vperm.xlu0 %673, %v633
      %v675 = vpop.permute.xlu0 %674
      %676 = vset.pattern.permute.xlu0 0
      %677 = vperm.xlu0 %676, %v634
      %v678 = vpop.permute.xlu0 %677
      %679 = vset.pattern.permute.xlu0 0
      %680 = vperm.xlu0 %679, %v635
      %v681 = vpop.permute.xlu0 %680
      %682 = vset.pattern.permute.xlu0 0
      %683 = vperm.xlu0 %682, %v636
      %v684 = vpop.permute.xlu0 %683
      %685 = vset.pattern.permute.xlu0 0
      %686 = vperm.xlu0 %685, %v637
      %v687 = vpop.permute.xlu0 %686
      %688 = vset.pattern.permute.xlu0 0
      %689 = vperm.xlu0 %688, %v638
      %v690 = vpop.permute.xlu0 %689
      %691 = vset.pattern.permute.xlu0 0
      %692 = vperm.xlu0 %691, %v639
      %v693 = vpop.permute.xlu0 %692
      %694 = vset.pattern.permute.xlu0 0
      %695 = vperm.xlu0 %694, %v640
      %v696 = vpop.permute.xlu0 %695
      %697 = vset.pattern.permute.xlu0 0
      %698 = vperm.xlu0 %697, %v641
      %v699 = vpop.permute.xlu0 %698
      %700 = vset.pattern.permute.xlu0 0
      %701 = vperm.xlu0 %700, %v642
      %v702 = vpop.permute.xlu0 %701
      %703 = vset.pattern.permute.xlu0 0
      %704 = vperm.xlu0 %703, %v643
      %v705 = vpop.permute.xlu0 %704
      %706 = vset.pattern.permute.xlu0 0
      %707 = vperm.xlu0 %706, %v644
      %v708 = vpop.permute.xlu0 %707
      %709 = vset.pattern.permute.xlu0 0
      %710 = vperm.xlu0 %709, %v645
      %v711 = vpop.permute.xlu0 %710
      %712 = vset.pattern.permute.xlu0 0
      %713 = vperm.xlu0 %712, %v646
      %v714 = vpop.permute.xlu0 %713
      %715 = vset.pattern.permute.xlu0 0
      %716 = vperm.xlu0 %715, %v647
      %v717 = vpop.permute.xlu0 %716
      %718 = vset.pattern.permute.xlu0 0
      %719 = vperm.xlu0 %718, %v648
      %v720 = vpop.permute.xlu0 %719
      %721 = vset.pattern.permute.xlu0 0
      %722 = vperm.xlu0 %721, %v649
      %v723 = vpop.permute.xlu0 %722
      %724 = vset.pattern.permute.xlu0 0
      %725 = vperm.xlu0 %724, %v650
      %v726 = vpop.permute.xlu0 %725
      %727 = vset.pattern.permute.xlu0 0
      %728 = vperm.xlu0 %727, %v651
      %v729 = vpop.permute.xlu0 %728
      %730 = vset.pattern.permute.xlu0 0
      %731 = vperm.xlu0 %730, %v652
      %v732 = vpop.permute.xlu0 %731
      %733 = vset.pattern.permute.xlu0 0
      %734 = vperm.xlu0 %733, %v653
      %v735 = vpop.permute.xlu0 %734
      %736 = vset.pattern.permute.xlu0 0
      %737 = vperm.xlu0 %736, %v654
      %v738 = vpop.permute.xlu0 %737
      %739 = vset.pattern.permute.xlu0 0
      %740 = vperm.xlu0 %739, %v655
      %v741 = vpop.permute.xlu0 %740
      %742 = vset.pattern.permute.xlu0 0
      %743 = vperm.xlu0 %742, %v656
      %v744 = vpop.permute.xlu0 %743
      %745 = vset.pattern.permute.xlu0 0
      %746 = vperm.xlu0 %745, %v657
      %v747 = vpop.permute.xlu0 %746
      %748 = vset.pattern.permute.xlu0 0
      %749 = vperm.xlu0 %748, %v658
      %v750 = vpop.permute.xlu0 %749
      %751 = vset.pattern.permute.xlu0 0
      %752 = vperm.xlu0 %751, %v659
      %v753 = vpop.permute.xlu0 %752
      %754 = vset.pattern.permute.xlu0 0
      %755 = vperm.xlu0 %754, %v660
      %v756 = vpop.permute.xlu0 %755
      %757 = vset.pattern.permute.xlu0 0
      %758 = vperm.xlu0 %757, %v661
      %v759 = vpop.permute.xlu0 %758
      %vm760 = vcmp.eq.s32.totalorder %v663, %v666
      %vm761 = vcmp.eq.s32.totalorder %v663, %v669
      %vm762 = vcmp.eq.s32.totalorder %v663, %v672
      %vm763 = vcmp.eq.s32.totalorder %v663, %v675
      %vm764 = vcmp.eq.s32.totalorder %v663, %v678
      %vm765 = vcmp.eq.s32.totalorder %v663, %v681
      %vm766 = vcmp.eq.s32.totalorder %v663, %v684
      %vm767 = vcmp.eq.s32.totalorder %v663, %v687
      %vm768 = vcmp.eq.s32.totalorder %v663, %v690
      %vm769 = vcmp.eq.s32.totalorder %v663, %v693
      %vm770 = vcmp.eq.s32.totalorder %v663, %v696
      %vm771 = vcmp.eq.s32.totalorder %v663, %v699
      %vm772 = vcmp.eq.s32.totalorder %v663, %v702
      %vm773 = vcmp.eq.s32.totalorder %v663, %v705
      %vm774 = vcmp.eq.s32.totalorder %v663, %v708
      %vm775 = vcmp.eq.s32.totalorder %v663, %v711
      %vm776 = vcmp.eq.s32.totalorder %v663, %v714
      %vm777 = vcmp.eq.s32.totalorder %v663, %v717
      %vm778 = vcmp.eq.s32.totalorder %v663, %v720
      %vm779 = vcmp.eq.s32.totalorder %v663, %v723
      %vm780 = vcmp.eq.s32.totalorder %v663, %v726
      %vm781 = vcmp.eq.s32.totalorder %v663, %v729
      %vm782 = vcmp.eq.s32.totalorder %v663, %v732
      %vm783 = vcmp.eq.s32.totalorder %v663, %v735
      %vm784 = vcmp.eq.s32.totalorder %v663, %v738
      %vm785 = vcmp.eq.s32.totalorder %v663, %v741
      %vm786 = vcmp.eq.s32.totalorder %v663, %v744
      %vm787 = vcmp.eq.s32.totalorder %v663, %v747
      %vm788 = vcmp.eq.s32.totalorder %v663, %v750
      %vm789 = vcmp.eq.s32.totalorder %v663, %v753
      %vm790 = vcmp.eq.s32.totalorder %v663, %v756
      %vm791 = vcmp.eq.s32.totalorder %v663, %v759
      %v792 = vsel %vm760, 1, 0
      %v793 = vsel %vm761, 1, 0
      %v794 = vsel %vm762, 1, 0
      %v795 = vsel %vm763, 1, 0
      %v796 = vsel %vm764, 1, 0
      %v797 = vsel %vm765, 1, 0
      %v798 = vsel %vm766, 1, 0
      %v799 = vsel %vm767, 1, 0
      %v800 = vsel %vm768, 1, 0
      %v801 = vsel %vm769, 1, 0
      %v802 = vsel %vm770, 1, 0
      %v803 = vsel %vm771, 1, 0
      %v804 = vsel %vm772, 1, 0
      %v805 = vsel %vm773, 1, 0
      %v806 = vsel %vm774, 1, 0
      %v807 = vsel %vm775, 1, 0
      %v808 = vsel %vm776, 1, 0
      %v809 = vsel %vm777, 1, 0
      %v810 = vsel %vm778, 1, 0
      %v811 = vsel %vm779, 1, 0
      %v812 = vsel %vm780, 1, 0
      %v813 = vsel %vm781, 1, 0
      %v814 = vsel %vm782, 1, 0
      %v815 = vsel %vm783, 1, 0
      %v816 = vsel %vm784, 1, 0
      %v817 = vsel %vm785, 1, 0
      %v818 = vsel %vm786, 1, 0
      %v819 = vsel %vm787, 1, 0
      %v820 = vsel %vm788, 1, 0
      %v821 = vsel %vm789, 1, 0
      %v822 = vsel %vm790, 1, 0
      %v823 = vsel %vm791, 1, 0
      %v824 = vcvt.s32.f32 %v792
      %v825 = vcvt.s32.f32 %v793
      %v826 = vcvt.s32.f32 %v794
      %v827 = vcvt.s32.f32 %v795
      %v828 = vcvt.s32.f32 %v796
      %v829 = vcvt.s32.f32 %v797
      %v830 = vcvt.s32.f32 %v798
      %v831 = vcvt.s32.f32 %v799
      %v832 = vcvt.s32.f32 %v800
      %v833 = vcvt.s32.f32 %v801
      %v834 = vcvt.s32.f32 %v802
      %v835 = vcvt.s32.f32 %v803
      %v836 = vcvt.s32.f32 %v804
      %v837 = vcvt.s32.f32 %v805
      %v838 = vcvt.s32.f32 %v806
      %v839 = vcvt.s32.f32 %v807
      %v840 = vcvt.s32.f32 %v808
      %v841 = vcvt.s32.f32 %v809
      %v842 = vcvt.s32.f32 %v810
      %v843 = vcvt.s32.f32 %v811
      %v844 = vcvt.s32.f32 %v812
      %v845 = vcvt.s32.f32 %v813
      %v846 = vcvt.s32.f32 %v814
      %v847 = vcvt.s32.f32 %v815
      %v848 = vcvt.s32.f32 %v816
      %v849 = vcvt.s32.f32 %v817
      %v850 = vcvt.s32.f32 %v818
      %v851 = vcvt.s32.f32 %v819
      %v852 = vcvt.s32.f32 %v820
      %v853 = vcvt.s32.f32 %v821
      %v854 = vcvt.s32.f32 %v822
      %v855 = vcvt.s32.f32 %v823
      %v856 = vpack.c.bf16 %v825, %v824
      %v857 = vpack.c.bf16 %v827, %v826
      %v858 = vpack.c.bf16 %v829, %v828
      %v859 = vpack.c.bf16 %v831, %v830
      %v860 = vpack.c.bf16 %v833, %v832
      %v861 = vpack.c.bf16 %v835, %v834
      %v862 = vpack.c.bf16 %v837, %v836
      %v863 = vpack.c.bf16 %v839, %v838
      %v864 = vpack.c.bf16 %v841, %v840
      %v865 = vpack.c.bf16 %v843, %v842
      %v866 = vpack.c.bf16 %v845, %v844
      %v867 = vpack.c.bf16 %v847, %v846
      %v868 = vpack.c.bf16 %v849, %v848
      %v869 = vpack.c.bf16 %v851, %v850
      %v870 = vpack.c.bf16 %v853, %v852
      %v871 = vpack.c.bf16 %v855, %v854
      %vm872 = vcmask 523264
      %v874 = vsel %vm872, %v856, 0
      %v877 = vsel %vm872, %v857, 0
      %v880 = vsel %vm872, %v858, 0
      %v883 = vsel %vm872, %v859, 0
      %v886 = vsel %vm872, %v860, 0
      %v889 = vsel %vm872, %v861, 0
      %v892 = vsel %vm872, %v862, 0
      %v895 = vsel %vm872, %v863, 0
      %v898 = vsel %vm872, %v864, 0
      %v901 = vsel %vm872, %v865, 0
      %v904 = vsel %vm872, %v866, 0
      %v907 = vsel %vm872, %v867, 0
      %v910 = vsel %vm872, %v868, 0
      %v913 = vsel %vm872, %v869, 0
      %v916 = vsel %vm872, %v870, 0
      %v919 = vsel %vm872, %v871, 0
      %921 = vmatprep.subr.bf16.mxu0 0
      %922 = vmatpush1.bf16.msra.mxu0 %v626
      %923 = vmatprep.subr.bf16.mxu0 0
      %924 = vmatpush1.bf16.msra.mxu0 %v627
      %925 = vmatprep.subr.bf16.mxu0 0
      %926 = vmatpush1.bf16.msra.mxu0 %v628
      %927 = vmatprep.subr.bf16.mxu0 0
      %928 = vmatpush1.bf16.msra.mxu0 %v629
      %929 = vmatprep.subr.bf16.mxu0 0
      %930 = vmatpush1.bf16.msra.mxu0 0
      %931 = vmatprep.subr.bf16.mxu0 0
      %932 = vmatpush1.bf16.msra.mxu0 0
      %933 = vmatprep.subr.bf16.mxu0 0
      %934 = vmatpush1.bf16.msra.mxu0 0
      %935 = vmatprep.subr.bf16.mxu0 0
      %936 = vmatpush1.bf16.msra.mxu0 0
      %937 = vmatprep.subr.bf16.mxu0 0
      %938 = vmatpush1.bf16.msra.mxu0 0
      %939 = vmatprep.subr.bf16.mxu0 0
      %940 = vmatpush1.bf16.msra.mxu0 0
      %941 = vmatprep.subr.bf16.mxu0 0
      %942 = vmatpush1.bf16.msra.mxu0 0
      %943 = vmatprep.subr.bf16.mxu0 0
      %944 = vmatpush1.bf16.msra.mxu0 0
      %945 = vmatprep.subr.bf16.mxu0 0
      %946 = vmatpush1.bf16.msra.mxu0 0
      %947 = vmatprep.subr.bf16.mxu0 0
      %948 = vmatpush1.bf16.msra.mxu0 0
      %949 = vmatprep.subr.bf16.mxu0 0
      %950 = vmatpush1.bf16.msra.mxu0 0
      %951 = vmatprep.subr.bf16.mxu0 0
      %952 = vmatpush1.bf16.msra.mxu0 0
      %953 = vmatprep.mubr.bf16.mxu0 0
      %954 = vmatmul.mubr.bf16.gmra.mrb[0].mxu0 %v874
      %v955 = vpop.f32.mrb[0].mxu0
      %v956 = vadd.f32 0.0, %v955
      %v957 = vpop.f32.mrb[0].mxu0
      %v958 = vpop.f32.mrb[0].mxu0
      %v959 = vadd.f32 0.0, %v958
      %v960 = vpop.f32.mrb[0].mxu0
      %961 = vmatprep.mubr.bf16.mxu0 0
      %962 = vmatmul.mubr.bf16.gmra.mrb[0].mxu0 %v877
      %v963 = vpop.f32.mrb[0].mxu0
      %v964 = vadd.f32 0.0, %v963
      %v965 = vpop.f32.mrb[0].mxu0
      %v966 = vpop.f32.mrb[0].mxu0
      %v967 = vadd.f32 0.0, %v966
      %v968 = vpop.f32.mrb[0].mxu0
      %969 = vmatprep.mubr.bf16.mxu0 0
      %970 = vmatmul.mubr.bf16.gmra.mrb[0].mxu0 %v880
      %v971 = vpop.f32.mrb[0].mxu0
      %v972 = vadd.f32 0.0, %v971
      %v973 = vpop.f32.mrb[0].mxu0
      %v974 = vpop.f32.mrb[0].mxu0
      %v975 = vadd.f32 0.0, %v974
      %v976 = vpop.f32.mrb[0].mxu0
      %977 = vmatprep.mubr.bf16.mxu0 0
      %978 = vmatmul.mubr.bf16.gmra.mrb[0].mxu0 %v883
      %v979 = vpop.f32.mrb[0].mxu0
      %v980 = vadd.f32 0.0, %v979
      %v981 = vpop.f32.mrb[0].mxu0
      %v982 = vpop.f32.mrb[0].mxu0
      %v983 = vadd.f32 0.0, %v982
      %v984 = vpop.f32.mrb[0].mxu0
      %985 = vmatprep.mubr.bf16.mxu0 0
      %986 = vmatmul.mubr.bf16.gmra.mrb[0].mxu0 %v886
      %v987 = vpop.f32.mrb[0].mxu0
      %v988 = vadd.f32 0.0, %v987
      %v989 = vpop.f32.mrb[0].mxu0
      %v990 = vpop.f32.mrb[0].mxu0
      %v991 = vadd.f32 0.0, %v990
      %v992 = vpop.f32.mrb[0].mxu0
      %993 = vmatprep.mubr.bf16.mxu0 0
      %994 = vmatmul.mubr.bf16.gmra.mrb[0].mxu0 %v889
      %v995 = vpop.f32.mrb[0].mxu0
      %v996 = vadd.f32 0.0, %v995
      %v997 = vpop.f32.mrb[0].mxu0
      %v998 = vpop.f32.mrb[0].mxu0
      %v999 = vadd.f32 0.0, %v998
      %v1000 = vpop.f32.mrb[0].mxu0
      %1001 = vmatprep.mubr.bf16.mxu0 0
      %1002 = vmatmul.mubr.bf16.gmra.mrb[0].mxu0 %v892
      %v1003 = vpop.f32.mrb[0].mxu0
      %v1004 = vadd.f32 0.0, %v1003
      %v1005 = vpop.f32.mrb[0].mxu0
      %v1006 = vpop.f32.mrb[0].mxu0
      %v1007 = vadd.f32 0.0, %v1006
      %v1008 = vpop.f32.mrb[0].mxu0
      %1009 = vmatprep.mubr.bf16.mxu0 0
      %1010 = vmatmul.mubr.bf16.gmra.mrb[0].mxu0 %v895
      %v1011 = vpop.f32.mrb[0].mxu0
      %v1012 = vadd.f32 0.0, %v1011
      %v1013 = vpop.f32.mrb[0].mxu0
      %v1014 = vpop.f32.mrb[0].mxu0
      %v1015 = vadd.f32 0.0, %v1014
      %v1016 = vpop.f32.mrb[0].mxu0
      %1017 = vmatprep.mubr.bf16.mxu0 0
      %1018 = vmatmul.mubr.bf16.gmra.mrb[0].mxu0 %v898
      %v1019 = vpop.f32.mrb[0].mxu0
      %v1020 = vadd.f32 0.0, %v1019
      %v1021 = vpop.f32.mrb[0].mxu0
      %v1022 = vpop.f32.mrb[0].mxu0
      %v1023 = vadd.f32 0.0, %v1022
      %v1024 = vpop.f32.mrb[0].mxu0
      %1025 = vmatprep.mubr.bf16.mxu0 0
      %1026 = vmatmul.mubr.bf16.gmra.mrb[0].mxu0 %v901
      %v1027 = vpop.f32.mrb[0].mxu0
      %v1028 = vadd.f32 0.0, %v1027
      %v1029 = vpop.f32.mrb[0].mxu0
      %v1030 = vpop.f32.mrb[0].mxu0
      %v1031 = vadd.f32 0.0, %v1030
      %v1032 = vpop.f32.mrb[0].mxu0
      %1033 = vmatprep.mubr.bf16.mxu0 0
      %1034 = vmatmul.mubr.bf16.gmra.mrb[0].mxu0 %v904
      %v1035 = vpop.f32.mrb[0].mxu0
      %v1036 = vadd.f32 0.0, %v1035
      %v1037 = vpop.f32.mrb[0].mxu0
      %v1038 = vpop.f32.mrb[0].mxu0
      %v1039 = vadd.f32 0.0, %v1038
      %v1040 = vpop.f32.mrb[0].mxu0
      %1041 = vmatprep.mubr.bf16.mxu0 0
      %1042 = vmatmul.mubr.bf16.gmra.mrb[0].mxu0 %v907
      %v1043 = vpop.f32.mrb[0].mxu0
      %v1044 = vadd.f32 0.0, %v1043
      %v1045 = vpop.f32.mrb[0].mxu0
      %v1046 = vpop.f32.mrb[0].mxu0
      %v1047 = vadd.f32 0.0, %v1046
      %v1048 = vpop.f32.mrb[0].mxu0
      %1049 = vmatprep.mubr.bf16.mxu0 0
      %1050 = vmatmul.mubr.bf16.gmra.mrb[0].mxu0 %v910
      %v1051 = vpop.f32.mrb[0].mxu0
      %v1052 = vadd.f32 0.0, %v1051
      %v1053 = vpop.f32.mrb[0].mxu0
      %v1054 = vpop.f32.mrb[0].mxu0
      %v1055 = vadd.f32 0.0, %v1054
      %v1056 = vpop.f32.mrb[0].mxu0
      %1057 = vmatprep.mubr.bf16.mxu0 0
      %1058 = vmatmul.mubr.bf16.gmra.mrb[0].mxu0 %v913
      %v1059 = vpop.f32.mrb[0].mxu0
      %v1060 = vadd.f32 0.0, %v1059
      %v1061 = vpop.f32.mrb[0].mxu0
      %v1062 = vpop.f32.mrb[0].mxu0
      %v1063 = vadd.f32 0.0, %v1062
      %v1064 = vpop.f32.mrb[0].mxu0
      %1065 = vmatprep.mubr.bf16.mxu0 0
      %1066 = vmatmul.mubr.bf16.gmra.mrb[0].mxu0 %v916
      %v1067 = vpop.f32.mrb[0].mxu0
      %v1068 = vadd.f32 0.0, %v1067
      %v1069 = vpop.f32.mrb[0].mxu0
      %v1070 = vpop.f32.mrb[0].mxu0
      %v1071 = vadd.f32 0.0, %v1070
      %v1072 = vpop.f32.mrb[0].mxu0
      %1073 = vmatprep.mubr.bf16.mxu0 0
      %1074 = vmatmul.mubr.bf16.gmra.mrb[0].mxu0 %v919
      %v1075 = vpop.f32.mrb[0].mxu0
      %v1076 = vadd.f32 0.0, %v1075
      %v1077 = vpop.f32.mrb[0].mxu0
      %v1078 = vpop.f32.mrb[0].mxu0
      %v1079 = vadd.f32 0.0, %v1078
      %v1080 = vpop.f32.mrb[0].mxu0
      %1081 = vdwg.mxu0
      %v1082 = vld [vmem:[%s7] sm:$0xff]
      %1115 = vrot.lane.b32.xlu0 %v500, 124
      %v1116 = vpop.permute.xlu0 %1115
      %1117 = vrot.lane.b32.xlu0 %v501, 124
      %v1118 = vpop.permute.xlu0 %1117
      %1119 = vrot.lane.b32.xlu0 %v502, 124
      %v1120 = vpop.permute.xlu0 %1119
      %1121 = vrot.lane.b32.xlu0 %v503, 124
      %v1122 = vpop.permute.xlu0 %1121
      %1123 = vrot.lane.b32.xlu0 %v504, 124
      %v1124 = vpop.permute.xlu0 %1123
      %1125 = vrot.lane.b32.xlu0 %v505, 124
      %v1126 = vpop.permute.xlu0 %1125
      %1127 = vrot.lane.b32.xlu0 %v506, 124
      %v1128 = vpop.permute.xlu0 %1127
      %1129 = vrot.lane.b32.xlu0 %v507, 124
      %v1130 = vpop.permute.xlu0 %1129
      %1131 = vrot.lane.b32.xlu0 %v508, 124
      %v1132 = vpop.permute.xlu0 %1131
      %1133 = vrot.lane.b32.xlu0 %v509, 124
      %v1134 = vpop.permute.xlu0 %1133
      %1135 = vrot.lane.b32.xlu0 %v510, 124
      %v1136 = vpop.permute.xlu0 %1135
      %1137 = vrot.lane.b32.xlu0 %v511, 124
      %v1138 = vpop.permute.xlu0 %1137
      %1139 = vrot.lane.b32.xlu0 %v512, 124
      %v1140 = vpop.permute.xlu0 %1139
      %1141 = vrot.lane.b32.xlu0 %v513, 124
      %v1142 = vpop.permute.xlu0 %1141
      %1143 = vrot.lane.b32.xlu0 %v514, 124
      %v1144 = vpop.permute.xlu0 %1143
      %1145 = vrot.lane.b32.xlu0 %v515, 124
      %v1146 = vpop.permute.xlu0 %1145
      %1147 = vrot.lane.b32.xlu0 %v516, 124
      %v1148 = vpop.permute.xlu0 %1147
      %1149 = vrot.lane.b32.xlu0 %v517, 124
      %v1150 = vpop.permute.xlu0 %1149
      %1151 = vrot.lane.b32.xlu0 %v518, 124
      %v1152 = vpop.permute.xlu0 %1151
      %1153 = vrot.lane.b32.xlu0 %v519, 124
      %v1154 = vpop.permute.xlu0 %1153
      %1155 = vrot.lane.b32.xlu0 %v520, 124
      %v1156 = vpop.permute.xlu0 %1155
      %1157 = vrot.lane.b32.xlu0 %v521, 124
      %v1158 = vpop.permute.xlu0 %1157
      %1159 = vrot.lane.b32.xlu0 %v522, 124
      %v1160 = vpop.permute.xlu0 %1159
      %1161 = vrot.lane.b32.xlu0 %v523, 124
      %v1162 = vpop.permute.xlu0 %1161
      %1163 = vrot.lane.b32.xlu0 %v524, 124
      %v1164 = vpop.permute.xlu0 %1163
      %1165 = vrot.lane.b32.xlu0 %v525, 124
      %v1166 = vpop.permute.xlu0 %1165
      %1167 = vrot.lane.b32.xlu0 %v526, 124
      %v1168 = vpop.permute.xlu0 %1167
      %1169 = vrot.lane.b32.xlu0 %v527, 124
      %v1170 = vpop.permute.xlu0 %1169
      %1171 = vrot.lane.b32.xlu0 %v528, 124
      %v1172 = vpop.permute.xlu0 %1171
      %1173 = vrot.lane.b32.xlu0 %v529, 124
      %v1174 = vpop.permute.xlu0 %1173
      %1175 = vrot.lane.b32.xlu0 %v530, 124
      %v1176 = vpop.permute.xlu0 %1175
      %1177 = vrot.lane.b32.xlu0 %v531, 124
      %v1178 = vpop.permute.xlu0 %1177
      %vm1179 = vcmask 64512
      %v1180 = vsel %vm1179, %v1116, 0
      %v1182 = vsel %vm1179, %v1118, 0
      %v1184 = vsel %vm1179, %v1120, 0
      %v1186 = vsel %vm1179, %v1122, 0
      %v1188 = vsel %vm1179, %v1124, 0
      %v1190 = vsel %vm1179, %v1126, 0
      %v1192 = vsel %vm1179, %v1128, 0
      %v1194 = vsel %vm1179, %v1130, 0
      %v1196 = vsel %vm1179, %v1132, 0
      %v1198 = vsel %vm1179, %v1134, 0
      %v1200 = vsel %vm1179, %v1136, 0
      %v1202 = vsel %vm1179, %v1138, 0
      %v1204 = vsel %vm1179, %v1140, 0
      %v1206 = vsel %vm1179, %v1142, 0
      %v1208 = vsel %vm1179, %v1144, 0
      %v1210 = vsel %vm1179, %v1146, 0
      %v1212 = vsel %vm1179, %v1148, 0
      %v1214 = vsel %vm1179, %v1150, 0
      %v1216 = vsel %vm1179, %v1152, 0
      %v1218 = vsel %vm1179, %v1154, 0
      %v1220 = vsel %vm1179, %v1156, 0
      %v1222 = vsel %vm1179, %v1158, 0
      %v1224 = vsel %vm1179, %v1160, 0
      %v1226 = vsel %vm1179, %v1162, 0
      %v1228 = vsel %vm1179, %v1164, 0
      %v1230 = vsel %vm1179, %v1166, 0
      %v1232 = vsel %vm1179, %v1168, 0
      %v1234 = vsel %vm1179, %v1170, 0
      %v1236 = vsel %vm1179, %v1172, 0
      %v1238 = vsel %vm1179, %v1174, 0
      %v1240 = vsel %vm1179, %v1176, 0
      %v1242 = vsel %vm1179, %v1178, 0
      %1244 = vmatprep.subr.mxu0 0.0
      %1245 = vmatpush1.msra.mxu0 %v1082
      %1246 = vmatprep.subr.mxu0 0.0
      %1247 = vmatpush1.msra.mxu0 0.0
      %1248 = vmatprep.subr.mxu0 0.0
      %1249 = vmatpush1.msra.mxu0 0.0
      %1250 = vmatprep.subr.mxu0 0.0
      %1251 = vmatpush1.msra.mxu0 0.0
      %1252 = vmatprep.subr.mxu0 0.0
      %1253 = vmatpush1.msra.mxu0 0.0
      %1254 = vmatprep.subr.mxu0 0.0
      %1255 = vmatpush1.msra.mxu0 0.0
      %1256 = vmatprep.subr.mxu0 0.0
      %1257 = vmatpush1.msra.mxu0 0.0
      %1258 = vmatprep.subr.mxu0 0.0
      %1259 = vmatpush1.msra.mxu0 0.0
      %1260 = vmatprep.subr.mxu0 0.0
      %1261 = vmatpush1.msra.mxu0 0.0
      %1262 = vmatprep.subr.mxu0 0.0
      %1263 = vmatpush1.msra.mxu0 0.0
      %1264 = vmatprep.subr.mxu0 0.0
      %1265 = vmatpush1.msra.mxu0 0.0
      %1266 = vmatprep.subr.mxu0 0.0
      %1267 = vmatpush1.msra.mxu0 0.0
      %1268 = vmatprep.subr.mxu0 0.0
      %1269 = vmatpush1.msra.mxu0 0.0
      %1270 = vmatprep.subr.mxu0 0.0
      %1271 = vmatpush1.msra.mxu0 0.0
      %1272 = vmatprep.subr.mxu0 0.0
      %1273 = vmatpush1.msra.mxu0 0.0
      %1274 = vmatprep.subr.mxu0 0.0
      %1275 = vmatpush1.msra.mxu0 0.0
      %1276 = vmatprep.subr.mxu0 0.0
      %1277 = vmatpush1.msra.mxu0 0.0
      %1278 = vmatprep.subr.mxu0 0.0
      %1279 = vmatpush1.msra.mxu0 0.0
      %1280 = vmatprep.subr.mxu0 0.0
      %1281 = vmatpush1.msra.mxu0 0.0
      %1282 = vmatprep.subr.mxu0 0.0
      %1283 = vmatpush1.msra.mxu0 0.0
      %1284 = vmatprep.subr.mxu0 0.0
      %1285 = vmatpush1.msra.mxu0 0.0
      %1286 = vmatprep.subr.mxu0 0.0
      %1287 = vmatpush1.msra.mxu0 0.0
      %1288 = vmatprep.subr.mxu0 0.0
      %1289 = vmatpush1.msra.mxu0 0.0
      %1290 = vmatprep.subr.mxu0 0.0
      %1291 = vmatpush1.msra.mxu0 0.0
      %1292 = vmatprep.subr.mxu0 0.0
      %1293 = vmatpush1.msra.mxu0 0.0
      %1294 = vmatprep.subr.mxu0 0.0
      %1295 = vmatpush1.msra.mxu0 0.0
      %1296 = vmatprep.subr.mxu0 0.0
      %1297 = vmatpush1.msra.mxu0 0.0
      %1298 = vmatprep.subr.mxu0 0.0
      %1299 = vmatpush1.msra.mxu0 0.0
      %1300 = vmatprep.subr.mxu0 0.0
      %1301 = vmatpush1.msra.mxu0 0.0
      %1302 = vmatprep.subr.mxu0 0.0
      %1303 = vmatpush1.msra.mxu0 0.0
      %1304 = vmatprep.subr.mxu0 0.0
      %1305 = vmatpush1.msra.mxu0 0.0
      %1306 = vmatprep.subr.mxu0 0.0
      %1307 = vmatpush1.msra.mxu0 0.0
      %1308 = vmatprep.mubr.f32.mxu0 0.0
      %1309 = vmatmul.mubr.f32.gmra.mrb[0].mxu0 %v1180
      %v1310 = vpop.f32.mrb[0].mxu0
      %v1311 = vadd.f32 0.0, %v1310
      %v1312 = vpop.f32.mrb[0].mxu0
      %1313 = vmatprep.mubr.f32.mxu0 0.0
      %1314 = vmatmul.mubr.f32.gmra.mrb[0].mxu0 %v1182
      %v1315 = vpop.f32.mrb[0].mxu0
      %v1316 = vadd.f32 0.0, %v1315
      %v1317 = vpop.f32.mrb[0].mxu0
      %1318 = vmatprep.mubr.f32.mxu0 0.0
      %1319 = vmatmul.mubr.f32.gmra.mrb[0].mxu0 %v1184
      %v1320 = vpop.f32.mrb[0].mxu0
      %v1321 = vadd.f32 0.0, %v1320
      %v1322 = vpop.f32.mrb[0].mxu0
      %1323 = vmatprep.mubr.f32.mxu0 0.0
      %1324 = vmatmul.mubr.f32.gmra.mrb[0].mxu0 %v1186
      %v1325 = vpop.f32.mrb[0].mxu0
      %v1326 = vadd.f32 0.0, %v1325
      %v1327 = vpop.f32.mrb[0].mxu0
      %1328 = vmatprep.mubr.f32.mxu0 0.0
      %1329 = vmatmul.mubr.f32.gmra.mrb[0].mxu0 %v1188
      %v1330 = vpop.f32.mrb[0].mxu0
      %v1331 = vadd.f32 0.0, %v1330
      %v1332 = vpop.f32.mrb[0].mxu0
      %1333 = vmatprep.mubr.f32.mxu0 0.0
      %1334 = vmatmul.mubr.f32.gmra.mrb[0].mxu0 %v1190
      %v1335 = vpop.f32.mrb[0].mxu0
      %v1336 = vadd.f32 0.0, %v1335
      %v1337 = vpop.f32.mrb[0].mxu0
      %1338 = vmatprep.mubr.f32.mxu0 0.0
      %1339 = vmatmul.mubr.f32.gmra.mrb[0].mxu0 %v1192
      %v1340 = vpop.f32.mrb[0].mxu0
      %v1341 = vadd.f32 0.0, %v1340
      %v1342 = vpop.f32.mrb[0].mxu0
      %1343 = vmatprep.mubr.f32.mxu0 0.0
      %1344 = vmatmul.mubr.f32.gmra.mrb[0].mxu0 %v1194
      %v1345 = vpop.f32.mrb[0].mxu0
      %v1346 = vadd.f32 0.0, %v1345
      %v1347 = vpop.f32.mrb[0].mxu0
      %1348 = vmatprep.mubr.f32.mxu0 0.0
      %1349 = vmatmul.mubr.f32.gmra.mrb[0].mxu0 %v1196
      %v1350 = vpop.f32.mrb[0].mxu0
      %v1351 = vadd.f32 0.0, %v1350
      %v1352 = vpop.f32.mrb[0].mxu0
      %1353 = vmatprep.mubr.f32.mxu0 0.0
      %1354 = vmatmul.mubr.f32.gmra.mrb[0].mxu0 %v1198
      %v1355 = vpop.f32.mrb[0].mxu0
      %v1356 = vadd.f32 0.0, %v1355
      %v1357 = vpop.f32.mrb[0].mxu0
      %1358 = vmatprep.mubr.f32.mxu0 0.0
      %1359 = vmatmul.mubr.f32.gmra.mrb[0].mxu0 %v1200
      %v1360 = vpop.f32.mrb[0].mxu0
      %v1361 = vadd.f32 0.0, %v1360
      %v1362 = vpop.f32.mrb[0].mxu0
      %1363 = vmatprep.mubr.f32.mxu0 0.0
      %1364 = vmatmul.mubr.f32.gmra.mrb[0].mxu0 %v1202
      %v1365 = vpop.f32.mrb[0].mxu0
      %v1366 = vadd.f32 0.0, %v1365
      %v1367 = vpop.f32.mrb[0].mxu0
      %1368 = vmatprep.mubr.f32.mxu0 0.0
      %1369 = vmatmul.mubr.f32.gmra.mrb[0].mxu0 %v1204
      %v1370 = vpop.f32.mrb[0].mxu0
      %v1371 = vadd.f32 0.0, %v1370
      %v1372 = vpop.f32.mrb[0].mxu0
      %1373 = vmatprep.mubr.f32.mxu0 0.0
      %1374 = vmatmul.mubr.f32.gmra.mrb[0].mxu0 %v1206
      %v1375 = vpop.f32.mrb[0].mxu0
      %v1376 = vadd.f32 0.0, %v1375
      %v1377 = vpop.f32.mrb[0].mxu0
      %1378 = vmatprep.mubr.f32.mxu0 0.0
      %1379 = vmatmul.mubr.f32.gmra.mrb[0].mxu0 %v1208
      %v1380 = vpop.f32.mrb[0].mxu0
      %v1381 = vadd.f32 0.0, %v1380
      %v1382 = vpop.f32.mrb[0].mxu0
      %1383 = vmatprep.mubr.f32.mxu0 0.0
      %1384 = vmatmul.mubr.f32.gmra.mrb[0].mxu0 %v1210
      %v1385 = vpop.f32.mrb[0].mxu0
      %v1386 = vadd.f32 0.0, %v1385
      %v1387 = vpop.f32.mrb[0].mxu0
      %1388 = vmatprep.mubr.f32.mxu0 0.0
      %1389 = vmatmul.mubr.f32.gmra.mrb[0].mxu0 %v1212
      %v1390 = vpop.f32.mrb[0].mxu0
      %v1391 = vadd.f32 0.0, %v1390
      %v1392 = vpop.f32.mrb[0].mxu0
      %1393 = vmatprep.mubr.f32.mxu0 0.0
      %1394 = vmatmul.mubr.f32.gmra.mrb[0].mxu0 %v1214
      %v1395 = vpop.f32.mrb[0].mxu0
      %v1396 = vadd.f32 0.0, %v1395
      %v1397 = vpop.f32.mrb[0].mxu0
      %1398 = vmatprep.mubr.f32.mxu0 0.0
      %1399 = vmatmul.mubr.f32.gmra.mrb[0].mxu0 %v1216
      %v1400 = vpop.f32.mrb[0].mxu0
      %v1401 = vadd.f32 0.0, %v1400
      %v1402 = vpop.f32.mrb[0].mxu0
      %1403 = vmatprep.mubr.f32.mxu0 0.0
      %1404 = vmatmul.mubr.f32.gmra.mrb[0].mxu0 %v1218
      %v1405 = vpop.f32.mrb[0].mxu0
      %v1406 = vadd.f32 0.0, %v1405
      %v1407 = vpop.f32.mrb[0].mxu0
      %1408 = vmatprep.mubr.f32.mxu0 0.0
      %1409 = vmatmul.mubr.f32.gmra.mrb[0].mxu0 %v1220
      %v1410 = vpop.f32.mrb[0].mxu0
      %v1411 = vadd.f32 0.0, %v1410
      %v1412 = vpop.f32.mrb[0].mxu0
      %1413 = vmatprep.mubr.f32.mxu0 0.0
      %1414 = vmatmul.mubr.f32.gmra.mrb[0].mxu0 %v1222
      %v1415 = vpop.f32.mrb[0].mxu0
      %v1416 = vadd.f32 0.0, %v1415
      %v1417 = vpop.f32.mrb[0].mxu0
      %1418 = vmatprep.mubr.f32.mxu0 0.0
      %1419 = vmatmul.mubr.f32.gmra.mrb[0].mxu0 %v1224
      %v1420 = vpop.f32.mrb[0].mxu0
      %v1421 = vadd.f32 0.0, %v1420
      %v1422 = vpop.f32.mrb[0].mxu0
      %1423 = vmatprep.mubr.f32.mxu0 0.0
      %1424 = vmatmul.mubr.f32.gmra.mrb[0].mxu0 %v1226
      %v1425 = vpop.f32.mrb[0].mxu0
      %v1426 = vadd.f32 0.0, %v1425
      %v1427 = vpop.f32.mrb[0].mxu0
      %1428 = vmatprep.mubr.f32.mxu0 0.0
      %1429 = vmatmul.mubr.f32.gmra.mrb[0].mxu0 %v1228
      %v1430 = vpop.f32.mrb[0].mxu0
      %v1431 = vadd.f32 0.0, %v1430
      %v1432 = vpop.f32.mrb[0].mxu0
      %1433 = vmatprep.mubr.f32.mxu0 0.0
      %1434 = vmatmul.mubr.f32.gmra.mrb[0].mxu0 %v1230
      %v1435 = vpop.f32.mrb[0].mxu0
      %v1436 = vadd.f32 0.0, %v1435
      %v1437 = vpop.f32.mrb[0].mxu0
      %1438 = vmatprep.mubr.f32.mxu0 0.0
      %1439 = vmatmul.mubr.f32.gmra.mrb[0].mxu0 %v1232
      %v1440 = vpop.f32.mrb[0].mxu0
      %v1441 = vadd.f32 0.0, %v1440
      %v1442 = vpop.f32.mrb[0].mxu0
      %1443 = vmatprep.mubr.f32.mxu0 0.0
      %1444 = vmatmul.mubr.f32.gmra.mrb[0].mxu0 %v1234
      %v1445 = vpop.f32.mrb[0].mxu0
      %v1446 = vadd.f32 0.0, %v1445
      %v1447 = vpop.f32.mrb[0].mxu0
      %1448 = vmatprep.mubr.f32.mxu0 0.0
      %1449 = vmatmul.mubr.f32.gmra.mrb[0].mxu0 %v1236
      %v1450 = vpop.f32.mrb[0].mxu0
      %v1451 = vadd.f32 0.0, %v1450
      %v1452 = vpop.f32.mrb[0].mxu0
      %1453 = vmatprep.mubr.f32.mxu0 0.0
      %1454 = vmatmul.mubr.f32.gmra.mrb[0].mxu0 %v1238
      %v1455 = vpop.f32.mrb[0].mxu0
      %v1456 = vadd.f32 0.0, %v1455
      %v1457 = vpop.f32.mrb[0].mxu0
      %1458 = vmatprep.mubr.f32.mxu0 0.0
      %1459 = vmatmul.mubr.f32.gmra.mrb[0].mxu0 %v1240
      %v1460 = vpop.f32.mrb[0].mxu0
      %v1461 = vadd.f32 0.0, %v1460
      %v1462 = vpop.f32.mrb[0].mxu0
      %1463 = vmatprep.mubr.f32.mxu0 0.0
      %1464 = vmatmul.mubr.f32.gmra.mrb[0].mxu0 %v1242
      %v1465 = vpop.f32.mrb[0].mxu0
      %v1466 = vadd.f32 0.0, %v1465
      %v1467 = vpop.f32.mrb[0].mxu0
      %1468 = vdwg.mxu0
      %v1469 = vmax.f32 %v1311, 0.0
      %v1470 = vmax.f32 %v1316, 0.0
      %v1471 = vmax.f32 %v1321, 0.0
      %v1472 = vmax.f32 %v1326, 0.0
      %v1473 = vmax.f32 %v1331, 0.0
      %v1474 = vmax.f32 %v1336, 0.0
      %v1475 = vmax.f32 %v1341, 0.0
      %v1476 = vmax.f32 %v1346, 0.0
      %v1477 = vmax.f32 %v1351, 0.0
      %v1478 = vmax.f32 %v1356, 0.0
      %v1479 = vmax.f32 %v1361, 0.0
      %v1480 = vmax.f32 %v1366, 0.0
      %v1481 = vmax.f32 %v1371, 0.0
      %v1482 = vmax.f32 %v1376, 0.0
      %v1483 = vmax.f32 %v1381, 0.0
      %v1484 = vmax.f32 %v1386, 0.0
      %v1485 = vmax.f32 %v1391, 0.0
      %v1486 = vmax.f32 %v1396, 0.0
      %v1487 = vmax.f32 %v1401, 0.0
      %v1488 = vmax.f32 %v1406, 0.0
      %v1489 = vmax.f32 %v1411, 0.0
      %v1490 = vmax.f32 %v1416, 0.0
      %v1491 = vmax.f32 %v1421, 0.0
      %v1492 = vmax.f32 %v1426, 0.0
      %v1493 = vmax.f32 %v1431, 0.0
      %v1494 = vmax.f32 %v1436, 0.0
      %v1495 = vmax.f32 %v1441, 0.0
      %v1496 = vmax.f32 %v1446, 0.0
      %v1497 = vmax.f32 %v1451, 0.0
      %v1498 = vmax.f32 %v1456, 0.0
      %v1499 = vmax.f32 %v1461, 0.0
      %v1500 = vmax.f32 %v1466, 0.0
      %v1501 = vand.u32 2147483647, %v1311
      %v1502 = vand.u32 2147483647, %v1316
      %v1503 = vand.u32 2147483647, %v1321
      %v1504 = vand.u32 2147483647, %v1326
      %v1505 = vand.u32 2147483647, %v1331
      %v1506 = vand.u32 2147483647, %v1336
      %v1507 = vand.u32 2147483647, %v1341
      %v1508 = vand.u32 2147483647, %v1346
      %v1509 = vand.u32 2147483647, %v1351
      %v1510 = vand.u32 2147483647, %v1356
      %v1511 = vand.u32 2147483647, %v1361
      %v1512 = vand.u32 2147483647, %v1366
      %v1513 = vand.u32 2147483647, %v1371
      %v1514 = vand.u32 2147483647, %v1376
      %v1515 = vand.u32 2147483647, %v1381
      %v1516 = vand.u32 2147483647, %v1386
      %v1517 = vand.u32 2147483647, %v1391
      %v1518 = vand.u32 2147483647, %v1396
      %v1519 = vand.u32 2147483647, %v1401
      %v1520 = vand.u32 2147483647, %v1406
      %v1521 = vand.u32 2147483647, %v1411
      %v1522 = vand.u32 2147483647, %v1416
      %v1523 = vand.u32 2147483647, %v1421
      %v1524 = vand.u32 2147483647, %v1426
      %v1525 = vand.u32 2147483647, %v1431
      %v1526 = vand.u32 2147483647, %v1436
      %v1527 = vand.u32 2147483647, %v1441
      %v1528 = vand.u32 2147483647, %v1446
      %v1529 = vand.u32 2147483647, %v1451
      %v1530 = vand.u32 2147483647, %v1456
      %v1531 = vand.u32 2147483647, %v1461
      %v1532 = vand.u32 2147483647, %v1466
      %v1533 = vsub.f32 0.0, %v1501
      %v1534 = vsub.f32 0.0, %v1502
      %v1535 = vsub.f32 0.0, %v1503
      %v1536 = vsub.f32 0.0, %v1504
      %v1537 = vsub.f32 0.0, %v1505
      %v1538 = vsub.f32 0.0, %v1506
      %v1539 = vsub.f32 0.0, %v1507
      %v1540 = vsub.f32 0.0, %v1508
      %v1541 = vsub.f32 0.0, %v1509
      %v1542 = vsub.f32 0.0, %v1510
      %v1543 = vsub.f32 0.0, %v1511
      %v1544 = vsub.f32 0.0, %v1512
      %v1545 = vsub.f32 0.0, %v1513
      %v1546 = vsub.f32 0.0, %v1514
      %v1547 = vsub.f32 0.0, %v1515
      %v1548 = vsub.f32 0.0, %v1516
      %v1549 = vsub.f32 0.0, %v1517
      %v1550 = vsub.f32 0.0, %v1518
      %v1551 = vsub.f32 0.0, %v1519
      %v1552 = vsub.f32 0.0, %v1520
      %v1553 = vsub.f32 0.0, %v1521
      %v1554 = vsub.f32 0.0, %v1522
      %v1555 = vsub.f32 0.0, %v1523
      %v1556 = vsub.f32 0.0, %v1524
      %v1557 = vsub.f32 0.0, %v1525
      %v1558 = vsub.f32 0.0, %v1526
      %v1559 = vsub.f32 0.0, %v1527
      %v1560 = vsub.f32 0.0, %v1528
      %v1561 = vsub.f32 0.0, %v1529
      %v1562 = vsub.f32 0.0, %v1530
      %v1563 = vsub.f32 0.0, %v1531
      %v1564 = vsub.f32 0.0, %v1532
      %v1565 = vmul.f32 %v1533, 1.442695
      %v1566 = vpow.pop %v1565
      %v1567 = vmul.f32 %v1534, 1.442695
      %v1568 = vpow.pop %v1567
      %v1569 = vmul.f32 %v1535, 1.442695
      %v1570 = vpow.pop %v1569
      %v1571 = vmul.f32 %v1536, 1.442695
      %v1572 = vpow.pop %v1571
      %v1573 = vmul.f32 %v1537, 1.442695
      %v1574 = vpow.pop %v1573
      %v1575 = vmul.f32 %v1538, 1.442695
      %v1576 = vpow.pop %v1575
      %v1577 = vmul.f32 %v1539, 1.442695
      %v1578 = vpow.pop %v1577
      %v1579 = vmul.f32 %v1540, 1.442695
      %v1580 = vpow.pop %v1579
      %v1581 = vmul.f32 %v1541, 1.442695
      %v1582 = vpow.pop %v1581
      %v1583 = vmul.f32 %v1542, 1.442695
      %v1584 = vpow.pop %v1583
      %v1585 = vmul.f32 %v1543, 1.442695
      %v1586 = vpow.pop %v1585
      %v1587 = vmul.f32 %v1544, 1.442695
      %v1588 = vpow.pop %v1587
      %v1589 = vmul.f32 %v1545, 1.442695
      %v1590 = vpow.pop %v1589
      %v1591 = vmul.f32 %v1546, 1.442695
      %v1592 = vpow.pop %v1591
      %v1593 = vmul.f32 %v1547, 1.442695
      %v1594 = vpow.pop %v1593
      %v1595 = vmul.f32 %v1548, 1.442695
      %v1596 = vpow.pop %v1595
      %v1597 = vmul.f32 %v1549, 1.442695
      %v1598 = vpow.pop %v1597
      %v1599 = vmul.f32 %v1550, 1.442695
      %v1600 = vpow.pop %v1599
      %v1601 = vmul.f32 %v1551, 1.442695
      %v1602 = vpow.pop %v1601
      %v1603 = vmul.f32 %v1552, 1.442695
      %v1604 = vpow.pop %v1603
      %v1605 = vmul.f32 %v1553, 1.442695
      %v1606 = vpow.pop %v1605
      %v1607 = vmul.f32 %v1554, 1.442695
      %v1608 = vpow.pop %v1607
      %v1609 = vmul.f32 %v1555, 1.442695
      %v1610 = vpow.pop %v1609
      %v1611 = vmul.f32 %v1556, 1.442695
      %v1612 = vpow.pop %v1611
      %v1613 = vmul.f32 %v1557, 1.442695
      %v1614 = vpow.pop %v1613
      %v1615 = vmul.f32 %v1558, 1.442695
      %v1616 = vpow.pop %v1615
      %v1617 = vmul.f32 %v1559, 1.442695
      %v1618 = vpow.pop %v1617
      %v1619 = vmul.f32 %v1560, 1.442695
      %v1620 = vpow.pop %v1619
      %v1621 = vmul.f32 %v1561, 1.442695
      %v1622 = vpow.pop %v1621
      %v1623 = vmul.f32 %v1562, 1.442695
      %v1624 = vpow.pop %v1623
      %v1625 = vmul.f32 %v1563, 1.442695
      %v1626 = vpow.pop %v1625
      %v1627 = vmul.f32 %v1564, 1.442695
      %v1628 = vpow.pop %v1627
      %v1629 = vadd.f32 %v1566, 1.0
      %v1630 = vadd.f32 %v1568, 1.0
      %v1631 = vadd.f32 %v1570, 1.0
      %v1632 = vadd.f32 %v1572, 1.0
      %v1633 = vadd.f32 %v1574, 1.0
      %v1634 = vadd.f32 %v1576, 1.0
      %v1635 = vadd.f32 %v1578, 1.0
      %v1636 = vadd.f32 %v1580, 1.0
      %v1637 = vadd.f32 %v1582, 1.0
      %v1638 = vadd.f32 %v1584, 1.0
      %v1639 = vadd.f32 %v1586, 1.0
      %v1640 = vadd.f32 %v1588, 1.0
      %v1641 = vadd.f32 %v1590, 1.0
      %v1642 = vadd.f32 %v1592, 1.0
      %v1643 = vadd.f32 %v1594, 1.0
      %v1644 = vadd.f32 %v1596, 1.0
      %v1645 = vadd.f32 %v1598, 1.0
      %v1646 = vadd.f32 %v1600, 1.0
      %v1647 = vadd.f32 %v1602, 1.0
      %v1648 = vadd.f32 %v1604, 1.0
      %v1649 = vadd.f32 %v1606, 1.0
      %v1650 = vadd.f32 %v1608, 1.0
      %v1651 = vadd.f32 %v1610, 1.0
      %v1652 = vadd.f32 %v1612, 1.0
      %v1653 = vadd.f32 %v1614, 1.0
      %v1654 = vadd.f32 %v1616, 1.0
      %v1655 = vadd.f32 %v1618, 1.0
      %v1656 = vadd.f32 %v1620, 1.0
      %v1657 = vadd.f32 %v1622, 1.0
      %v1658 = vadd.f32 %v1624, 1.0
      %v1659 = vadd.f32 %v1626, 1.0
      %v1660 = vadd.f32 %v1628, 1.0
      %v1661 = vlog2.pop %v1629
      %v1662 = vmul.f32 %v1661, 0.6931472
      %v1663 = vlog2.pop %v1630
      %v1664 = vmul.f32 %v1663, 0.6931472
      %v1665 = vlog2.pop %v1631
      %v1666 = vmul.f32 %v1665, 0.6931472
      %v1667 = vlog2.pop %v1632
      %v1668 = vmul.f32 %v1667, 0.6931472
      %v1669 = vlog2.pop %v1633
      %v1670 = vmul.f32 %v1669, 0.6931472
      %v1671 = vlog2.pop %v1634
      %v1672 = vmul.f32 %v1671, 0.6931472
      %v1673 = vlog2.pop %v1635
      %v1674 = vmul.f32 %v1673, 0.6931472
      %v1675 = vlog2.pop %v1636
      %v1676 = vmul.f32 %v1675, 0.6931472
      %v1677 = vlog2.pop %v1637
      %v1678 = vmul.f32 %v1677, 0.6931472
      %v1679 = vlog2.pop %v1638
      %v1680 = vmul.f32 %v1679, 0.6931472
      %v1681 = vlog2.pop %v1639
      %v1682 = vmul.f32 %v1681, 0.6931472
      %v1683 = vlog2.pop %v1640
      %v1684 = vmul.f32 %v1683, 0.6931472
      %v1685 = vlog2.pop %v1641
      %v1686 = vmul.f32 %v1685, 0.6931472
      %v1687 = vlog2.pop %v1642
      %v1688 = vmul.f32 %v1687, 0.6931472
      %v1689 = vlog2.pop %v1643
      %v1690 = vmul.f32 %v1689, 0.6931472
      %v1691 = vlog2.pop %v1644
      %v1692 = vmul.f32 %v1691, 0.6931472
      %v1693 = vlog2.pop %v1645
      %v1694 = vmul.f32 %v1693, 0.6931472
      %v1695 = vlog2.pop %v1646
      %v1696 = vmul.f32 %v1695, 0.6931472
      %v1697 = vlog2.pop %v1647
      %v1698 = vmul.f32 %v1697, 0.6931472
      %v1699 = vlog2.pop %v1648
      %v1700 = vmul.f32 %v1699, 0.6931472
      %v1701 = vlog2.pop %v1649
      %v1702 = vmul.f32 %v1701, 0.6931472
      %v1703 = vlog2.pop %v1650
      %v1704 = vmul.f32 %v1703, 0.6931472
      %v1705 = vlog2.pop %v1651
      %v1706 = vmul.f32 %v1705, 0.6931472
      %v1707 = vlog2.pop %v1652
      %v1708 = vmul.f32 %v1707, 0.6931472
      %v1709 = vlog2.pop %v1653
      %v1710 = vmul.f32 %v1709, 0.6931472
      %v1711 = vlog2.pop %v1654
      %v1712 = vmul.f32 %v1711, 0.6931472
      %v1713 = vlog2.pop %v1655
      %v1714 = vmul.f32 %v1713, 0.6931472
      %v1715 = vlog2.pop %v1656
      %v1716 = vmul.f32 %v1715, 0.6931472
      %v1717 = vlog2.pop %v1657
      %v1718 = vmul.f32 %v1717, 0.6931472
      %v1719 = vlog2.pop %v1658
      %v1720 = vmul.f32 %v1719, 0.6931472
      %v1721 = vlog2.pop %v1659
      %v1722 = vmul.f32 %v1721, 0.6931472
      %v1723 = vlog2.pop %v1660
      %v1724 = vmul.f32 %v1723, 0.6931472
      %v1725 = vadd.f32 %v1469, %v1662
      %v1726 = vadd.f32 %v1470, %v1664
      %v1727 = vadd.f32 %v1471, %v1666
      %v1728 = vadd.f32 %v1472, %v1668
      %v1729 = vadd.f32 %v1473, %v1670
      %v1730 = vadd.f32 %v1474, %v1672
      %v1731 = vadd.f32 %v1475, %v1674
      %v1732 = vadd.f32 %v1476, %v1676
      %v1733 = vadd.f32 %v1477, %v1678
      %v1734 = vadd.f32 %v1478, %v1680
      %v1735 = vadd.f32 %v1479, %v1682
      %v1736 = vadd.f32 %v1480, %v1684
      %v1737 = vadd.f32 %v1481, %v1686
      %v1738 = vadd.f32 %v1482, %v1688
      %v1739 = vadd.f32 %v1483, %v1690
      %v1740 = vadd.f32 %v1484, %v1692
      %v1741 = vadd.f32 %v1485, %v1694
      %v1742 = vadd.f32 %v1486, %v1696
      %v1743 = vadd.f32 %v1487, %v1698
      %v1744 = vadd.f32 %v1488, %v1700
      %v1745 = vadd.f32 %v1489, %v1702
      %v1746 = vadd.f32 %v1490, %v1704
      %v1747 = vadd.f32 %v1491, %v1706
      %v1748 = vadd.f32 %v1492, %v1708
      %v1749 = vadd.f32 %v1493, %v1710
      %v1750 = vadd.f32 %v1494, %v1712
      %v1751 = vadd.f32 %v1495, %v1714
      %v1752 = vadd.f32 %v1496, %v1716
      %v1753 = vadd.f32 %v1497, %v1718
      %v1754 = vadd.f32 %v1498, %v1720
      %v1755 = vadd.f32 %v1499, %v1722
      %v1756 = vadd.f32 %v1500, %v1724
      %v1757 = vsub.f32 %v1725, 0.6931472
      %v1758 = vsub.f32 %v1726, 0.6931472
      %v1759 = vsub.f32 %v1727, 0.6931472
      %v1760 = vsub.f32 %v1728, 0.6931472
      %v1761 = vsub.f32 %v1729, 0.6931472
      %v1762 = vsub.f32 %v1730, 0.6931472
      %v1763 = vsub.f32 %v1731, 0.6931472
      %v1764 = vsub.f32 %v1732, 0.6931472
      %v1765 = vsub.f32 %v1733, 0.6931472
      %v1766 = vsub.f32 %v1734, 0.6931472
      %v1767 = vsub.f32 %v1735, 0.6931472
      %v1768 = vsub.f32 %v1736, 0.6931472
      %v1769 = vsub.f32 %v1737, 0.6931472
      %v1770 = vsub.f32 %v1738, 0.6931472
      %v1771 = vsub.f32 %v1739, 0.6931472
      %v1772 = vsub.f32 %v1740, 0.6931472
      %v1773 = vsub.f32 %v1741, 0.6931472
      %v1774 = vsub.f32 %v1742, 0.6931472
      %v1775 = vsub.f32 %v1743, 0.6931472
      %v1776 = vsub.f32 %v1744, 0.6931472
      %v1777 = vsub.f32 %v1745, 0.6931472
      %v1778 = vsub.f32 %v1746, 0.6931472
      %v1779 = vsub.f32 %v1747, 0.6931472
      %v1780 = vsub.f32 %v1748, 0.6931472
      %v1781 = vsub.f32 %v1749, 0.6931472
      %v1782 = vsub.f32 %v1750, 0.6931472
      %v1783 = vsub.f32 %v1751, 0.6931472
      %v1784 = vsub.f32 %v1752, 0.6931472
      %v1785 = vsub.f32 %v1753, 0.6931472
      %v1786 = vsub.f32 %v1754, 0.6931472
      %v1787 = vsub.f32 %v1755, 0.6931472
      %v1788 = vsub.f32 %v1756, 0.6931472
      %1789 = vrot.lane.b32.xlu0 %v500, 8
      %v1790 = vpop.permute.xlu0 %1789
      %1791 = vrot.lane.b32.xlu0 %v501, 8
      %v1792 = vpop.permute.xlu0 %1791
      %1793 = vrot.lane.b32.xlu0 %v502, 8
      %v1794 = vpop.permute.xlu0 %1793
      %1795 = vrot.lane.b32.xlu0 %v503, 8
      %v1796 = vpop.permute.xlu0 %1795
      %1797 = vrot.lane.b32.xlu0 %v504, 8
      %v1798 = vpop.permute.xlu0 %1797
      %1799 = vrot.lane.b32.xlu0 %v505, 8
      %v1800 = vpop.permute.xlu0 %1799
      %1801 = vrot.lane.b32.xlu0 %v506, 8
      %v1802 = vpop.permute.xlu0 %1801
      %1803 = vrot.lane.b32.xlu0 %v507, 8
      %v1804 = vpop.permute.xlu0 %1803
      %1805 = vrot.lane.b32.xlu0 %v508, 8
      %v1806 = vpop.permute.xlu0 %1805
      %1807 = vrot.lane.b32.xlu0 %v509, 8
      %v1808 = vpop.permute.xlu0 %1807
      %1809 = vrot.lane.b32.xlu0 %v510, 8
      %v1810 = vpop.permute.xlu0 %1809
      %1811 = vrot.lane.b32.xlu0 %v511, 8
      %v1812 = vpop.permute.xlu0 %1811
      %1813 = vrot.lane.b32.xlu0 %v512, 8
      %v1814 = vpop.permute.xlu0 %1813
      %1815 = vrot.lane.b32.xlu0 %v513, 8
      %v1816 = vpop.permute.xlu0 %1815
      %1817 = vrot.lane.b32.xlu0 %v514, 8
      %v1818 = vpop.permute.xlu0 %1817
      %1819 = vrot.lane.b32.xlu0 %v515, 8
      %v1820 = vpop.permute.xlu0 %1819
      %1821 = vrot.lane.b32.xlu0 %v516, 8
      %v1822 = vpop.permute.xlu0 %1821
      %1823 = vrot.lane.b32.xlu0 %v517, 8
      %v1824 = vpop.permute.xlu0 %1823
      %1825 = vrot.lane.b32.xlu0 %v518, 8
      %v1826 = vpop.permute.xlu0 %1825
      %1827 = vrot.lane.b32.xlu0 %v519, 8
      %v1828 = vpop.permute.xlu0 %1827
      %1829 = vrot.lane.b32.xlu0 %v520, 8
      %v1830 = vpop.permute.xlu0 %1829
      %1831 = vrot.lane.b32.xlu0 %v521, 8
      %v1832 = vpop.permute.xlu0 %1831
      %1833 = vrot.lane.b32.xlu0 %v522, 8
      %v1834 = vpop.permute.xlu0 %1833
      %1835 = vrot.lane.b32.xlu0 %v523, 8
      %v1836 = vpop.permute.xlu0 %1835
      %1837 = vrot.lane.b32.xlu0 %v524, 8
      %v1838 = vpop.permute.xlu0 %1837
      %1839 = vrot.lane.b32.xlu0 %v525, 8
      %v1840 = vpop.permute.xlu0 %1839
      %1841 = vrot.lane.b32.xlu0 %v526, 8
      %v1842 = vpop.permute.xlu0 %1841
      %1843 = vrot.lane.b32.xlu0 %v527, 8
      %v1844 = vpop.permute.xlu0 %1843
      %1845 = vrot.lane.b32.xlu0 %v528, 8
      %v1846 = vpop.permute.xlu0 %1845
      %1847 = vrot.lane.b32.xlu0 %v529, 8
      %v1848 = vpop.permute.xlu0 %1847
      %1849 = vrot.lane.b32.xlu0 %v530, 8
      %v1850 = vpop.permute.xlu0 %1849
      %1851 = vrot.lane.b32.xlu0 %v531, 8
      %v1852 = vpop.permute.xlu0 %1851
      %v1885 = vsel %vm1179, %v1757, %v1790
      %v1886 = vsel %vm1179, %v1758, %v1792
      %v1887 = vsel %vm1179, %v1759, %v1794
      %v1888 = vsel %vm1179, %v1760, %v1796
      %v1889 = vsel %vm1179, %v1761, %v1798
      %v1890 = vsel %vm1179, %v1762, %v1800
      %v1891 = vsel %vm1179, %v1763, %v1802
      %v1892 = vsel %vm1179, %v1764, %v1804
      %v1893 = vsel %vm1179, %v1765, %v1806
      %v1894 = vsel %vm1179, %v1766, %v1808
      %v1895 = vsel %vm1179, %v1767, %v1810
      %v1896 = vsel %vm1179, %v1768, %v1812
      %v1897 = vsel %vm1179, %v1769, %v1814
      %v1898 = vsel %vm1179, %v1770, %v1816
      %v1899 = vsel %vm1179, %v1771, %v1818
      %v1900 = vsel %vm1179, %v1772, %v1820
      %v1901 = vsel %vm1179, %v1773, %v1822
      %v1902 = vsel %vm1179, %v1774, %v1824
      %v1903 = vsel %vm1179, %v1775, %v1826
      %v1904 = vsel %vm1179, %v1776, %v1828
      %v1905 = vsel %vm1179, %v1777, %v1830
      %v1906 = vsel %vm1179, %v1778, %v1832
      %v1907 = vsel %vm1179, %v1779, %v1834
      %v1908 = vsel %vm1179, %v1780, %v1836
      %v1909 = vsel %vm1179, %v1781, %v1838
      %v1910 = vsel %vm1179, %v1782, %v1840
      %v1911 = vsel %vm1179, %v1783, %v1842
      %v1912 = vsel %vm1179, %v1784, %v1844
      %v1913 = vsel %vm1179, %v1785, %v1846
      %v1914 = vsel %vm1179, %v1786, %v1848
      %v1915 = vsel %vm1179, %v1787, %v1850
      %v1916 = vsel %vm1179, %v1788, %v1852
      %v1917 = vpack.c.bf16 %v1886, %v1885
      %v1918 = vpack.c.bf16 %v1888, %v1887
      %v1919 = vpack.c.bf16 %v1890, %v1889
      %v1920 = vpack.c.bf16 %v1892, %v1891
      %v1921 = vpack.c.bf16 %v1894, %v1893
      %v1922 = vpack.c.bf16 %v1896, %v1895
      %v1923 = vpack.c.bf16 %v1898, %v1897
      %v1924 = vpack.c.bf16 %v1900, %v1899
      %v1925 = vpack.c.bf16 %v1902, %v1901
      %v1926 = vpack.c.bf16 %v1904, %v1903
      %v1927 = vpack.c.bf16 %v1906, %v1905
      %v1928 = vpack.c.bf16 %v1908, %v1907
      %v1929 = vpack.c.bf16 %v1910, %v1909
      %v1930 = vpack.c.bf16 %v1912, %v1911
      %v1931 = vpack.c.bf16 %v1914, %v1913
      %v1932 = vpack.c.bf16 %v1916, %v1915
      %v1933 = vld [vmem:[%s8] sm:$0xf]
      %v1934 = vld [vmem:[%s8 + $0x4] sm:$0x3]
      %v1937 = vunpack.c.l.b16 %v1933
      %v1938 = vunpack.c.l.b16 %v1934
      %v1939 = vpack.c.b16 %v1938, %v1937
      %vm1940 = vcmask 97280
      %v1942 = vsel %vm1940, %v1917, 0
      %v1945 = vsel %vm1940, %v1918, 0
      %v1948 = vsel %vm1940, %v1919, 0
      %v1951 = vsel %vm1940, %v1920, 0
      %v1954 = vsel %vm1940, %v1921, 0
      %v1957 = vsel %vm1940, %v1922, 0
      %v1960 = vsel %vm1940, %v1923, 0
      %v1963 = vsel %vm1940, %v1924, 0
      %v1966 = vsel %vm1940, %v1925, 0
      %v1969 = vsel %vm1940, %v1926, 0
      %v1972 = vsel %vm1940, %v1927, 0
      %v1975 = vsel %vm1940, %v1928, 0
      %v1978 = vsel %vm1940, %v1929, 0
      %v1981 = vsel %vm1940, %v1930, 0
      %v1984 = vsel %vm1940, %v1931, 0
      %v1987 = vsel %vm1940, %v1932, 0
      %vm1989 = vcmask 1045504
      %v1991 = vsel %vm1989, %v1939, 0
      %1993 = vmatprep.subr.bf16.mxu0 0
      %1994 = vmatpush1.bf16.msra.mxu0 %v1991
      %1995 = vmatprep.subr.bf16.mxu0 0
      %1996 = vmatpush1.bf16.msra.mxu0 0
      %1997 = vmatprep.subr.bf16.mxu0 0
      %1998 = vmatpush1.bf16.msra.mxu0 0
      %1999 = vmatprep.subr.bf16.mxu0 0
      %2000 = vmatpush1.bf16.msra.mxu0 0
      %2001 = vmatprep.subr.bf16.mxu0 0
      %2002 = vmatpush1.bf16.msra.mxu0 0
      %2003 = vmatprep.subr.bf16.mxu0 0
      %2004 = vmatpush1.bf16.msra.mxu0 0
      %2005 = vmatprep.subr.bf16.mxu0 0
      %2006 = vmatpush1.bf16.msra.mxu0 0
      %2007 = vmatprep.subr.bf16.mxu0 0
      %2008 = vmatpush1.bf16.msra.mxu0 0
      %2009 = vmatprep.subr.bf16.mxu0 0
      %2010 = vmatpush1.bf16.msra.mxu0 0
      %2011 = vmatprep.subr.bf16.mxu0 0
      %2012 = vmatpush1.bf16.msra.mxu0 0
      %2013 = vmatprep.subr.bf16.mxu0 0
      %2014 = vmatpush1.bf16.msra.mxu0 0
      %2015 = vmatprep.subr.bf16.mxu0 0
      %2016 = vmatpush1.bf16.msra.mxu0 0
      %2017 = vmatprep.subr.bf16.mxu0 0
      %2018 = vmatpush1.bf16.msra.mxu0 0
      %2019 = vmatprep.subr.bf16.mxu0 0
      %2020 = vmatpush1.bf16.msra.mxu0 0
      %2021 = vmatprep.subr.bf16.mxu0 0
      %2022 = vmatpush1.bf16.msra.mxu0 0
      %2023 = vmatprep.subr.bf16.mxu0 0
      %2024 = vmatpush1.bf16.msra.mxu0 0
      %2025 = vmatprep.mubr.bf16.mxu0 0
      %2026 = vmatmul.mubr.bf16.gmra.mrb[0].mxu0 %v1942
      %v2027 = vpop.f32.mrb[0].mxu0
      %v2028 = vadd.f32 0.0, %v2027
      %v2029 = vpop.f32.mrb[0].mxu0
      %v2030 = vpop.f32.mrb[0].mxu0
      %v2031 = vadd.f32 0.0, %v2030
      %v2032 = vpop.f32.mrb[0].mxu0
      %2033 = vmatprep.mubr.bf16.mxu0 0
      %2034 = vmatmul.mubr.bf16.gmra.mrb[0].mxu0 %v1945
      %v2035 = vpop.f32.mrb[0].mxu0
      %v2036 = vadd.f32 0.0, %v2035
      %v2037 = vpop.f32.mrb[0].mxu0
      %v2038 = vpop.f32.mrb[0].mxu0
      %v2039 = vadd.f32 0.0, %v2038
      %v2040 = vpop.f32.mrb[0].mxu0
      %2041 = vmatprep.mubr.bf16.mxu0 0
      %2042 = vmatmul.mubr.bf16.gmra.mrb[0].mxu0 %v1948
      %v2043 = vpop.f32.mrb[0].mxu0
      %v2044 = vadd.f32 0.0, %v2043
      %v2045 = vpop.f32.mrb[0].mxu0
      %v2046 = vpop.f32.mrb[0].mxu0
      %v2047 = vadd.f32 0.0, %v2046
      %v2048 = vpop.f32.mrb[0].mxu0
      %2049 = vmatprep.mubr.bf16.mxu0 0
      %2050 = vmatmul.mubr.bf16.gmra.mrb[0].mxu0 %v1951
      %v2051 = vpop.f32.mrb[0].mxu0
      %v2052 = vadd.f32 0.0, %v2051
      %v2053 = vpop.f32.mrb[0].mxu0
      %v2054 = vpop.f32.mrb[0].mxu0
      %v2055 = vadd.f32 0.0, %v2054
      %v2056 = vpop.f32.mrb[0].mxu0
      %2057 = vmatprep.mubr.bf16.mxu0 0
      %2058 = vmatmul.mubr.bf16.gmra.mrb[0].mxu0 %v1954
      %v2059 = vpop.f32.mrb[0].mxu0
      %v2060 = vadd.f32 0.0, %v2059
      %v2061 = vpop.f32.mrb[0].mxu0
      %v2062 = vpop.f32.mrb[0].mxu0
      %v2063 = vadd.f32 0.0, %v2062
      %v2064 = vpop.f32.mrb[0].mxu0
      %2065 = vmatprep.mubr.bf16.mxu0 0
      %2066 = vmatmul.mubr.bf16.gmra.mrb[0].mxu0 %v1957
      %v2067 = vpop.f32.mrb[0].mxu0
      %v2068 = vadd.f32 0.0, %v2067
      %v2069 = vpop.f32.mrb[0].mxu0
      %v2070 = vpop.f32.mrb[0].mxu0
      %v2071 = vadd.f32 0.0, %v2070
      %v2072 = vpop.f32.mrb[0].mxu0
      %2073 = vmatprep.mubr.bf16.mxu0 0
      %2074 = vmatmul.mubr.bf16.gmra.mrb[0].mxu0 %v1960
      %v2075 = vpop.f32.mrb[0].mxu0
      %v2076 = vadd.f32 0.0, %v2075
      %v2077 = vpop.f32.mrb[0].mxu0
      %v2078 = vpop.f32.mrb[0].mxu0
      %v2079 = vadd.f32 0.0, %v2078
      %v2080 = vpop.f32.mrb[0].mxu0
      %2081 = vmatprep.mubr.bf16.mxu0 0
      %2082 = vmatmul.mubr.bf16.gmra.mrb[0].mxu0 %v1963
      %v2083 = vpop.f32.mrb[0].mxu0
      %v2084 = vadd.f32 0.0, %v2083
      %v2085 = vpop.f32.mrb[0].mxu0
      %v2086 = vpop.f32.mrb[0].mxu0
      %v2087 = vadd.f32 0.0, %v2086
      %v2088 = vpop.f32.mrb[0].mxu0
      %2089 = vmatprep.mubr.bf16.mxu0 0
      %2090 = vmatmul.mubr.bf16.gmra.mrb[0].mxu0 %v1966
      %v2091 = vpop.f32.mrb[0].mxu0
      %v2092 = vadd.f32 0.0, %v2091
      %v2093 = vpop.f32.mrb[0].mxu0
      %v2094 = vpop.f32.mrb[0].mxu0
      %v2095 = vadd.f32 0.0, %v2094
      %v2096 = vpop.f32.mrb[0].mxu0
      %2097 = vmatprep.mubr.bf16.mxu0 0
      %2098 = vmatmul.mubr.bf16.gmra.mrb[0].mxu0 %v1969
      %v2099 = vpop.f32.mrb[0].mxu0
      %v2100 = vadd.f32 0.0, %v2099
      %v2101 = vpop.f32.mrb[0].mxu0
      %v2102 = vpop.f32.mrb[0].mxu0
      %v2103 = vadd.f32 0.0, %v2102
      %v2104 = vpop.f32.mrb[0].mxu0
      %2105 = vmatprep.mubr.bf16.mxu0 0
      %2106 = vmatmul.mubr.bf16.gmra.mrb[0].mxu0 %v1972
      %v2107 = vpop.f32.mrb[0].mxu0
      %v2108 = vadd.f32 0.0, %v2107
      %v2109 = vpop.f32.mrb[0].mxu0
      %v2110 = vpop.f32.mrb[0].mxu0
      %v2111 = vadd.f32 0.0, %v2110
      %v2112 = vpop.f32.mrb[0].mxu0
      %2113 = vmatprep.mubr.bf16.mxu0 0
      %2114 = vmatmul.mubr.bf16.gmra.mrb[0].mxu0 %v1975
      %v2115 = vpop.f32.mrb[0].mxu0
      %v2116 = vadd.f32 0.0, %v2115
      %v2117 = vpop.f32.mrb[0].mxu0
      %v2118 = vpop.f32.mrb[0].mxu0
      %v2119 = vadd.f32 0.0, %v2118
      %v2120 = vpop.f32.mrb[0].mxu0
      %2121 = vmatprep.mubr.bf16.mxu0 0
      %2122 = vmatmul.mubr.bf16.gmra.mrb[0].mxu0 %v1978
      %v2123 = vpop.f32.mrb[0].mxu0
      %v2124 = vadd.f32 0.0, %v2123
      %v2125 = vpop.f32.mrb[0].mxu0
      %v2126 = vpop.f32.mrb[0].mxu0
      %v2127 = vadd.f32 0.0, %v2126
      %v2128 = vpop.f32.mrb[0].mxu0
      %2129 = vmatprep.mubr.bf16.mxu0 0
      %2130 = vmatmul.mubr.bf16.gmra.mrb[0].mxu0 %v1981
      %v2131 = vpop.f32.mrb[0].mxu0
      %v2132 = vadd.f32 0.0, %v2131
      %v2133 = vpop.f32.mrb[0].mxu0
      %v2134 = vpop.f32.mrb[0].mxu0
      %v2135 = vadd.f32 0.0, %v2134
      %v2136 = vpop.f32.mrb[0].mxu0
      %2137 = vmatprep.mubr.bf16.mxu0 0
      %2138 = vmatmul.mubr.bf16.gmra.mrb[0].mxu0 %v1984
      %v2139 = vpop.f32.mrb[0].mxu0
      %v2140 = vadd.f32 0.0, %v2139
      %v2141 = vpop.f32.mrb[0].mxu0
      %v2142 = vpop.f32.mrb[0].mxu0
      %v2143 = vadd.f32 0.0, %v2142
      %v2144 = vpop.f32.mrb[0].mxu0
      %2145 = vmatprep.mubr.bf16.mxu0 0
      %2146 = vmatmul.mubr.bf16.gmra.mrb[0].mxu0 %v1987
      %v2147 = vpop.f32.mrb[0].mxu0
      %v2148 = vadd.f32 0.0, %v2147
      %v2149 = vpop.f32.mrb[0].mxu0
      %v2150 = vpop.f32.mrb[0].mxu0
      %v2151 = vadd.f32 0.0, %v2150
      %v2152 = vpop.f32.mrb[0].mxu0
      %2153 = vdwg.mxu0
      %v2154 = vmul.f32 %v2028, %v956
      %v2155 = vmul.f32 %v2031, %v959
      %v2156 = vmul.f32 %v2036, %v964
      %v2157 = vmul.f32 %v2039, %v967
      %v2158 = vmul.f32 %v2044, %v972
      %v2159 = vmul.f32 %v2047, %v975
      %v2160 = vmul.f32 %v2052, %v980
      %v2161 = vmul.f32 %v2055, %v983
      %v2162 = vmul.f32 %v2060, %v988
      %v2163 = vmul.f32 %v2063, %v991
      %v2164 = vmul.f32 %v2068, %v996
      %v2165 = vmul.f32 %v2071, %v999
      %v2166 = vmul.f32 %v2076, %v1004
      %v2167 = vmul.f32 %v2079, %v1007
      %v2168 = vmul.f32 %v2084, %v1012
      %v2169 = vmul.f32 %v2087, %v1015
      %v2170 = vmul.f32 %v2092, %v1020
      %v2171 = vmul.f32 %v2095, %v1023
      %v2172 = vmul.f32 %v2100, %v1028
      %v2173 = vmul.f32 %v2103, %v1031
      %v2174 = vmul.f32 %v2108, %v1036
      %v2175 = vmul.f32 %v2111, %v1039
      %v2176 = vmul.f32 %v2116, %v1044
      %v2177 = vmul.f32 %v2119, %v1047
      %v2178 = vmul.f32 %v2124, %v1052
      %v2179 = vmul.f32 %v2127, %v1055
      %v2180 = vmul.f32 %v2132, %v1060
      %v2181 = vmul.f32 %v2135, %v1063
      %v2182 = vmul.f32 %v2140, %v1068
      %v2183 = vmul.f32 %v2143, %v1071
      %v2184 = vmul.f32 %v2148, %v1076
      %v2185 = vmul.f32 %v2151, %v1079
      %2186 = vset.pattern.permute.xlu0 0
      %2187 = vperm.xlu0 %2186, %v500
      %v2188 = vpop.permute.xlu0 %2187
      %2190 = vset.pattern.permute.xlu0 0
      %2191 = vperm.xlu0 %2190, %v501
      %v2192 = vpop.permute.xlu0 %2191
      %2194 = vset.pattern.permute.xlu0 0
      %2195 = vperm.xlu0 %2194, %v502
      %v2196 = vpop.permute.xlu0 %2195
      %2198 = vset.pattern.permute.xlu0 0
      %2199 = vperm.xlu0 %2198, %v503
      %v2200 = vpop.permute.xlu0 %2199
      %2202 = vset.pattern.permute.xlu0 0
      %2203 = vperm.xlu0 %2202, %v504
      %v2204 = vpop.permute.xlu0 %2203
      %2206 = vset.pattern.permute.xlu0 0
      %2207 = vperm.xlu0 %2206, %v505
      %v2208 = vpop.permute.xlu0 %2207
      %2210 = vset.pattern.permute.xlu0 0
      %2211 = vperm.xlu0 %2210, %v506
      %v2212 = vpop.permute.xlu0 %2211
      %2214 = vset.pattern.permute.xlu0 0
      %2215 = vperm.xlu0 %2214, %v507
      %v2216 = vpop.permute.xlu0 %2215
      %2218 = vset.pattern.permute.xlu0 0
      %2219 = vperm.xlu0 %2218, %v508
      %v2220 = vpop.permute.xlu0 %2219
      %2222 = vset.pattern.permute.xlu0 0
      %2223 = vperm.xlu0 %2222, %v509
      %v2224 = vpop.permute.xlu0 %2223
      %2226 = vset.pattern.permute.xlu0 0
      %2227 = vperm.xlu0 %2226, %v510
      %v2228 = vpop.permute.xlu0 %2227
      %2230 = vset.pattern.permute.xlu0 0
      %2231 = vperm.xlu0 %2230, %v511
      %v2232 = vpop.permute.xlu0 %2231
      %2234 = vset.pattern.permute.xlu0 0
      %2235 = vperm.xlu0 %2234, %v512
      %v2236 = vpop.permute.xlu0 %2235
      %2238 = vset.pattern.permute.xlu0 0
      %2239 = vperm.xlu0 %2238, %v513
      %v2240 = vpop.permute.xlu0 %2239
      %2242 = vset.pattern.permute.xlu0 0
      %2243 = vperm.xlu0 %2242, %v514
      %v2244 = vpop.permute.xlu0 %2243
      %2246 = vset.pattern.permute.xlu0 0
      %2247 = vperm.xlu0 %2246, %v515
      %v2248 = vpop.permute.xlu0 %2247
      %2250 = vset.pattern.permute.xlu0 0
      %2251 = vperm.xlu0 %2250, %v516
      %v2252 = vpop.permute.xlu0 %2251
      %2254 = vset.pattern.permute.xlu0 0
      %2255 = vperm.xlu0 %2254, %v517
      %v2256 = vpop.permute.xlu0 %2255
      %2258 = vset.pattern.permute.xlu0 0
      %2259 = vperm.xlu0 %2258, %v518
      %v2260 = vpop.permute.xlu0 %2259
      %2262 = vset.pattern.permute.xlu0 0
      %2263 = vperm.xlu0 %2262, %v519
      %v2264 = vpop.permute.xlu0 %2263
      %2266 = vset.pattern.permute.xlu0 0
      %2267 = vperm.xlu0 %2266, %v520
      %v2268 = vpop.permute.xlu0 %2267
      %2270 = vset.pattern.permute.xlu0 0
      %2271 = vperm.xlu0 %2270, %v521
      %v2272 = vpop.permute.xlu0 %2271
      %2274 = vset.pattern.permute.xlu0 0
      %2275 = vperm.xlu0 %2274, %v522
      %v2276 = vpop.permute.xlu0 %2275
      %2278 = vset.pattern.permute.xlu0 0
      %2279 = vperm.xlu0 %2278, %v523
      %v2280 = vpop.permute.xlu0 %2279
      %2282 = vset.pattern.permute.xlu0 0
      %2283 = vperm.xlu0 %2282, %v524
      %v2284 = vpop.permute.xlu0 %2283
      %2286 = vset.pattern.permute.xlu0 0
      %2287 = vperm.xlu0 %2286, %v525
      %v2288 = vpop.permute.xlu0 %2287
      %2290 = vset.pattern.permute.xlu0 0
      %2291 = vperm.xlu0 %2290, %v526
      %v2292 = vpop.permute.xlu0 %2291
      %2294 = vset.pattern.permute.xlu0 0
      %2295 = vperm.xlu0 %2294, %v527
      %v2296 = vpop.permute.xlu0 %2295
      %2298 = vset.pattern.permute.xlu0 0
      %2299 = vperm.xlu0 %2298, %v528
      %v2300 = vpop.permute.xlu0 %2299
      %2302 = vset.pattern.permute.xlu0 0
      %2303 = vperm.xlu0 %2302, %v529
      %v2304 = vpop.permute.xlu0 %2303
      %2306 = vset.pattern.permute.xlu0 0
      %2307 = vperm.xlu0 %2306, %v530
      %v2308 = vpop.permute.xlu0 %2307
      %2310 = vset.pattern.permute.xlu0 0
      %2311 = vperm.xlu0 %2310, %v531
      %v2312 = vpop.permute.xlu0 %2311
      %v2314 = vmul.f32 %v2154, %v2188
      %v2315 = vmul.f32 %v2155, %v2192
      %v2316 = vmul.f32 %v2156, %v2196
      %v2317 = vmul.f32 %v2157, %v2200
      %v2318 = vmul.f32 %v2158, %v2204
      %v2319 = vmul.f32 %v2159, %v2208
      %v2320 = vmul.f32 %v2160, %v2212
      %v2321 = vmul.f32 %v2161, %v2216
      %v2322 = vmul.f32 %v2162, %v2220
      %v2323 = vmul.f32 %v2163, %v2224
      %v2324 = vmul.f32 %v2164, %v2228
      %v2325 = vmul.f32 %v2165, %v2232
      %v2326 = vmul.f32 %v2166, %v2236
      %v2327 = vmul.f32 %v2167, %v2240
      %v2328 = vmul.f32 %v2168, %v2244
      %v2329 = vmul.f32 %v2169, %v2248
      %v2330 = vmul.f32 %v2170, %v2252
      %v2331 = vmul.f32 %v2171, %v2256
      %v2332 = vmul.f32 %v2172, %v2260
      %v2333 = vmul.f32 %v2173, %v2264
      %v2334 = vmul.f32 %v2174, %v2268
      %v2335 = vmul.f32 %v2175, %v2272
      %v2336 = vmul.f32 %v2176, %v2276
      %v2337 = vmul.f32 %v2177, %v2280
      %v2338 = vmul.f32 %v2178, %v2284
      %v2339 = vmul.f32 %v2179, %v2288
      %v2340 = vmul.f32 %v2180, %v2292
      %v2341 = vmul.f32 %v2181, %v2296
      %v2342 = vmul.f32 %v2182, %v2300
      %v2343 = vmul.f32 %v2183, %v2304
      %v2344 = vmul.f32 %v2184, %v2308
      %v2345 = vmul.f32 %v2185, %v2312
      %2378 = vrot.lane.b32.xlu0 %v2028, 88
      %v2379 = vpop.permute.xlu0 %2378
      %2380 = vrot.lane.b32.xlu0 %v2031, 88
      %v2381 = vpop.permute.xlu0 %2380
      %2382 = vrot.lane.b32.xlu0 %v2036, 88
      %v2383 = vpop.permute.xlu0 %2382
      %2384 = vrot.lane.b32.xlu0 %v2039, 88
      %v2385 = vpop.permute.xlu0 %2384
      %2386 = vrot.lane.b32.xlu0 %v2044, 88
      %v2387 = vpop.permute.xlu0 %2386
      %2388 = vrot.lane.b32.xlu0 %v2047, 88
      %v2389 = vpop.permute.xlu0 %2388
      %2390 = vrot.lane.b32.xlu0 %v2052, 88
      %v2391 = vpop.permute.xlu0 %2390
      %2392 = vrot.lane.b32.xlu0 %v2055, 88
      %v2393 = vpop.permute.xlu0 %2392
      %2394 = vrot.lane.b32.xlu0 %v2060, 88
      %v2395 = vpop.permute.xlu0 %2394
      %2396 = vrot.lane.b32.xlu0 %v2063, 88
      %v2397 = vpop.permute.xlu0 %2396
      %2398 = vrot.lane.b32.xlu0 %v2068, 88
      %v2399 = vpop.permute.xlu0 %2398
      %2400 = vrot.lane.b32.xlu0 %v2071, 88
      %v2401 = vpop.permute.xlu0 %2400
      %2402 = vrot.lane.b32.xlu0 %v2076, 88
      %v2403 = vpop.permute.xlu0 %2402
      %2404 = vrot.lane.b32.xlu0 %v2079, 88
      %v2405 = vpop.permute.xlu0 %2404
      %2406 = vrot.lane.b32.xlu0 %v2084, 88
      %v2407 = vpop.permute.xlu0 %2406
      %2408 = vrot.lane.b32.xlu0 %v2087, 88
      %v2409 = vpop.permute.xlu0 %2408
      %2410 = vrot.lane.b32.xlu0 %v2092, 88
      %v2411 = vpop.permute.xlu0 %2410
      %2412 = vrot.lane.b32.xlu0 %v2095, 88
      %v2413 = vpop.permute.xlu0 %2412
      %2414 = vrot.lane.b32.xlu0 %v2100, 88
      %v2415 = vpop.permute.xlu0 %2414
      %2416 = vrot.lane.b32.xlu0 %v2103, 88
      %v2417 = vpop.permute.xlu0 %2416
      %2418 = vrot.lane.b32.xlu0 %v2108, 88
      %v2419 = vpop.permute.xlu0 %2418
      %2420 = vrot.lane.b32.xlu0 %v2111, 88
      %v2421 = vpop.permute.xlu0 %2420
      %2422 = vrot.lane.b32.xlu0 %v2116, 88
      %v2423 = vpop.permute.xlu0 %2422
      %2424 = vrot.lane.b32.xlu0 %v2119, 88
      %v2425 = vpop.permute.xlu0 %2424
      %2426 = vrot.lane.b32.xlu0 %v2124, 88
      %v2427 = vpop.permute.xlu0 %2426
      %2428 = vrot.lane.b32.xlu0 %v2127, 88
      %v2429 = vpop.permute.xlu0 %2428
      %2430 = vrot.lane.b32.xlu0 %v2132, 88
      %v2431 = vpop.permute.xlu0 %2430
      %2432 = vrot.lane.b32.xlu0 %v2135, 88
      %v2433 = vpop.permute.xlu0 %2432
      %2434 = vrot.lane.b32.xlu0 %v2140, 88
      %v2435 = vpop.permute.xlu0 %2434
      %2436 = vrot.lane.b32.xlu0 %v2143, 88
      %v2437 = vpop.permute.xlu0 %2436
      %2438 = vrot.lane.b32.xlu0 %v2148, 88
      %v2439 = vpop.permute.xlu0 %2438
      %2440 = vrot.lane.b32.xlu0 %v2151, 88
      %v2441 = vpop.permute.xlu0 %2440
      %v2474 = vmul.f32 %v956, %v2379
      %v2475 = vmul.f32 %v959, %v2381
      %v2476 = vmul.f32 %v964, %v2383
      %v2477 = vmul.f32 %v967, %v2385
      %v2478 = vmul.f32 %v972, %v2387
      %v2479 = vmul.f32 %v975, %v2389
      %v2480 = vmul.f32 %v980, %v2391
      %v2481 = vmul.f32 %v983, %v2393
      %v2482 = vmul.f32 %v988, %v2395
      %v2483 = vmul.f32 %v991, %v2397
      %v2484 = vmul.f32 %v996, %v2399
      %v2485 = vmul.f32 %v999, %v2401
      %v2486 = vmul.f32 %v1004, %v2403
      %v2487 = vmul.f32 %v1007, %v2405
      %v2488 = vmul.f32 %v1012, %v2407
      %v2489 = vmul.f32 %v1015, %v2409
      %v2490 = vmul.f32 %v1020, %v2411
      %v2491 = vmul.f32 %v1023, %v2413
      %v2492 = vmul.f32 %v1028, %v2415
      %v2493 = vmul.f32 %v1031, %v2417
      %v2494 = vmul.f32 %v1036, %v2419
      %v2495 = vmul.f32 %v1039, %v2421
      %v2496 = vmul.f32 %v1044, %v2423
      %v2497 = vmul.f32 %v1047, %v2425
      %v2498 = vmul.f32 %v1052, %v2427
      %v2499 = vmul.f32 %v1055, %v2429
      %v2500 = vmul.f32 %v1060, %v2431
      %v2501 = vmul.f32 %v1063, %v2433
      %v2502 = vmul.f32 %v1068, %v2435
      %v2503 = vmul.f32 %v1071, %v2437
      %v2504 = vmul.f32 %v1076, %v2439
      %v2505 = vmul.f32 %v1079, %v2441
      %2538 = vrot.lane.b32.xlu0 %v2474, 120
      %v2539 = vpop.permute.xlu0 %2538
      %2540 = vrot.lane.b32.xlu0 %v2475, 120
      %v2541 = vpop.permute.xlu0 %2540
      %2542 = vrot.lane.b32.xlu0 %v2476, 120
      %v2543 = vpop.permute.xlu0 %2542
      %2544 = vrot.lane.b32.xlu0 %v2477, 120
      %v2545 = vpop.permute.xlu0 %2544
      %2546 = vrot.lane.b32.xlu0 %v2478, 120
      %v2547 = vpop.permute.xlu0 %2546
      %2548 = vrot.lane.b32.xlu0 %v2479, 120
      %v2549 = vpop.permute.xlu0 %2548
      %2550 = vrot.lane.b32.xlu0 %v2480, 120
      %v2551 = vpop.permute.xlu0 %2550
      %2552 = vrot.lane.b32.xlu0 %v2481, 120
      %v2553 = vpop.permute.xlu0 %2552
      %2554 = vrot.lane.b32.xlu0 %v2482, 120
      %v2555 = vpop.permute.xlu0 %2554
      %2556 = vrot.lane.b32.xlu0 %v2483, 120
      %v2557 = vpop.permute.xlu0 %2556
      %2558 = vrot.lane.b32.xlu0 %v2484, 120
      %v2559 = vpop.permute.xlu0 %2558
      %2560 = vrot.lane.b32.xlu0 %v2485, 120
      %v2561 = vpop.permute.xlu0 %2560
      %2562 = vrot.lane.b32.xlu0 %v2486, 120
      %v2563 = vpop.permute.xlu0 %2562
      %2564 = vrot.lane.b32.xlu0 %v2487, 120
      %v2565 = vpop.permute.xlu0 %2564
      %2566 = vrot.lane.b32.xlu0 %v2488, 120
      %v2567 = vpop.permute.xlu0 %2566
      %2568 = vrot.lane.b32.xlu0 %v2489, 120
      %v2569 = vpop.permute.xlu0 %2568
      %2570 = vrot.lane.b32.xlu0 %v2490, 120
      %v2571 = vpop.permute.xlu0 %2570
      %2572 = vrot.lane.b32.xlu0 %v2491, 120
      %v2573 = vpop.permute.xlu0 %2572
      %2574 = vrot.lane.b32.xlu0 %v2492, 120
      %v2575 = vpop.permute.xlu0 %2574
      %2576 = vrot.lane.b32.xlu0 %v2493, 120
      %v2577 = vpop.permute.xlu0 %2576
      %2578 = vrot.lane.b32.xlu0 %v2494, 120
      %v2579 = vpop.permute.xlu0 %2578
      %2580 = vrot.lane.b32.xlu0 %v2495, 120
      %v2581 = vpop.permute.xlu0 %2580
      %2582 = vrot.lane.b32.xlu0 %v2496, 120
      %v2583 = vpop.permute.xlu0 %2582
      %2584 = vrot.lane.b32.xlu0 %v2497, 120
      %v2585 = vpop.permute.xlu0 %2584
      %2586 = vrot.lane.b32.xlu0 %v2498, 120
      %v2587 = vpop.permute.xlu0 %2586
      %2588 = vrot.lane.b32.xlu0 %v2499, 120
      %v2589 = vpop.permute.xlu0 %2588
      %2590 = vrot.lane.b32.xlu0 %v2500, 120
      %v2591 = vpop.permute.xlu0 %2590
      %2592 = vrot.lane.b32.xlu0 %v2501, 120
      %v2593 = vpop.permute.xlu0 %2592
      %2594 = vrot.lane.b32.xlu0 %v2502, 120
      %v2595 = vpop.permute.xlu0 %2594
      %2596 = vrot.lane.b32.xlu0 %v2503, 120
      %v2597 = vpop.permute.xlu0 %2596
      %2598 = vrot.lane.b32.xlu0 %v2504, 120
      %v2599 = vpop.permute.xlu0 %2598
      %2600 = vrot.lane.b32.xlu0 %v2505, 120
      %v2601 = vpop.permute.xlu0 %2600
      %v2634 = vadd.f32 %v2474, %v2539
      %v2635 = vadd.f32 %v2475, %v2541
      %v2636 = vadd.f32 %v2476, %v2543
      %v2637 = vadd.f32 %v2477, %v2545
      %v2638 = vadd.f32 %v2478, %v2547
      %v2639 = vadd.f32 %v2479, %v2549
      %v2640 = vadd.f32 %v2480, %v2551
      %v2641 = vadd.f32 %v2481, %v2553
      %v2642 = vadd.f32 %v2482, %v2555
      %v2643 = vadd.f32 %v2483, %v2557
      %v2644 = vadd.f32 %v2484, %v2559
      %v2645 = vadd.f32 %v2485, %v2561
      %v2646 = vadd.f32 %v2486, %v2563
      %v2647 = vadd.f32 %v2487, %v2565
      %v2648 = vadd.f32 %v2488, %v2567
      %v2649 = vadd.f32 %v2489, %v2569
      %v2650 = vadd.f32 %v2490, %v2571
      %v2651 = vadd.f32 %v2491, %v2573
      %v2652 = vadd.f32 %v2492, %v2575
      %v2653 = vadd.f32 %v2493, %v2577
      %v2654 = vadd.f32 %v2494, %v2579
      %v2655 = vadd.f32 %v2495, %v2581
      %v2656 = vadd.f32 %v2496, %v2583
      %v2657 = vadd.f32 %v2497, %v2585
      %v2658 = vadd.f32 %v2498, %v2587
      %v2659 = vadd.f32 %v2499, %v2589
      %v2660 = vadd.f32 %v2500, %v2591
      %v2661 = vadd.f32 %v2501, %v2593
      %v2662 = vadd.f32 %v2502, %v2595
      %v2663 = vadd.f32 %v2503, %v2597
      %v2664 = vadd.f32 %v2504, %v2599
      %v2665 = vadd.f32 %v2505, %v2601
      %2666 = vrot.lane.b32.xlu0 %v2474, 112
      %v2667 = vpop.permute.xlu0 %2666
      %2668 = vrot.lane.b32.xlu0 %v2475, 112
      %v2669 = vpop.permute.xlu0 %2668
      %2670 = vrot.lane.b32.xlu0 %v2476, 112
      %v2671 = vpop.permute.xlu0 %2670
      %2672 = vrot.lane.b32.xlu0 %v2477, 112
      %v2673 = vpop.permute.xlu0 %2672
      %2674 = vrot.lane.b32.xlu0 %v2478, 112
      %v2675 = vpop.permute.xlu0 %2674
      %2676 = vrot.lane.b32.xlu0 %v2479, 112
      %v2677 = vpop.permute.xlu0 %2676
      %2678 = vrot.lane.b32.xlu0 %v2480, 112
      %v2679 = vpop.permute.xlu0 %2678
      %2680 = vrot.lane.b32.xlu0 %v2481, 112
      %v2681 = vpop.permute.xlu0 %2680
      %2682 = vrot.lane.b32.xlu0 %v2482, 112
      %v2683 = vpop.permute.xlu0 %2682
      %2684 = vrot.lane.b32.xlu0 %v2483, 112
      %v2685 = vpop.permute.xlu0 %2684
      %2686 = vrot.lane.b32.xlu0 %v2484, 112
      %v2687 = vpop.permute.xlu0 %2686
      %2688 = vrot.lane.b32.xlu0 %v2485, 112
      %v2689 = vpop.permute.xlu0 %2688
      %2690 = vrot.lane.b32.xlu0 %v2486, 112
      %v2691 = vpop.permute.xlu0 %2690
      %2692 = vrot.lane.b32.xlu0 %v2487, 112
      %v2693 = vpop.permute.xlu0 %2692
      %2694 = vrot.lane.b32.xlu0 %v2488, 112
      %v2695 = vpop.permute.xlu0 %2694
      %2696 = vrot.lane.b32.xlu0 %v2489, 112
      %v2697 = vpop.permute.xlu0 %2696
      %2698 = vrot.lane.b32.xlu0 %v2490, 112
      %v2699 = vpop.permute.xlu0 %2698
      %2700 = vrot.lane.b32.xlu0 %v2491, 112
      %v2701 = vpop.permute.xlu0 %2700
      %2702 = vrot.lane.b32.xlu0 %v2492, 112
      %v2703 = vpop.permute.xlu0 %2702
      %2704 = vrot.lane.b32.xlu0 %v2493, 112
      %v2705 = vpop.permute.xlu0 %2704
      %2706 = vrot.lane.b32.xlu0 %v2494, 112
      %v2707 = vpop.permute.xlu0 %2706
      %2708 = vrot.lane.b32.xlu0 %v2495, 112
      %v2709 = vpop.permute.xlu0 %2708
      %2710 = vrot.lane.b32.xlu0 %v2496, 112
      %v2711 = vpop.permute.xlu0 %2710
      %2712 = vrot.lane.b32.xlu0 %v2497, 112
      %v2713 = vpop.permute.xlu0 %2712
      %2714 = vrot.lane.b32.xlu0 %v2498, 112
      %v2715 = vpop.permute.xlu0 %2714
      %2716 = vrot.lane.b32.xlu0 %v2499, 112
      %v2717 = vpop.permute.xlu0 %2716
      %2718 = vrot.lane.b32.xlu0 %v2500, 112
      %v2719 = vpop.permute.xlu0 %2718
      %2720 = vrot.lane.b32.xlu0 %v2501, 112
      %v2721 = vpop.permute.xlu0 %2720
      %2722 = vrot.lane.b32.xlu0 %v2502, 112
      %v2723 = vpop.permute.xlu0 %2722
      %2724 = vrot.lane.b32.xlu0 %v2503, 112
      %v2725 = vpop.permute.xlu0 %2724
      %2726 = vrot.lane.b32.xlu0 %v2504, 112
      %v2727 = vpop.permute.xlu0 %2726
      %2728 = vrot.lane.b32.xlu0 %v2505, 112
      %v2729 = vpop.permute.xlu0 %2728
      %v2762 = vadd.f32 %v2634, %v2667
      %v2763 = vadd.f32 %v2635, %v2669
      %v2764 = vadd.f32 %v2636, %v2671
      %v2765 = vadd.f32 %v2637, %v2673
      %v2766 = vadd.f32 %v2638, %v2675
      %v2767 = vadd.f32 %v2639, %v2677
      %v2768 = vadd.f32 %v2640, %v2679
      %v2769 = vadd.f32 %v2641, %v2681
      %v2770 = vadd.f32 %v2642, %v2683
      %v2771 = vadd.f32 %v2643, %v2685
      %v2772 = vadd.f32 %v2644, %v2687
      %v2773 = vadd.f32 %v2645, %v2689
      %v2774 = vadd.f32 %v2646, %v2691
      %v2775 = vadd.f32 %v2647, %v2693
      %v2776 = vadd.f32 %v2648, %v2695
      %v2777 = vadd.f32 %v2649, %v2697
      %v2778 = vadd.f32 %v2650, %v2699
      %v2779 = vadd.f32 %v2651, %v2701
      %v2780 = vadd.f32 %v2652, %v2703
      %v2781 = vadd.f32 %v2653, %v2705
      %v2782 = vadd.f32 %v2654, %v2707
      %v2783 = vadd.f32 %v2655, %v2709
      %v2784 = vadd.f32 %v2656, %v2711
      %v2785 = vadd.f32 %v2657, %v2713
      %v2786 = vadd.f32 %v2658, %v2715
      %v2787 = vadd.f32 %v2659, %v2717
      %v2788 = vadd.f32 %v2660, %v2719
      %v2789 = vadd.f32 %v2661, %v2721
      %v2790 = vadd.f32 %v2662, %v2723
      %v2791 = vadd.f32 %v2663, %v2725
      %v2792 = vadd.f32 %v2664, %v2727
      %v2793 = vadd.f32 %v2665, %v2729
      %2826 = vrot.lane.b32.xlu0 %v2762, 112
      %v2827 = vpop.permute.xlu0 %2826
      %2828 = vrot.lane.b32.xlu0 %v2763, 112
      %v2829 = vpop.permute.xlu0 %2828
      %2830 = vrot.lane.b32.xlu0 %v2764, 112
      %v2831 = vpop.permute.xlu0 %2830
      %2832 = vrot.lane.b32.xlu0 %v2765, 112
      %v2833 = vpop.permute.xlu0 %2832
      %2834 = vrot.lane.b32.xlu0 %v2766, 112
      %v2835 = vpop.permute.xlu0 %2834
      %2836 = vrot.lane.b32.xlu0 %v2767, 112
      %v2837 = vpop.permute.xlu0 %2836
      %2838 = vrot.lane.b32.xlu0 %v2768, 112
      %v2839 = vpop.permute.xlu0 %2838
      %2840 = vrot.lane.b32.xlu0 %v2769, 112
      %v2841 = vpop.permute.xlu0 %2840
      %2842 = vrot.lane.b32.xlu0 %v2770, 112
      %v2843 = vpop.permute.xlu0 %2842
      %2844 = vrot.lane.b32.xlu0 %v2771, 112
      %v2845 = vpop.permute.xlu0 %2844
      %2846 = vrot.lane.b32.xlu0 %v2772, 112
      %v2847 = vpop.permute.xlu0 %2846
      %2848 = vrot.lane.b32.xlu0 %v2773, 112
      %v2849 = vpop.permute.xlu0 %2848
      %2850 = vrot.lane.b32.xlu0 %v2774, 112
      %v2851 = vpop.permute.xlu0 %2850
      %2852 = vrot.lane.b32.xlu0 %v2775, 112
      %v2853 = vpop.permute.xlu0 %2852
      %2854 = vrot.lane.b32.xlu0 %v2776, 112
      %v2855 = vpop.permute.xlu0 %2854
      %2856 = vrot.lane.b32.xlu0 %v2777, 112
      %v2857 = vpop.permute.xlu0 %2856
      %2858 = vrot.lane.b32.xlu0 %v2778, 112
      %v2859 = vpop.permute.xlu0 %2858
      %2860 = vrot.lane.b32.xlu0 %v2779, 112
      %v2861 = vpop.permute.xlu0 %2860
      %2862 = vrot.lane.b32.xlu0 %v2780, 112
      %v2863 = vpop.permute.xlu0 %2862
      %2864 = vrot.lane.b32.xlu0 %v2781, 112
      %v2865 = vpop.permute.xlu0 %2864
      %2866 = vrot.lane.b32.xlu0 %v2782, 112
      %v2867 = vpop.permute.xlu0 %2866
      %2868 = vrot.lane.b32.xlu0 %v2783, 112
      %v2869 = vpop.permute.xlu0 %2868
      %2870 = vrot.lane.b32.xlu0 %v2784, 112
      %v2871 = vpop.permute.xlu0 %2870
      %2872 = vrot.lane.b32.xlu0 %v2785, 112
      %v2873 = vpop.permute.xlu0 %2872
      %2874 = vrot.lane.b32.xlu0 %v2786, 112
      %v2875 = vpop.permute.xlu0 %2874
      %2876 = vrot.lane.b32.xlu0 %v2787, 112
      %v2877 = vpop.permute.xlu0 %2876
      %2878 = vrot.lane.b32.xlu0 %v2788, 112
      %v2879 = vpop.permute.xlu0 %2878
      %2880 = vrot.lane.b32.xlu0 %v2789, 112
      %v2881 = vpop.permute.xlu0 %2880
      %2882 = vrot.lane.b32.xlu0 %v2790, 112
      %v2883 = vpop.permute.xlu0 %2882
      %2884 = vrot.lane.b32.xlu0 %v2791, 112
      %v2885 = vpop.permute.xlu0 %2884
      %2886 = vrot.lane.b32.xlu0 %v2792, 112
      %v2887 = vpop.permute.xlu0 %2886
      %2888 = vrot.lane.b32.xlu0 %v2793, 112
      %v2889 = vpop.permute.xlu0 %2888
      %v2922 = vmul.f32 %v2028, %v2827
      %v2923 = vmul.f32 %v2031, %v2829
      %v2924 = vmul.f32 %v2036, %v2831
      %v2925 = vmul.f32 %v2039, %v2833
      %v2926 = vmul.f32 %v2044, %v2835
      %v2927 = vmul.f32 %v2047, %v2837
      %v2928 = vmul.f32 %v2052, %v2839
      %v2929 = vmul.f32 %v2055, %v2841
      %v2930 = vmul.f32 %v2060, %v2843
      %v2931 = vmul.f32 %v2063, %v2845
      %v2932 = vmul.f32 %v2068, %v2847
      %v2933 = vmul.f32 %v2071, %v2849
      %v2934 = vmul.f32 %v2076, %v2851
      %v2935 = vmul.f32 %v2079, %v2853
      %v2936 = vmul.f32 %v2084, %v2855
      %v2937 = vmul.f32 %v2087, %v2857
      %v2938 = vmul.f32 %v2092, %v2859
      %v2939 = vmul.f32 %v2095, %v2861
      %v2940 = vmul.f32 %v2100, %v2863
      %v2941 = vmul.f32 %v2103, %v2865
      %v2942 = vmul.f32 %v2108, %v2867
      %v2943 = vmul.f32 %v2111, %v2869
      %v2944 = vmul.f32 %v2116, %v2871
      %v2945 = vmul.f32 %v2119, %v2873
      %v2946 = vmul.f32 %v2124, %v2875
      %v2947 = vmul.f32 %v2127, %v2877
      %v2948 = vmul.f32 %v2132, %v2879
      %v2949 = vmul.f32 %v2135, %v2881
      %v2950 = vmul.f32 %v2140, %v2883
      %v2951 = vmul.f32 %v2143, %v2885
      %v2952 = vmul.f32 %v2148, %v2887
      %v2953 = vmul.f32 %v2151, %v2889
      %2986 = vrot.lane.b32.xlu0 %v956, 16
      %v2987 = vpop.permute.xlu0 %2986
      %2988 = vrot.lane.b32.xlu0 %v959, 16
      %v2989 = vpop.permute.xlu0 %2988
      %2990 = vrot.lane.b32.xlu0 %v964, 16
      %v2991 = vpop.permute.xlu0 %2990
      %2992 = vrot.lane.b32.xlu0 %v967, 16
      %v2993 = vpop.permute.xlu0 %2992
      %2994 = vrot.lane.b32.xlu0 %v972, 16
      %v2995 = vpop.permute.xlu0 %2994
      %2996 = vrot.lane.b32.xlu0 %v975, 16
      %v2997 = vpop.permute.xlu0 %2996
      %2998 = vrot.lane.b32.xlu0 %v980, 16
      %v2999 = vpop.permute.xlu0 %2998
      %3000 = vrot.lane.b32.xlu0 %v983, 16
      %v3001 = vpop.permute.xlu0 %3000
      %3002 = vrot.lane.b32.xlu0 %v988, 16
      %v3003 = vpop.permute.xlu0 %3002
      %3004 = vrot.lane.b32.xlu0 %v991, 16
      %v3005 = vpop.permute.xlu0 %3004
      %3006 = vrot.lane.b32.xlu0 %v996, 16
      %v3007 = vpop.permute.xlu0 %3006
      %3008 = vrot.lane.b32.xlu0 %v999, 16
      %v3009 = vpop.permute.xlu0 %3008
      %3010 = vrot.lane.b32.xlu0 %v1004, 16
      %v3011 = vpop.permute.xlu0 %3010
      %3012 = vrot.lane.b32.xlu0 %v1007, 16
      %v3013 = vpop.permute.xlu0 %3012
      %3014 = vrot.lane.b32.xlu0 %v1012, 16
      %v3015 = vpop.permute.xlu0 %3014
      %3016 = vrot.lane.b32.xlu0 %v1015, 16
      %v3017 = vpop.permute.xlu0 %3016
      %3018 = vrot.lane.b32.xlu0 %v1020, 16
      %v3019 = vpop.permute.xlu0 %3018
      %3020 = vrot.lane.b32.xlu0 %v1023, 16
      %v3021 = vpop.permute.xlu0 %3020
      %3022 = vrot.lane.b32.xlu0 %v1028, 16
      %v3023 = vpop.permute.xlu0 %3022
      %3024 = vrot.lane.b32.xlu0 %v1031, 16
      %v3025 = vpop.permute.xlu0 %3024
      %3026 = vrot.lane.b32.xlu0 %v1036, 16
      %v3027 = vpop.permute.xlu0 %3026
      %3028 = vrot.lane.b32.xlu0 %v1039, 16
      %v3029 = vpop.permute.xlu0 %3028
      %3030 = vrot.lane.b32.xlu0 %v1044, 16
      %v3031 = vpop.permute.xlu0 %3030
      %3032 = vrot.lane.b32.xlu0 %v1047, 16
      %v3033 = vpop.permute.xlu0 %3032
      %3034 = vrot.lane.b32.xlu0 %v1052, 16
      %v3035 = vpop.permute.xlu0 %3034
      %3036 = vrot.lane.b32.xlu0 %v1055, 16
      %v3037 = vpop.permute.xlu0 %3036
      %3038 = vrot.lane.b32.xlu0 %v1060, 16
      %v3039 = vpop.permute.xlu0 %3038
      %3040 = vrot.lane.b32.xlu0 %v1063, 16
      %v3041 = vpop.permute.xlu0 %3040
      %3042 = vrot.lane.b32.xlu0 %v1068, 16
      %v3043 = vpop.permute.xlu0 %3042
      %3044 = vrot.lane.b32.xlu0 %v1071, 16
      %v3045 = vpop.permute.xlu0 %3044
      %3046 = vrot.lane.b32.xlu0 %v1076, 16
      %v3047 = vpop.permute.xlu0 %3046
      %3048 = vrot.lane.b32.xlu0 %v1079, 16
      %v3049 = vpop.permute.xlu0 %3048
      %v3082 = vmul.f32 %v2028, %v2987
      %v3083 = vmul.f32 %v2031, %v2989
      %v3084 = vmul.f32 %v2036, %v2991
      %v3085 = vmul.f32 %v2039, %v2993
      %v3086 = vmul.f32 %v2044, %v2995
      %v3087 = vmul.f32 %v2047, %v2997
      %v3088 = vmul.f32 %v2052, %v2999
      %v3089 = vmul.f32 %v2055, %v3001
      %v3090 = vmul.f32 %v2060, %v3003
      %v3091 = vmul.f32 %v2063, %v3005
      %v3092 = vmul.f32 %v2068, %v3007
      %v3093 = vmul.f32 %v2071, %v3009
      %v3094 = vmul.f32 %v2076, %v3011
      %v3095 = vmul.f32 %v2079, %v3013
      %v3096 = vmul.f32 %v2084, %v3015
      %v3097 = vmul.f32 %v2087, %v3017
      %v3098 = vmul.f32 %v2092, %v3019
      %v3099 = vmul.f32 %v2095, %v3021
      %v3100 = vmul.f32 %v2100, %v3023
      %v3101 = vmul.f32 %v2103, %v3025
      %v3102 = vmul.f32 %v2108, %v3027
      %v3103 = vmul.f32 %v2111, %v3029
      %v3104 = vmul.f32 %v2116, %v3031
      %v3105 = vmul.f32 %v2119, %v3033
      %v3106 = vmul.f32 %v2124, %v3035
      %v3107 = vmul.f32 %v2127, %v3037
      %v3108 = vmul.f32 %v2132, %v3039
      %v3109 = vmul.f32 %v2135, %v3041
      %v3110 = vmul.f32 %v2140, %v3043
      %v3111 = vmul.f32 %v2143, %v3045
      %v3112 = vmul.f32 %v2148, %v3047
      %v3113 = vmul.f32 %v2151, %v3049
      %3114 = vrot.lane.b32.xlu0 %v2028, 80
      %v3115 = vpop.permute.xlu0 %3114
      %3116 = vrot.lane.b32.xlu0 %v2031, 80
      %v3117 = vpop.permute.xlu0 %3116
      %3118 = vrot.lane.b32.xlu0 %v2036, 80
      %v3119 = vpop.permute.xlu0 %3118
      %3120 = vrot.lane.b32.xlu0 %v2039, 80
      %v3121 = vpop.permute.xlu0 %3120
      %3122 = vrot.lane.b32.xlu0 %v2044, 80
      %v3123 = vpop.permute.xlu0 %3122
      %3124 = vrot.lane.b32.xlu0 %v2047, 80
      %v3125 = vpop.permute.xlu0 %3124
      %3126 = vrot.lane.b32.xlu0 %v2052, 80
      %v3127 = vpop.permute.xlu0 %3126
      %3128 = vrot.lane.b32.xlu0 %v2055, 80
      %v3129 = vpop.permute.xlu0 %3128
      %3130 = vrot.lane.b32.xlu0 %v2060, 80
      %v3131 = vpop.permute.xlu0 %3130
      %3132 = vrot.lane.b32.xlu0 %v2063, 80
      %v3133 = vpop.permute.xlu0 %3132
      %3134 = vrot.lane.b32.xlu0 %v2068, 80
      %v3135 = vpop.permute.xlu0 %3134
      %3136 = vrot.lane.b32.xlu0 %v2071, 80
      %v3137 = vpop.permute.xlu0 %3136
      %3138 = vrot.lane.b32.xlu0 %v2076, 80
      %v3139 = vpop.permute.xlu0 %3138
      %3140 = vrot.lane.b32.xlu0 %v2079, 80
      %v3141 = vpop.permute.xlu0 %3140
      %3142 = vrot.lane.b32.xlu0 %v2084, 80
      %v3143 = vpop.permute.xlu0 %3142
      %3144 = vrot.lane.b32.xlu0 %v2087, 80
      %v3145 = vpop.permute.xlu0 %3144
      %3146 = vrot.lane.b32.xlu0 %v2092, 80
      %v3147 = vpop.permute.xlu0 %3146
      %3148 = vrot.lane.b32.xlu0 %v2095, 80
      %v3149 = vpop.permute.xlu0 %3148
      %3150 = vrot.lane.b32.xlu0 %v2100, 80
      %v3151 = vpop.permute.xlu0 %3150
      %3152 = vrot.lane.b32.xlu0 %v2103, 80
      %v3153 = vpop.permute.xlu0 %3152
      %3154 = vrot.lane.b32.xlu0 %v2108, 80
      %v3155 = vpop.permute.xlu0 %3154
      %3156 = vrot.lane.b32.xlu0 %v2111, 80
      %v3157 = vpop.permute.xlu0 %3156
      %3158 = vrot.lane.b32.xlu0 %v2116, 80
      %v3159 = vpop.permute.xlu0 %3158
      %3160 = vrot.lane.b32.xlu0 %v2119, 80
      %v3161 = vpop.permute.xlu0 %3160
      %3162 = vrot.lane.b32.xlu0 %v2124, 80
      %v3163 = vpop.permute.xlu0 %3162
      %3164 = vrot.lane.b32.xlu0 %v2127, 80
      %v3165 = vpop.permute.xlu0 %3164
      %3166 = vrot.lane.b32.xlu0 %v2132, 80
      %v3167 = vpop.permute.xlu0 %3166
      %3168 = vrot.lane.b32.xlu0 %v2135, 80
      %v3169 = vpop.permute.xlu0 %3168
      %3170 = vrot.lane.b32.xlu0 %v2140, 80
      %v3171 = vpop.permute.xlu0 %3170
      %3172 = vrot.lane.b32.xlu0 %v2143, 80
      %v3173 = vpop.permute.xlu0 %3172
      %3174 = vrot.lane.b32.xlu0 %v2148, 80
      %v3175 = vpop.permute.xlu0 %3174
      %3176 = vrot.lane.b32.xlu0 %v2151, 80
      %v3177 = vpop.permute.xlu0 %3176
      %v3210 = vmul.f32 %v3082, %v3115
      %v3211 = vmul.f32 %v3083, %v3117
      %v3212 = vmul.f32 %v3084, %v3119
      %v3213 = vmul.f32 %v3085, %v3121
      %v3214 = vmul.f32 %v3086, %v3123
      %v3215 = vmul.f32 %v3087, %v3125
      %v3216 = vmul.f32 %v3088, %v3127
      %v3217 = vmul.f32 %v3089, %v3129
      %v3218 = vmul.f32 %v3090, %v3131
      %v3219 = vmul.f32 %v3091, %v3133
      %v3220 = vmul.f32 %v3092, %v3135
      %v3221 = vmul.f32 %v3093, %v3137
      %v3222 = vmul.f32 %v3094, %v3139
      %v3223 = vmul.f32 %v3095, %v3141
      %v3224 = vmul.f32 %v3096, %v3143
      %v3225 = vmul.f32 %v3097, %v3145
      %v3226 = vmul.f32 %v3098, %v3147
      %v3227 = vmul.f32 %v3099, %v3149
      %v3228 = vmul.f32 %v3100, %v3151
      %v3229 = vmul.f32 %v3101, %v3153
      %v3230 = vmul.f32 %v3102, %v3155
      %v3231 = vmul.f32 %v3103, %v3157
      %v3232 = vmul.f32 %v3104, %v3159
      %v3233 = vmul.f32 %v3105, %v3161
      %v3234 = vmul.f32 %v3106, %v3163
      %v3235 = vmul.f32 %v3107, %v3165
      %v3236 = vmul.f32 %v3108, %v3167
      %v3237 = vmul.f32 %v3109, %v3169
      %v3238 = vmul.f32 %v3110, %v3171
      %v3239 = vmul.f32 %v3111, %v3173
      %v3240 = vmul.f32 %v3112, %v3175
      %v3241 = vmul.f32 %v3113, %v3177
      %v3242 = vsel %vm1179, %v2314, %v2922
      %v3243 = vsel %vm1179, %v2315, %v2923
      %v3244 = vsel %vm1179, %v2316, %v2924
      %v3245 = vsel %vm1179, %v2317, %v2925
      %v3246 = vsel %vm1179, %v2318, %v2926
      %v3247 = vsel %vm1179, %v2319, %v2927
      %v3248 = vsel %vm1179, %v2320, %v2928
      %v3249 = vsel %vm1179, %v2321, %v2929
      %v3250 = vsel %vm1179, %v2322, %v2930
      %v3251 = vsel %vm1179, %v2323, %v2931
      %v3252 = vsel %vm1179, %v2324, %v2932
      %v3253 = vsel %vm1179, %v2325, %v2933
      %v3254 = vsel %vm1179, %v2326, %v2934
      %v3255 = vsel %vm1179, %v2327, %v2935
      %v3256 = vsel %vm1179, %v2328, %v2936
      %v3257 = vsel %vm1179, %v2329, %v2937
      %v3258 = vsel %vm1179, %v2330, %v2938
      %v3259 = vsel %vm1179, %v2331, %v2939
      %v3260 = vsel %vm1179, %v2332, %v2940
      %v3261 = vsel %vm1179, %v2333, %v2941
      %v3262 = vsel %vm1179, %v2334, %v2942
      %v3263 = vsel %vm1179, %v2335, %v2943
      %v3264 = vsel %vm1179, %v2336, %v2944
      %v3265 = vsel %vm1179, %v2337, %v2945
      %v3266 = vsel %vm1179, %v2338, %v2946
      %v3267 = vsel %vm1179, %v2339, %v2947
      %v3268 = vsel %vm1179, %v2340, %v2948
      %v3269 = vsel %vm1179, %v2341, %v2949
      %v3270 = vsel %vm1179, %v2342, %v2950
      %v3271 = vsel %vm1179, %v2343, %v2951
      %v3272 = vsel %vm1179, %v2344, %v2952
      %v3273 = vsel %vm1179, %v2345, %v2953
      %vm3274 = vcmask 130048
      %v3275 = vsel %vm3274, %v3242, %v3210
      %v3276 = vsel %vm3274, %v3243, %v3211
      %v3277 = vsel %vm3274, %v3244, %v3212
      %v3278 = vsel %vm3274, %v3245, %v3213
      %v3279 = vsel %vm3274, %v3246, %v3214
      %v3280 = vsel %vm3274, %v3247, %v3215
      %v3281 = vsel %vm3274, %v3248, %v3216
      %v3282 = vsel %vm3274, %v3249, %v3217
      %v3283 = vsel %vm3274, %v3250, %v3218
      %v3284 = vsel %vm3274, %v3251, %v3219
      %v3285 = vsel %vm3274, %v3252, %v3220
      %v3286 = vsel %vm3274, %v3253, %v3221
      %v3287 = vsel %vm3274, %v3254, %v3222
      %v3288 = vsel %vm3274, %v3255, %v3223
      %v3289 = vsel %vm3274, %v3256, %v3224
      %v3290 = vsel %vm3274, %v3257, %v3225
      %v3291 = vsel %vm3274, %v3258, %v3226
      %v3292 = vsel %vm3274, %v3259, %v3227
      %v3293 = vsel %vm3274, %v3260, %v3228
      %v3294 = vsel %vm3274, %v3261, %v3229
      %v3295 = vsel %vm3274, %v3262, %v3230
      %v3296 = vsel %vm3274, %v3263, %v3231
      %v3297 = vsel %vm3274, %v3264, %v3232
      %v3298 = vsel %vm3274, %v3265, %v3233
      %v3299 = vsel %vm3274, %v3266, %v3234
      %v3300 = vsel %vm3274, %v3267, %v3235
      %v3301 = vsel %vm3274, %v3268, %v3236
      %v3302 = vsel %vm3274, %v3269, %v3237
      %v3303 = vsel %vm3274, %v3270, %v3238
      %v3304 = vsel %vm3274, %v3271, %v3239
      %v3305 = vsel %vm3274, %v3272, %v3240
      %v3306 = vsel %vm3274, %v3273, %v3241
      %v3307 = vpack.c.bf16 %v3276, %v3275
      %v3308 = vpack.c.bf16 %v3278, %v3277
      %v3309 = vpack.c.bf16 %v3280, %v3279
      %v3310 = vpack.c.bf16 %v3282, %v3281
      %v3311 = vpack.c.bf16 %v3284, %v3283
      %v3312 = vpack.c.bf16 %v3286, %v3285
      %v3313 = vpack.c.bf16 %v3288, %v3287
      %v3314 = vpack.c.bf16 %v3290, %v3289
      %v3315 = vpack.c.bf16 %v3292, %v3291
      %v3316 = vpack.c.bf16 %v3294, %v3293
      %v3317 = vpack.c.bf16 %v3296, %v3295
      %v3318 = vpack.c.bf16 %v3298, %v3297
      %v3319 = vpack.c.bf16 %v3300, %v3299
      %v3320 = vpack.c.bf16 %v3302, %v3301
      %v3321 = vpack.c.bf16 %v3304, %v3303
      %v3322 = vpack.c.bf16 %v3306, %v3305
      %v3323 = vld [vmem:[%s461] sm:$0x3]
      %v3324 = vlaneseq
      %v3325 = vshrl.u32 %v3324, 7
      %v3326 = vadd.s32 %v3325, 8
      %v3327 = vadd.s32 %v3325, 16
      %v3328 = vadd.s32 %v3325, 24
      %v3329 = vadd.s32 %v3325, 32
      %v3330 = vadd.s32 %v3325, 40
      %v3331 = vadd.s32 %v3325, 48
      %v3332 = vadd.s32 %v3325, 56
      %v3333 = vlaneseq
      %v3334 = vshrl.u32 %v3333, 7
      %v3335 = vsub.s32 0, %v3334
      %v3336 = vrot.slane %v3323, %v3335
      %v3337 = vlaneseq
      %v3338 = vshrl.u32 %v3337, 7
      %v3339 = vsub.s32 1, %v3338
      %v3340 = vrot.slane %v3323, %v3339
      %vm3341 = vcmp.eq.s32.totalorder %v3325, %v3336
      %vm3342 = vcmp.eq.s32.totalorder %v3325, %v3340
      %vm3343 = vcmp.eq.s32.totalorder %v3326, %v3336
      %vm3344 = vcmp.eq.s32.totalorder %v3326, %v3340
      %vm3345 = vcmp.eq.s32.totalorder %v3327, %v3336
      %vm3346 = vcmp.eq.s32.totalorder %v3327, %v3340
      %vm3347 = vcmp.eq.s32.totalorder %v3328, %v3336
      %vm3348 = vcmp.eq.s32.totalorder %v3328, %v3340
      %vm3349 = vcmp.eq.s32.totalorder %v3329, %v3336
      %vm3350 = vcmp.eq.s32.totalorder %v3329, %v3340
      %vm3351 = vcmp.eq.s32.totalorder %v3330, %v3336
      %vm3352 = vcmp.eq.s32.totalorder %v3330, %v3340
      %vm3353 = vcmp.eq.s32.totalorder %v3331, %v3336
      %vm3354 = vcmp.eq.s32.totalorder %v3331, %v3340
      %vm3355 = vcmp.eq.s32.totalorder %v3332, %v3336
      %vm3356 = vcmp.eq.s32.totalorder %v3332, %v3340
      %v3357 = vsel %vm3341, 1, 0
      %v3358 = vsel %vm3342, 1, 0
      %v3359 = vsel %vm3343, 1, 0
      %v3360 = vsel %vm3344, 1, 0
      %v3361 = vsel %vm3345, 1, 0
      %v3362 = vsel %vm3346, 1, 0
      %v3363 = vsel %vm3347, 1, 0
      %v3364 = vsel %vm3348, 1, 0
      %v3365 = vsel %vm3349, 1, 0
      %v3366 = vsel %vm3350, 1, 0
      %v3367 = vsel %vm3351, 1, 0
      %v3368 = vsel %vm3352, 1, 0
      %v3369 = vsel %vm3353, 1, 0
      %v3370 = vsel %vm3354, 1, 0
      %v3371 = vsel %vm3355, 1, 0
      %v3372 = vsel %vm3356, 1, 0
      %v3373 = vcvt.s32.f32 %v3357
      %v3374 = vcvt.s32.f32 %v3358
      %v3375 = vcvt.s32.f32 %v3359
      %v3376 = vcvt.s32.f32 %v3360
      %v3377 = vcvt.s32.f32 %v3361
      %v3378 = vcvt.s32.f32 %v3362
      %v3379 = vcvt.s32.f32 %v3363
      %v3380 = vcvt.s32.f32 %v3364
      %v3381 = vcvt.s32.f32 %v3365
      %v3382 = vcvt.s32.f32 %v3366
      %v3383 = vcvt.s32.f32 %v3367
      %v3384 = vcvt.s32.f32 %v3368
      %v3385 = vcvt.s32.f32 %v3369
      %v3386 = vcvt.s32.f32 %v3370
      %v3387 = vcvt.s32.f32 %v3371
      %v3388 = vcvt.s32.f32 %v3372
      %v3389 = vpack.c.bf16 %v3375, %v3373
      %v3390 = vpack.c.bf16 %v3376, %v3374
      %v3391 = vpack.c.bf16 %v3379, %v3377
      %v3392 = vpack.c.bf16 %v3380, %v3378
      %v3393 = vpack.c.bf16 %v3383, %v3381
      %v3394 = vpack.c.bf16 %v3384, %v3382
      %v3395 = vpack.c.bf16 %v3387, %v3385
      %v3396 = vpack.c.bf16 %v3388, %v3386
      %3397 = vmatprep.subr.bf16.mxu0 0
      %3398 = vmatpush1.bf16.msra.mxu0 %v3307
      %3399 = vmatprep.subr.bf16.mxu0 0
      %3400 = vmatpush1.bf16.msra.mxu0 %v3308
      %3401 = vmatprep.subr.bf16.mxu0 0
      %3402 = vmatpush1.bf16.msra.mxu0 %v3309
      %3403 = vmatprep.subr.bf16.mxu0 0
      %3404 = vmatpush1.bf16.msra.mxu0 %v3310
      %3405 = vmatprep.subr.bf16.mxu0 0
      %3406 = vmatpush1.bf16.msra.mxu0 %v3311
      %3407 = vmatprep.subr.bf16.mxu0 0
      %3408 = vmatpush1.bf16.msra.mxu0 %v3312
      %3409 = vmatprep.subr.bf16.mxu0 0
      %3410 = vmatpush1.bf16.msra.mxu0 %v3313
      %3411 = vmatprep.subr.bf16.mxu0 0
      %3412 = vmatpush1.bf16.msra.mxu0 %v3314
      %3413 = vmatprep.subr.bf16.mxu0 0
      %3414 = vmatpush1.bf16.msra.mxu0 %v3315
      %3415 = vmatprep.subr.bf16.mxu0 0
      %3416 = vmatpush1.bf16.msra.mxu0 %v3316
      %3417 = vmatprep.subr.bf16.mxu0 0
      %3418 = vmatpush1.bf16.msra.mxu0 %v3317
      %3419 = vmatprep.subr.bf16.mxu0 0
      %3420 = vmatpush1.bf16.msra.mxu0 %v3318
      %3421 = vmatprep.subr.bf16.mxu0 0
      %3422 = vmatpush1.bf16.msra.mxu0 %v3319
      %3423 = vmatprep.subr.bf16.mxu0 0
      %3424 = vmatpush1.bf16.msra.mxu0 %v3320
      %3425 = vmatprep.subr.bf16.mxu0 0
      %3426 = vmatpush1.bf16.msra.mxu0 %v3321
      %3427 = vmatprep.subr.bf16.mxu0 0
      %3428 = vmatpush1.bf16.msra.mxu0 %v3322
      %3429 = vmatprep.mubr.bf16.mxu0 %v3390
      %3430 = vmatmul.mubr.bf16.gmra.mrb[0].mxu0 %v3389
      %v3431 = vpop.f32.mrb[0].mxu0
      %v3432 = vadd.f32 0.0, %v3431
      %v3433 = vpop.f32.mrb[0].mxu0
      %v3434 = vpop.f32.mrb[0].mxu0
      %v3435 = vadd.f32 0.0, %v3434
      %v3436 = vpop.f32.mrb[0].mxu0
      %3437 = vmatprep.mubr.bf16.mxu0 %v3392
      %3438 = vmatmul.mubr.bf16.gmra.mrb[0].mxu0 %v3391
      %v3439 = vpop.f32.mrb[0].mxu0
      %v3440 = vadd.f32 0.0, %v3439
      %v3441 = vpop.f32.mrb[0].mxu0
      %v3442 = vpop.f32.mrb[0].mxu0
      %v3443 = vadd.f32 0.0, %v3442
      %v3444 = vpop.f32.mrb[0].mxu0
      %3445 = vmatprep.mubr.bf16.mxu0 %v3394
      %3446 = vmatmul.mubr.bf16.gmra.mrb[0].mxu0 %v3393
      %v3447 = vpop.f32.mrb[0].mxu0
      %v3448 = vadd.f32 0.0, %v3447
      %v3449 = vpop.f32.mrb[0].mxu0
      %v3450 = vpop.f32.mrb[0].mxu0
      %v3451 = vadd.f32 0.0, %v3450
      %v3452 = vpop.f32.mrb[0].mxu0
      %3453 = vmatprep.mubr.bf16.mxu0 %v3396
      %3454 = vmatmul.mubr.bf16.gmra.mrb[0].mxu0 %v3395
      %v3455 = vpop.f32.mrb[0].mxu0
      %v3456 = vadd.f32 0.0, %v3455
      %v3457 = vpop.f32.mrb[0].mxu0
      %v3458 = vpop.f32.mrb[0].mxu0
      %v3459 = vadd.f32 0.0, %v3458
      %v3460 = vpop.f32.mrb[0].mxu0
      %3461 = vdwg.mxu0
      %v3462 = vpack.c.bf16 %v3435, %v3432
      %v3463 = vpack.c.bf16 %v3443, %v3440
      %v3464 = vpack.c.bf16 %v3451, %v3448
      %v3465 = vpack.c.bf16 %v3459, %v3456
      %3467 = vset.pattern.permute.xlu0 0
      %3468 = vperm.xlu0 %3467, %v496
      %v3469 = vpop.permute.xlu0 %3468
      %3472 = vset.pattern.permute.xlu0 0
      %3473 = vperm.xlu0 %3472, %v497
      %v3474 = vpop.permute.xlu0 %3473
      %3477 = vset.pattern.permute.xlu0 0
      %3478 = vperm.xlu0 %3477, %v498
      %v3479 = vpop.permute.xlu0 %3478
      %3482 = vset.pattern.permute.xlu0 0
      %3483 = vperm.xlu0 %3482, %v499
      %v3484 = vpop.permute.xlu0 %3483
      %v3486 = vmul.bf16 %v484, %v3469
      %v3487 = vmul.bf16 %v485, %v3474
      %v3488 = vmul.bf16 %v486, %v3479
      %v3489 = vmul.bf16 %v487, %v3484
      %3490 = vset.pattern.permute.xlu0 1
      %3491 = vperm.xlu0 %3490, %v496
      %v3492 = vpop.permute.xlu0 %3491
      %3494 = vset.pattern.permute.xlu0 1
      %3495 = vperm.xlu0 %3494, %v497
      %v3496 = vpop.permute.xlu0 %3495
      %3498 = vset.pattern.permute.xlu0 1
      %3499 = vperm.xlu0 %3498, %v498
      %v3500 = vpop.permute.xlu0 %3499
      %3502 = vset.pattern.permute.xlu0 1
      %3503 = vperm.xlu0 %3502, %v499
      %v3504 = vpop.permute.xlu0 %3503
      %v3506 = vmul.bf16 %v484, %v3492
      %v3507 = vmul.bf16 %v485, %v3496
      %v3508 = vmul.bf16 %v486, %v3500
      %v3509 = vmul.bf16 %v487, %v3504
      %3510 = vset.pattern.permute.xlu0 2
      %3511 = vperm.xlu0 %3510, %v496
      %v3512 = vpop.permute.xlu0 %3511
      %3514 = vset.pattern.permute.xlu0 2
      %3515 = vperm.xlu0 %3514, %v497
      %v3516 = vpop.permute.xlu0 %3515
      %3518 = vset.pattern.permute.xlu0 2
      %3519 = vperm.xlu0 %3518, %v498
      %v3520 = vpop.permute.xlu0 %3519
      %3522 = vset.pattern.permute.xlu0 2
      %3523 = vperm.xlu0 %3522, %v499
      %v3524 = vpop.permute.xlu0 %3523
      %v3526 = vmul.bf16 %v484, %v3512
      %v3527 = vmul.bf16 %v485, %v3516
      %v3528 = vmul.bf16 %v486, %v3520
      %v3529 = vmul.bf16 %v487, %v3524
      %3530 = vset.pattern.permute.xlu0 3
      %3531 = vperm.xlu0 %3530, %v496
      %v3532 = vpop.permute.xlu0 %3531
      %3534 = vset.pattern.permute.xlu0 3
      %3535 = vperm.xlu0 %3534, %v497
      %v3536 = vpop.permute.xlu0 %3535
      %3538 = vset.pattern.permute.xlu0 3
      %3539 = vperm.xlu0 %3538, %v498
      %v3540 = vpop.permute.xlu0 %3539
      %3542 = vset.pattern.permute.xlu0 3
      %3543 = vperm.xlu0 %3542, %v499
      %v3544 = vpop.permute.xlu0 %3543
      %v3546 = vmul.bf16 %v484, %v3532
      %v3547 = vmul.bf16 %v485, %v3536
      %v3548 = vmul.bf16 %v486, %v3540
      %v3549 = vmul.bf16 %v487, %v3544
      %3554 = vrot.lane.b32.xlu0 %v3506, 32
      %v3555 = vpop.permute.xlu0 %3554
      %3556 = vrot.lane.b32.xlu0 %v3507, 32
      %v3557 = vpop.permute.xlu0 %3556
      %3558 = vrot.lane.b32.xlu0 %v3508, 32
      %v3559 = vpop.permute.xlu0 %3558
      %3560 = vrot.lane.b32.xlu0 %v3509, 32
      %v3561 = vpop.permute.xlu0 %3560
      %3566 = vrot.lane.b32.xlu0 %v3526, 64
      %v3567 = vpop.permute.xlu0 %3566
      %3568 = vrot.lane.b32.xlu0 %v3527, 64
      %v3569 = vpop.permute.xlu0 %3568
      %3570 = vrot.lane.b32.xlu0 %v3528, 64
      %v3571 = vpop.permute.xlu0 %3570
      %3572 = vrot.lane.b32.xlu0 %v3529, 64
      %v3573 = vpop.permute.xlu0 %3572
      %3578 = vrot.lane.b32.xlu0 %v3546, 96
      %v3579 = vpop.permute.xlu0 %3578
      %3580 = vrot.lane.b32.xlu0 %v3547, 96
      %v3581 = vpop.permute.xlu0 %3580
      %3582 = vrot.lane.b32.xlu0 %v3548, 96
      %v3583 = vpop.permute.xlu0 %3582
      %3584 = vrot.lane.b32.xlu0 %v3549, 96
      %v3585 = vpop.permute.xlu0 %3584
      %v3588 = vsel %vm548, %v3486, %v3555
      %v3591 = vsel %vm548, %v3487, %v3557
      %v3594 = vsel %vm548, %v3488, %v3559
      %v3597 = vsel %vm548, %v3489, %v3561
      %v3599 = vsel %vm872, %v3588, %v3567
      %v3601 = vsel %vm872, %v3591, %v3569
      %v3603 = vsel %vm872, %v3594, %v3571
      %v3605 = vsel %vm872, %v3597, %v3573
      %vm3606 = vcmask 785408
      %v3608 = vsel %vm3606, %v3599, %v3579
      %v3611 = vsel %vm3606, %v3601, %v3581
      %v3614 = vsel %vm3606, %v3603, %v3583
      %v3617 = vsel %vm3606, %v3605, %v3585
      %v3619 = vld [vmem:[%s6] sm:$0xf]
      %v3620 = vld [vmem:[%s6 + $0x4] sm:$0xf]
      %v3621 = vld [vmem:[%s6 + $0x8] sm:$0xf]
      %v3622 = vld [vmem:[%s6 + $0xc] sm:$0xf]
      %v3623 = vld [vmem:[%s6 + $0x10] sm:$0xf]
      %v3624 = vld [vmem:[%s6 + $0x14] sm:$0xf]
      %v3625 = vld [vmem:[%s6 + $0x18] sm:$0xf]
      %v3626 = vld [vmem:[%s6 + $0x1c] sm:$0xf]
      %v3627 = vld [vmem:[%s6 + $0x20] sm:$0xf]
      %v3628 = vld [vmem:[%s6 + $0x24] sm:$0xf]
      %v3629 = vld [vmem:[%s6 + $0x28] sm:$0xf]
      %v3630 = vld [vmem:[%s6 + $0x2c] sm:$0xf]
      %v3631 = vld [vmem:[%s6 + $0x30] sm:$0xf]
      %v3632 = vld [vmem:[%s6 + $0x34] sm:$0xf]
      %v3633 = vld [vmem:[%s6 + $0x38] sm:$0xf]
      %v3634 = vld [vmem:[%s6 + $0x3c] sm:$0xf]
      %v3651 = vunpack.c.l.b16 %v3619
      %v3652 = vunpack.c.l.b16 %v3620
      %v3653 = vunpack.c.l.b16 %v3621
      %v3654 = vunpack.c.l.b16 %v3622
      %v3655 = vunpack.c.l.b16 %v3623
      %v3656 = vunpack.c.l.b16 %v3624
      %v3657 = vunpack.c.l.b16 %v3625
      %v3658 = vunpack.c.l.b16 %v3626
      %v3659 = vunpack.c.l.b16 %v3627
      %v3660 = vunpack.c.l.b16 %v3628
      %v3661 = vunpack.c.l.b16 %v3629
      %v3662 = vunpack.c.l.b16 %v3630
      %v3663 = vunpack.c.l.b16 %v3631
      %v3664 = vunpack.c.l.b16 %v3632
      %v3665 = vunpack.c.l.b16 %v3633
      %v3666 = vunpack.c.l.b16 %v3634
      %v3667 = vpack.c.b16 %v3652, %v3651
      %v3668 = vpack.c.b16 %v3654, %v3653
      %v3669 = vpack.c.b16 %v3656, %v3655
      %v3670 = vpack.c.b16 %v3658, %v3657
      %v3671 = vpack.c.b16 %v3660, %v3659
      %v3672 = vpack.c.b16 %v3662, %v3661
      %v3673 = vpack.c.b16 %v3664, %v3663
      %v3674 = vpack.c.b16 %v3666, %v3665
      %3683 = vmatprep.subr.bf16.mxu0 0
      %3684 = vmatpush1.bf16.msra.mxu0 %v3667
      %3685 = vmatprep.subr.bf16.mxu0 0
      %3686 = vmatpush1.bf16.msra.mxu0 %v3668
      %3687 = vmatprep.subr.bf16.mxu0 0
      %3688 = vmatpush1.bf16.msra.mxu0 %v3669
      %3689 = vmatprep.subr.bf16.mxu0 0
      %3690 = vmatpush1.bf16.msra.mxu0 %v3670
      %3691 = vmatprep.subr.bf16.mxu0 0
      %3692 = vmatpush1.bf16.msra.mxu0 %v3671
      %3693 = vmatprep.subr.bf16.mxu0 0
      %3694 = vmatpush1.bf16.msra.mxu0 %v3672
      %3695 = vmatprep.subr.bf16.mxu0 0
      %3696 = vmatpush1.bf16.msra.mxu0 %v3673
      %3697 = vmatprep.subr.bf16.mxu0 0
      %3698 = vmatpush1.bf16.msra.mxu0 %v3674
      %3699 = vmatprep.subr.bf16.mxu0 0
      %3700 = vmatpush1.bf16.msra.mxu0 0
      %3701 = vmatprep.subr.bf16.mxu0 0
      %3702 = vmatpush1.bf16.msra.mxu0 0
      %3703 = vmatprep.subr.bf16.mxu0 0
      %3704 = vmatpush1.bf16.msra.mxu0 0
      %3705 = vmatprep.subr.bf16.mxu0 0
      %3706 = vmatpush1.bf16.msra.mxu0 0
      %3707 = vmatprep.subr.bf16.mxu0 0
      %3708 = vmatpush1.bf16.msra.mxu0 0
      %3709 = vmatprep.subr.bf16.mxu0 0
      %3710 = vmatpush1.bf16.msra.mxu0 0
      %3711 = vmatprep.subr.bf16.mxu0 0
      %3712 = vmatpush1.bf16.msra.mxu0 0
      %3713 = vmatprep.subr.bf16.mxu0 0
      %3714 = vmatpush1.bf16.msra.mxu0 0
      %3715 = vmatprep.mubr.bf16.mxu0 0
      %3716 = vmatmul.mubr.bf16.gmra.mrb[0].mxu0 %v3608
      %v3717 = vpop.f32.mrb[0].mxu0
      %v3718 = vadd.f32 0.0, %v3717
      %v3719 = vpop.f32.mrb[0].mxu0
      %v3720 = vpop.f32.mrb[0].mxu0
      %v3721 = vadd.f32 0.0, %v3720
      %v3722 = vpop.f32.mrb[0].mxu0
      %3723 = vmatprep.mubr.bf16.mxu0 0
      %3724 = vmatmul.mubr.bf16.gmra.mrb[0].mxu0 %v3611
      %v3725 = vpop.f32.mrb[0].mxu0
      %v3726 = vadd.f32 0.0, %v3725
      %v3727 = vpop.f32.mrb[0].mxu0
      %v3728 = vpop.f32.mrb[0].mxu0
      %v3729 = vadd.f32 0.0, %v3728
      %v3730 = vpop.f32.mrb[0].mxu0
      %3731 = vmatprep.mubr.bf16.mxu0 0
      %3732 = vmatmul.mubr.bf16.gmra.mrb[0].mxu0 %v3614
      %v3733 = vpop.f32.mrb[0].mxu0
      %v3734 = vadd.f32 0.0, %v3733
      %v3735 = vpop.f32.mrb[0].mxu0
      %v3736 = vpop.f32.mrb[0].mxu0
      %v3737 = vadd.f32 0.0, %v3736
      %v3738 = vpop.f32.mrb[0].mxu0
      %3739 = vmatprep.mubr.bf16.mxu0 0
      %3740 = vmatmul.mubr.bf16.gmra.mrb[0].mxu0 %v3617
      %v3741 = vpop.f32.mrb[0].mxu0
      %v3742 = vadd.f32 0.0, %v3741
      %v3743 = vpop.f32.mrb[0].mxu0
      %v3744 = vpop.f32.mrb[0].mxu0
      %v3745 = vadd.f32 0.0, %v3744
      %v3746 = vpop.f32.mrb[0].mxu0
      %3747 = vdwg.mxu0
      %v3748 = vld [vmem:[%s9] sm:$0xf]
      %v3749 = vld [vmem:[%s9 + $0x4] sm:$0xf]
      %v3750 = vld [vmem:[%s9 + $0x8] sm:$0xf]
      %v3751 = vld [vmem:[%s9 + $0xc] sm:$0xf]
      %v3752 = vld [vmem:[%s9 + $0x10] sm:$0xf]
      %v3753 = vld [vmem:[%s9 + $0x14] sm:$0xf]
      %v3754 = vld [vmem:[%s9 + $0x18] sm:$0xf]
      %v3755 = vld [vmem:[%s9 + $0x1c] sm:$0xf]
      %v3764 = vunpack.c.l.b16 %v3748
      %v3765 = vunpack.c.l.b16 %v3749
      %v3766 = vunpack.c.l.b16 %v3750
      %v3767 = vunpack.c.l.b16 %v3751
      %v3768 = vunpack.c.l.b16 %v3752
      %v3769 = vunpack.c.l.b16 %v3753
      %v3770 = vunpack.c.l.b16 %v3754
      %v3771 = vunpack.c.l.b16 %v3755
      %v3772 = vpack.c.b16 %v3765, %v3764
      %v3773 = vpack.c.b16 %v3767, %v3766
      %v3774 = vpack.c.b16 %v3769, %v3768
      %v3775 = vpack.c.b16 %v3771, %v3770
      %v3781 = vsel %vm872, %v3462, 0
      %v3784 = vsel %vm872, %v3463, 0
      %v3787 = vsel %vm872, %v3464, 0
      %v3790 = vsel %vm872, %v3465, 0
      %3792 = vmatprep.subr.bf16.mxu0 0
      %3793 = vmatpush1.bf16.msra.mxu0 %v3772
      %3794 = vmatprep.subr.bf16.mxu0 0
      %3795 = vmatpush1.bf16.msra.mxu0 %v3773
      %3796 = vmatprep.subr.bf16.mxu0 0
      %3797 = vmatpush1.bf16.msra.mxu0 %v3774
      %3798 = vmatprep.subr.bf16.mxu0 0
      %3799 = vmatpush1.bf16.msra.mxu0 %v3775
      %3800 = vmatprep.subr.bf16.mxu0 0
      %3801 = vmatpush1.bf16.msra.mxu0 0
      %3802 = vmatprep.subr.bf16.mxu0 0
      %3803 = vmatpush1.bf16.msra.mxu0 0
      %3804 = vmatprep.subr.bf16.mxu0 0
      %3805 = vmatpush1.bf16.msra.mxu0 0
      %3806 = vmatprep.subr.bf16.mxu0 0
      %3807 = vmatpush1.bf16.msra.mxu0 0
      %3808 = vmatprep.subr.bf16.mxu0 0
      %3809 = vmatpush1.bf16.msra.mxu0 0
      %3810 = vmatprep.subr.bf16.mxu0 0
      %3811 = vmatpush1.bf16.msra.mxu0 0
      %3812 = vmatprep.subr.bf16.mxu0 0
      %3813 = vmatpush1.bf16.msra.mxu0 0
      %3814 = vmatprep.subr.bf16.mxu0 0
      %3815 = vmatpush1.bf16.msra.mxu0 0
      %3816 = vmatprep.subr.bf16.mxu0 0
      %3817 = vmatpush1.bf16.msra.mxu0 0
      %3818 = vmatprep.subr.bf16.mxu0 0
      %3819 = vmatpush1.bf16.msra.mxu0 0
      %3820 = vmatprep.subr.bf16.mxu0 0
      %3821 = vmatpush1.bf16.msra.mxu0 0
      %3822 = vmatprep.subr.bf16.mxu0 0
      %3823 = vmatpush1.bf16.msra.mxu0 0
      %3824 = vmatprep.mubr.bf16.mxu0 0
      %3825 = vmatmul.mubr.bf16.gmra.mrb[0].mxu0 %v3781
      %v3826 = vpop.f32.mrb[0].mxu0
      %v3827 = vadd.f32 %v3718, %v3826
      %v3828 = vpop.f32.mrb[0].mxu0
      %v3829 = vpop.f32.mrb[0].mxu0
      %v3830 = vadd.f32 %v3721, %v3829
      %v3831 = vpop.f32.mrb[0].mxu0
      %3832 = vmatprep.mubr.bf16.mxu0 0
      %3833 = vmatmul.mubr.bf16.gmra.mrb[0].mxu0 %v3784
      %v3834 = vpop.f32.mrb[0].mxu0
      %v3835 = vadd.f32 %v3726, %v3834
      %v3836 = vpop.f32.mrb[0].mxu0
      %v3837 = vpop.f32.mrb[0].mxu0
      %v3838 = vadd.f32 %v3729, %v3837
      %v3839 = vpop.f32.mrb[0].mxu0
      %3840 = vmatprep.mubr.bf16.mxu0 0
      %3841 = vmatmul.mubr.bf16.gmra.mrb[0].mxu0 %v3787
      %v3842 = vpop.f32.mrb[0].mxu0
      %v3843 = vadd.f32 %v3734, %v3842
      %v3844 = vpop.f32.mrb[0].mxu0
      %v3845 = vpop.f32.mrb[0].mxu0
      %v3846 = vadd.f32 %v3737, %v3845
      %v3847 = vpop.f32.mrb[0].mxu0
      %3848 = vmatprep.mubr.bf16.mxu0 0
      %3849 = vmatmul.mubr.bf16.gmra.mrb[0].mxu0 %v3790
      %v3850 = vpop.f32.mrb[0].mxu0
      %v3851 = vadd.f32 %v3742, %v3850
      %v3852 = vpop.f32.mrb[0].mxu0
      %v3853 = vpop.f32.mrb[0].mxu0
      %v3854 = vadd.f32 %v3745, %v3853
      %v3855 = vpop.f32.mrb[0].mxu0
      %3856 = vdwg.mxu0
      %v3857 = vmax.f32 %v3827, 0.0
      %v3858 = vmax.f32 %v3830, 0.0
      %v3859 = vmax.f32 %v3835, 0.0
      %v3860 = vmax.f32 %v3838, 0.0
      %v3861 = vmax.f32 %v3843, 0.0
      %v3862 = vmax.f32 %v3846, 0.0
      %v3863 = vmax.f32 %v3851, 0.0
      %v3864 = vmax.f32 %v3854, 0.0
      %v3865 = vand.u32 2147483647, %v3827
      %v3866 = vand.u32 2147483647, %v3830
      %v3867 = vand.u32 2147483647, %v3835
      %v3868 = vand.u32 2147483647, %v3838
      %v3869 = vand.u32 2147483647, %v3843
      %v3870 = vand.u32 2147483647, %v3846
      %v3871 = vand.u32 2147483647, %v3851
      %v3872 = vand.u32 2147483647, %v3854
      %v3873 = vsub.f32 0.0, %v3865
      %v3874 = vsub.f32 0.0, %v3866
      %v3875 = vsub.f32 0.0, %v3867
      %v3876 = vsub.f32 0.0, %v3868
      %v3877 = vsub.f32 0.0, %v3869
      %v3878 = vsub.f32 0.0, %v3870
      %v3879 = vsub.f32 0.0, %v3871
      %v3880 = vsub.f32 0.0, %v3872
      %v3881 = vmul.f32 %v3873, 1.442695
      %v3882 = vpow.pop %v3881
      %v3883 = vmul.f32 %v3874, 1.442695
      %v3884 = vpow.pop %v3883
      %v3885 = vmul.f32 %v3875, 1.442695
      %v3886 = vpow.pop %v3885
      %v3887 = vmul.f32 %v3876, 1.442695
      %v3888 = vpow.pop %v3887
      %v3889 = vmul.f32 %v3877, 1.442695
      %v3890 = vpow.pop %v3889
      %v3891 = vmul.f32 %v3878, 1.442695
      %v3892 = vpow.pop %v3891
      %v3893 = vmul.f32 %v3879, 1.442695
      %v3894 = vpow.pop %v3893
      %v3895 = vmul.f32 %v3880, 1.442695
      %v3896 = vpow.pop %v3895
      %v3897 = vadd.f32 %v3882, 1.0
      %v3898 = vadd.f32 %v3884, 1.0
      %v3899 = vadd.f32 %v3886, 1.0
      %v3900 = vadd.f32 %v3888, 1.0
      %v3901 = vadd.f32 %v3890, 1.0
      %v3902 = vadd.f32 %v3892, 1.0
      %v3903 = vadd.f32 %v3894, 1.0
      %v3904 = vadd.f32 %v3896, 1.0
      %v3905 = vlog2.pop %v3897
      %v3906 = vmul.f32 %v3905, 0.6931472
      %v3907 = vlog2.pop %v3898
      %v3908 = vmul.f32 %v3907, 0.6931472
      %v3909 = vlog2.pop %v3899
      %v3910 = vmul.f32 %v3909, 0.6931472
      %v3911 = vlog2.pop %v3900
      %v3912 = vmul.f32 %v3911, 0.6931472
      %v3913 = vlog2.pop %v3901
      %v3914 = vmul.f32 %v3913, 0.6931472
      %v3915 = vlog2.pop %v3902
      %v3916 = vmul.f32 %v3915, 0.6931472
      %v3917 = vlog2.pop %v3903
      %v3918 = vmul.f32 %v3917, 0.6931472
      %v3919 = vlog2.pop %v3904
      %v3920 = vmul.f32 %v3919, 0.6931472
      %v3921 = vadd.f32 %v3857, %v3906
      %v3922 = vadd.f32 %v3858, %v3908
      %v3923 = vadd.f32 %v3859, %v3910
      %v3924 = vadd.f32 %v3860, %v3912
      %v3925 = vadd.f32 %v3861, %v3914
      %v3926 = vadd.f32 %v3862, %v3916
      %v3927 = vadd.f32 %v3863, %v3918
      %v3928 = vadd.f32 %v3864, %v3920
      %v3929 = vsub.f32 %v3921, 0.6931472
      %v3930 = vsub.f32 %v3922, 0.6931472
      %v3931 = vsub.f32 %v3923, 0.6931472
      %v3932 = vsub.f32 %v3924, 0.6931472
      %v3933 = vsub.f32 %v3925, 0.6931472
      %v3934 = vsub.f32 %v3926, 0.6931472
      %v3935 = vsub.f32 %v3927, 0.6931472
      %v3936 = vsub.f32 %v3928, 0.6931472
      %v3937 = vld [vmem:[%s10] sm:$0xff]
      %3946 = vrot.lane.b32.xlu0 %v3929, 120
      %v3947 = vpop.permute.xlu0 %3946
      %3948 = vrot.lane.b32.xlu0 %v3930, 120
      %v3949 = vpop.permute.xlu0 %3948
      %3950 = vrot.lane.b32.xlu0 %v3931, 120
      %v3951 = vpop.permute.xlu0 %3950
      %3952 = vrot.lane.b32.xlu0 %v3932, 120
      %v3953 = vpop.permute.xlu0 %3952
      %3954 = vrot.lane.b32.xlu0 %v3933, 120
      %v3955 = vpop.permute.xlu0 %3954
      %3956 = vrot.lane.b32.xlu0 %v3934, 120
      %v3957 = vpop.permute.xlu0 %3956
      %3958 = vrot.lane.b32.xlu0 %v3935, 120
      %v3959 = vpop.permute.xlu0 %3958
      %3960 = vrot.lane.b32.xlu0 %v3936, 120
      %v3961 = vpop.permute.xlu0 %3960
      %v3962 = vsel %vm1179, %v3947, 0
      %v3964 = vsel %vm1179, %v3949, 0
      %v3966 = vsel %vm1179, %v3951, 0
      %v3968 = vsel %vm1179, %v3953, 0
      %v3970 = vsel %vm1179, %v3955, 0
      %v3972 = vsel %vm1179, %v3957, 0
      %v3974 = vsel %vm1179, %v3959, 0
      %v3976 = vsel %vm1179, %v3961, 0
      %3978 = vmatprep.subr.mxu0 0.0
      %3979 = vmatpush1.msra.mxu0 %v3937
      %3980 = vmatprep.subr.mxu0 0.0
      %3981 = vmatpush1.msra.mxu0 0.0
      %3982 = vmatprep.subr.mxu0 0.0
      %3983 = vmatpush1.msra.mxu0 0.0
      %3984 = vmatprep.subr.mxu0 0.0
      %3985 = vmatpush1.msra.mxu0 0.0
      %3986 = vmatprep.subr.mxu0 0.0
      %3987 = vmatpush1.msra.mxu0 0.0
      %3988 = vmatprep.subr.mxu0 0.0
      %3989 = vmatpush1.msra.mxu0 0.0
      %3990 = vmatprep.subr.mxu0 0.0
      %3991 = vmatpush1.msra.mxu0 0.0
      %3992 = vmatprep.subr.mxu0 0.0
      %3993 = vmatpush1.msra.mxu0 0.0
      %3994 = vmatprep.subr.mxu0 0.0
      %3995 = vmatpush1.msra.mxu0 0.0
      %3996 = vmatprep.subr.mxu0 0.0
      %3997 = vmatpush1.msra.mxu0 0.0
      %3998 = vmatprep.subr.mxu0 0.0
      %3999 = vmatpush1.msra.mxu0 0.0
      %4000 = vmatprep.subr.mxu0 0.0
      %4001 = vmatpush1.msra.mxu0 0.0
      %4002 = vmatprep.subr.mxu0 0.0
      %4003 = vmatpush1.msra.mxu0 0.0
      %4004 = vmatprep.subr.mxu0 0.0
      %4005 = vmatpush1.msra.mxu0 0.0
      %4006 = vmatprep.subr.mxu0 0.0
      %4007 = vmatpush1.msra.mxu0 0.0
      %4008 = vmatprep.subr.mxu0 0.0
      %4009 = vmatpush1.msra.mxu0 0.0
      %4010 = vmatprep.subr.mxu0 0.0
      %4011 = vmatpush1.msra.mxu0 0.0
      %4012 = vmatprep.subr.mxu0 0.0
      %4013 = vmatpush1.msra.mxu0 0.0
      %4014 = vmatprep.subr.mxu0 0.0
      %4015 = vmatpush1.msra.mxu0 0.0
      %4016 = vmatprep.subr.mxu0 0.0
      %4017 = vmatpush1.msra.mxu0 0.0
      %4018 = vmatprep.subr.mxu0 0.0
      %4019 = vmatpush1.msra.mxu0 0.0
      %4020 = vmatprep.subr.mxu0 0.0
      %4021 = vmatpush1.msra.mxu0 0.0
      %4022 = vmatprep.subr.mxu0 0.0
      %4023 = vmatpush1.msra.mxu0 0.0
      %4024 = vmatprep.subr.mxu0 0.0
      %4025 = vmatpush1.msra.mxu0 0.0
      %4026 = vmatprep.subr.mxu0 0.0
      %4027 = vmatpush1.msra.mxu0 0.0
      %4028 = vmatprep.subr.mxu0 0.0
      %4029 = vmatpush1.msra.mxu0 0.0
      %4030 = vmatprep.subr.mxu0 0.0
      %4031 = vmatpush1.msra.mxu0 0.0
      %4032 = vmatprep.subr.mxu0 0.0
      %4033 = vmatpush1.msra.mxu0 0.0
      %4034 = vmatprep.subr.mxu0 0.0
      %4035 = vmatpush1.msra.mxu0 0.0
      %4036 = vmatprep.subr.mxu0 0.0
      %4037 = vmatpush1.msra.mxu0 0.0
      %4038 = vmatprep.subr.mxu0 0.0
      %4039 = vmatpush1.msra.mxu0 0.0
      %4040 = vmatprep.subr.mxu0 0.0
      %4041 = vmatpush1.msra.mxu0 0.0
      %4042 = vmatprep.mubr.f32.mxu0 0.0
      %4043 = vmatmul.mubr.f32.gmra.mrb[0].mxu0 %v3962
      %v4044 = vpop.f32.mrb[0].mxu0
      %v4045 = vadd.f32 0.0, %v4044
      %v4046 = vpop.f32.mrb[0].mxu0
      %4047 = vmatprep.mubr.f32.mxu0 0.0
      %4048 = vmatmul.mubr.f32.gmra.mrb[0].mxu0 %v3964
      %v4049 = vpop.f32.mrb[0].mxu0
      %v4050 = vadd.f32 0.0, %v4049
      %v4051 = vpop.f32.mrb[0].mxu0
      %4052 = vmatprep.mubr.f32.mxu0 0.0
      %4053 = vmatmul.mubr.f32.gmra.mrb[0].mxu0 %v3966
      %v4054 = vpop.f32.mrb[0].mxu0
      %v4055 = vadd.f32 0.0, %v4054
      %v4056 = vpop.f32.mrb[0].mxu0
      %4057 = vmatprep.mubr.f32.mxu0 0.0
      %4058 = vmatmul.mubr.f32.gmra.mrb[0].mxu0 %v3968
      %v4059 = vpop.f32.mrb[0].mxu0
      %v4060 = vadd.f32 0.0, %v4059
      %v4061 = vpop.f32.mrb[0].mxu0
      %4062 = vmatprep.mubr.f32.mxu0 0.0
      %4063 = vmatmul.mubr.f32.gmra.mrb[0].mxu0 %v3970
      %v4064 = vpop.f32.mrb[0].mxu0
      %v4065 = vadd.f32 0.0, %v4064
      %v4066 = vpop.f32.mrb[0].mxu0
      %4067 = vmatprep.mubr.f32.mxu0 0.0
      %4068 = vmatmul.mubr.f32.gmra.mrb[0].mxu0 %v3972
      %v4069 = vpop.f32.mrb[0].mxu0
      %v4070 = vadd.f32 0.0, %v4069
      %v4071 = vpop.f32.mrb[0].mxu0
      %4072 = vmatprep.mubr.f32.mxu0 0.0
      %4073 = vmatmul.mubr.f32.gmra.mrb[0].mxu0 %v3974
      %v4074 = vpop.f32.mrb[0].mxu0
      %v4075 = vadd.f32 0.0, %v4074
      %v4076 = vpop.f32.mrb[0].mxu0
      %4077 = vmatprep.mubr.f32.mxu0 0.0
      %4078 = vmatmul.mubr.f32.gmra.mrb[0].mxu0 %v3976
      %v4079 = vpop.f32.mrb[0].mxu0
      %v4080 = vadd.f32 0.0, %v4079
      %v4081 = vpop.f32.mrb[0].mxu0
      %4082 = vdwg.mxu0
      %v4083 = vadd.f32 %v476, %v3929
      %v4084 = vadd.f32 %v477, %v3930
      %v4085 = vadd.f32 %v478, %v3931
      %v4086 = vadd.f32 %v479, %v3932
      %v4087 = vadd.f32 %v480, %v3933
      %v4088 = vadd.f32 %v481, %v3934
      %v4089 = vadd.f32 %v482, %v3935
      %v4090 = vadd.f32 %v483, %v3936
      %4091 = vst.msk [vmem:[%s473] sm:$0xff] %vm1179, %v4083
      %4092 = vst.msk [vmem:[%s473 + $0x8] sm:$0xff] %vm1179, %v4084
      %4093 = vst.msk [vmem:[%s473 + $0x10] sm:$0xff] %vm1179, %v4085
      %4094 = vst.msk [vmem:[%s473 + $0x18] sm:$0xff] %vm1179, %v4086
      %4095 = vst.msk [vmem:[%s473 + $0x20] sm:$0xff] %vm1179, %v4087
      %4096 = vst.msk [vmem:[%s473 + $0x28] sm:$0xff] %vm1179, %v4088
      %4097 = vst.msk [vmem:[%s473 + $0x30] sm:$0xff] %vm1179, %v4089
      %4098 = vst.msk [vmem:[%s473 + $0x38] sm:$0xff] %vm1179, %v4090
      %4107 = vrot.lane.b32.xlu0 %v4045, 16
      %v4108 = vpop.permute.xlu0 %4107
      %4109 = vrot.lane.b32.xlu0 %v4050, 16
      %v4110 = vpop.permute.xlu0 %4109
      %4111 = vrot.lane.b32.xlu0 %v4055, 16
      %v4112 = vpop.permute.xlu0 %4111
      %4113 = vrot.lane.b32.xlu0 %v4060, 16
      %v4114 = vpop.permute.xlu0 %4113
      %4115 = vrot.lane.b32.xlu0 %v4065, 16
      %v4116 = vpop.permute.xlu0 %4115
      %4117 = vrot.lane.b32.xlu0 %v4070, 16
      %v4118 = vpop.permute.xlu0 %4117
      %4119 = vrot.lane.b32.xlu0 %v4075, 16
      %v4120 = vpop.permute.xlu0 %4119
      %4121 = vrot.lane.b32.xlu0 %v4080, 16
      %v4122 = vpop.permute.xlu0 %4121
      %v4131 = vmul.f32 %v3827, %v4108
      %v4132 = vmul.f32 %v3830, %v4110
      %v4133 = vmul.f32 %v3835, %v4112
      %v4134 = vmul.f32 %v3838, %v4114
      %v4135 = vmul.f32 %v3843, %v4116
      %v4136 = vmul.f32 %v3846, %v4118
      %v4137 = vmul.f32 %v3851, %v4120
      %v4138 = vmul.f32 %v3854, %v4122
      %4147 = vrot.lane.b32.xlu0 %v4131, 120
      %v4148 = vpop.permute.xlu0 %4147
      %4149 = vrot.lane.b32.xlu0 %v4132, 120
      %v4150 = vpop.permute.xlu0 %4149
      %4151 = vrot.lane.b32.xlu0 %v4133, 120
      %v4152 = vpop.permute.xlu0 %4151
      %4153 = vrot.lane.b32.xlu0 %v4134, 120
      %v4154 = vpop.permute.xlu0 %4153
      %4155 = vrot.lane.b32.xlu0 %v4135, 120
      %v4156 = vpop.permute.xlu0 %4155
      %4157 = vrot.lane.b32.xlu0 %v4136, 120
      %v4158 = vpop.permute.xlu0 %4157
      %4159 = vrot.lane.b32.xlu0 %v4137, 120
      %v4160 = vpop.permute.xlu0 %4159
      %4161 = vrot.lane.b32.xlu0 %v4138, 120
      %v4162 = vpop.permute.xlu0 %4161
      %v4171 = vadd.f32 %v476, %v4148
      %v4172 = vadd.f32 %v477, %v4150
      %v4173 = vadd.f32 %v478, %v4152
      %v4174 = vadd.f32 %v479, %v4154
      %v4175 = vadd.f32 %v480, %v4156
      %v4176 = vadd.f32 %v481, %v4158
      %v4177 = vadd.f32 %v482, %v4160
      %v4178 = vadd.f32 %v483, %v4162
      %vm4179 = vcmask 261184
      %4180 = vst.msk [vmem:[%s473] sm:$0xff] %vm4179, %v4171
      %4181 = vst.msk [vmem:[%s473 + $0x8] sm:$0xff] %vm4179, %v4172
      %4182 = vst.msk [vmem:[%s473 + $0x10] sm:$0xff] %vm4179, %v4173
      %4183 = vst.msk [vmem:[%s473 + $0x18] sm:$0xff] %vm4179, %v4174
      %4184 = vst.msk [vmem:[%s473 + $0x20] sm:$0xff] %vm4179, %v4175
      %4185 = vst.msk [vmem:[%s473 + $0x28] sm:$0xff] %vm4179, %v4176
      %4186 = vst.msk [vmem:[%s473 + $0x30] sm:$0xff] %vm4179, %v4177
      %4187 = vst.msk [vmem:[%s473 + $0x38] sm:$0xff] %vm4179, %v4178
      %s4188 = smul.u32 8, %s22
      %p4189 = scmp.lt.s32.totalorder %s4188, 31
      %s4190 = scalar_select %p4189, %s4188, 31
      %s4191 = smul.addr %s4190, 8
      %s4192 = scalar_lea.vmem %s11, %s4191
      // Predicated region
      $region65: #{tpu_custom_call.1} parent=63 // pred_check
        %p4193 = pneg %p296
      $region66: #{tpu_custom_call.1} parent=63 // pred_check_branch
        %4195 = sbr.rel (%p4193) target = $region68
      $region67: #{tpu_custom_call.1} parent=63 // pred_region
        %s4196 = smul.u32 8, %s22
      $region68: #{tpu_custom_call.1} parent=63 // pred_fallthru
        _
    $region64: #{tpu_custom_call.1} parent=5 // pred_fallthru
      _
    %p4197 = scmp.le.s32.totalorder 2, %s17
    // Predicated region
    $region69: #{tpu_custom_call.1} parent=5 // pred_check
      %p4198 = pneg %p4197
    $region70: #{tpu_custom_call.1} parent=5 // pred_check_branch
      %4200 = sbr.rel (%p4198) target = $region72
    $region71: #{tpu_custom_call.1} parent=5 // pred_region
      %s4201 = ssub.s32 %s17, 2
      // Predicated region
      $region73: #{tpu_custom_call.1} parent=71 // pred_check
        %p4202 = pneg %p302
      $region74: #{tpu_custom_call.1} parent=71 // pred_check_branch
        %4204 = sbr.rel (%p4202) target = $region76
      $region75: #{tpu_custom_call.1} parent=71 // pred_region
        %s4205 = smul.u32 8, %s23
        %p4206 = scmp.lt.s32.totalorder %s4205, 31
        %s4207 = scalar_select %p4206, %s4205, 31
        %s4208 = smul.addr %s4207, 8
        %s4209 = scalar_lea.vmem %s11, %s4208
      $region76: #{tpu_custom_call.1} parent=71 // pred_fallthru
        _
    $region72: #{tpu_custom_call.1} parent=5 // pred_fallthru
      _
  $region6: #{tpu_custom_call.1} parent=0 // loop_footer
    %s21 = sadd.s32 1, %s17
  $region7: #{tpu_custom_call.1} parent=0 // loop_footer_branch
    %16 = sbr.rel target = $region3
  $region8: #{tpu_custom_call.1} parent=0 // loop_exit
    _

</llo_original>
